<compile_context>
chip_gen: v5e
topology: v5e:2x2
jax: 0.10.0
libtpu: 0.0.40
codegen_flags: <defaults>
</compile_context>

<pallas_src>
import functools

import numpy as np
import jax
import jax.numpy as jnp
from jax.experimental import pallas as pl
from jax.experimental.pallas import tpu as pltpu

_LN_EPS = 1e-5
_GELU_C = 0.7978845608028654  # sqrt(2/pi)

# ----------------------- packed-slab row indices (static) ----------------------
# vecC slab: (24, C) f32
_NORM1_W, _NORM1_B = 0, 1
_NORM2_W, _NORM2_B = 2, 3
_QKVP_LN_W, _QKVP_LN_B = 4, 5
_QPROX_LN_W, _QPROX_LN_B = 6, 7
_P_LN_W, _P_LN_B = 8, 9
_PROXY_LN_W, _PROXY_LN_B = 10, 11
_BQ_SELF, _BK_SELF, _BV_SELF = 12, 13, 14
_BQ_PROX, _BK_PROX, _BV_PROX = 15, 16, 17
_BQ_X, _BK_X, _BV_X, _B_PROJ = 18, 19, 20, 21
_B_MLP_P_FC2, _B_FC2 = 22, 23
_VECC_ROWS = 24

# wmats slab: (10, C, C) bf16
_WQ_SELF, _WK_SELF, _WV_SELF = 0, 1, 2
_WQ_PROX, _WK_PROX, _WV_PROX = 3, 4, 5
_WQ_X, _WK_X, _WV_X, _W_PROJ = 6, 7, 8, 9
_WMATS_ROWS = 10

# vecH slab: (11, hid) f32
_B_FC1, _B_DW, _DW0 = 0, 1, 2   # depthwise taps at rows 2..10 (tap k = ki*3 + kj)
_VECH_ROWS = 11


# ----------------------------- in-kernel helpers -----------------------------

def _gelu_tanh(x):
    return 0.5 * x * (1.0 + jnp.tanh(_GELU_C * (x + 0.044715 * x * x * x)))


def _layernorm(x, w, b):
    mu = jnp.mean(x, axis=-1, keepdims=True)
    xc = x - mu
    var = jnp.mean(xc * xc, axis=-1, keepdims=True)
    return xc * jax.lax.rsqrt(var + _LN_EPS) * w + b


def _mha(q_in, kv_in, wq, bq, wk, bk, wv, bv, *, scale, num_heads):
    """Multi-head attention; returns the head-concatenated (Nq, C) f32 output
    (channel order h*d + j, i.e. torch's transpose(1,2).reshape recombination).

    Projections are single lane-dense (C, C) bf16 MXU matmuls with f32 accumulation;
    heads are re-split with static 32-lane slices (XLU) for the tiny score / PV matmuls.
    """
    bf16 = jnp.bfloat16
    _, c = q_in.shape
    d = c // num_heads
    q = jnp.dot(q_in.astype(bf16), wq, preferred_element_type=jnp.float32) + bq
    k = jnp.dot(kv_in.astype(bf16), wk, preferred_element_type=jnp.float32) + bk
    v = jnp.dot(kv_in.astype(bf16), wv, preferred_element_type=jnp.float32) + bv
    q = q * scale                               # fold softmax scale into q (Nq*C vs Nq*Nk work)
    outs = []
    for h in range(num_heads):                  # static unrolled loop
        lo, hi = h * d, (h + 1) * d
        qh = q[:, lo:hi].astype(bf16)           # (Nq, d)
        kh = k[:, lo:hi].astype(bf16)           # (Nk, d)
        vh = v[:, lo:hi].astype(bf16)
        s = jax.lax.dot_general(qh, kh, (((1,), (1,)), ((), ())),
                                preferred_element_type=jnp.float32)   # q @ k^T  (Nq, Nk)
        s = s - jnp.max(s, axis=-1, keepdims=True)
        e = jnp.exp(s)
        p = e * pl.reciprocal(jnp.sum(e, axis=-1, keepdims=True), approx=True)
        outs.append(jnp.dot(p.astype(bf16), vh, preferred_element_type=jnp.float32))
    return jnp.concatenate(outs, axis=-1)       # (Nq, C) f32


# --------------------------------- fused kernel --------------------------------

def _dual_block_kernel(num_heads, scale, w_img,
                       x_ref, sem_ref,
                       wm_ref, vc_ref, vh_ref, b1p_ref, mask_ref,
                       w1p_ref, w2p_ref, w1f_ref, w2f_ref,
                       xo_ref, semo_ref):
    bf16 = jnp.bfloat16
    x = x_ref[0]                                # (N, C) f32
    sem = sem_ref[0]                            # (P, C) f32
    n_tok = x.shape[0]

    def vrow(ref, r):                           # (1, cols) static row slice from a slab
        return ref[pl.ds(r, 1), :]

    def ln(v, wr, br):
        return _layernorm(v, vrow(vc_ref, wr), vrow(vc_ref, br))

    def attend(q_in, kv_in, iwq, ibq, iwk, ibk, iwv, ibv):
        return _mha(q_in, kv_in,
                    wm_ref[iwq], vrow(vc_ref, ibq),
                    wm_ref[iwk], vrow(vc_ref, ibk),
                    wm_ref[iwv], vrow(vc_ref, ibv),
                    scale=scale, num_heads=num_heads)

    # norm1(x) is shared by the (proxy <- x) kv and the (x <- proxy) q paths.
    xn = ln(x, _NORM1_W, _NORM1_B)

    # (1) proxy self-attention: sem += gamma1_attn * selfatt(sem)  (gamma folded into Wv/bv)
    sn = ln(sem, _QKVP_LN_W, _QKVP_LN_B)
    sem = sem + attend(sn, sn, _WQ_SELF, _BQ_SELF, _WK_SELF, _BK_SELF, _WV_SELF, _BV_SELF)

    # (2) (proxy <- x) cross attention: sem += gamma2_attn * attn(q_proxy(LN(sem)), kv_proxy(xn))
    qs = ln(sem, _QPROX_LN_W, _QPROX_LN_B)
    sem = sem + attend(qs, xn, _WQ_PROX, _BQ_PROX, _WK_PROX, _BK_PROX, _WV_PROX, _BV_PROX)

    # (3) proxy MLP: sem += gamma3_attn * fc2(relu(fc1(LN(sem))))  (gamma folded into fc2)
    pn = ln(sem, _P_LN_W, _P_LN_B)
    hmid = jnp.dot(pn.astype(bf16), w1p_ref[...],
                   preferred_element_type=jnp.float32) + b1p_ref[...]
    hmid = jnp.maximum(hmid, 0.0)
    sem = sem + (jnp.dot(hmid.astype(bf16), w2p_ref[...],
                         preferred_element_type=jnp.float32) + vrow(vc_ref, _B_MLP_P_FC2))
    semo_ref[0] = sem.astype(semo_ref.dtype)

    # (4) (x <- proxy) attention + output projection; gamma1_blk folded into proj weights.
    kvn = ln(sem, _PROXY_LN_W, _PROXY_LN_B)
    o = attend(xn, kvn, _WQ_X, _BQ_X, _WK_X, _BK_X, _WV_X, _BV_X)
    x = x + (jnp.dot(o.astype(bf16), wm_ref[_W_PROJ],
                     preferred_element_type=jnp.float32) + vrow(vc_ref, _B_PROJ))

    # (5) PVT2FFN: fc1 -> 3x3 depthwise conv (roll-based taps) -> GELU -> fc2 (gamma2_blk folded).
    xn2 = ln(x, _NORM2_W, _NORM2_B)
    h1 = jnp.dot(xn2.astype(bf16), w1f_ref[...],
                 preferred_element_type=jnp.float32) + vrow(vh_ref, _B_FC1)     # (N, hid)
    conv = jnp.zeros_like(h1)
    for ki in range(3):
        for kj in range(3):
            tap = ki * 3 + kj
            delta = (ki - 1) * w_img + (kj - 1)          # flat token offset of the neighbour
            shifted = h1 if delta == 0 else pltpu.roll(h1, shift=(-delta) % n_tok, axis=0)
            conv = conv + (shifted * mask_ref[tap]) * vrow(vh_ref, _DW0 + tap)
    conv = conv + vrow(vh_ref, _B_DW)
    act = _gelu_tanh(conv)
    out = jnp.dot(act.astype(bf16), w2f_ref[...],
                  preferred_element_type=jnp.float32) + vrow(vc_ref, _B_FC2)
    xo_ref[0] = (x + out).astype(xo_ref.dtype)


# ---------------------------- wrapper / plumbing ------------------------------

def _conv_masks(h_img, w_img):
    """(9, N, 1) 0/1 validity mask per 3x3 tap (zero-padding boundary handling)."""
    n = h_img * w_img
    m = np.zeros((9, n, 1), np.float32)
    for ki in range(3):
        for kj in range(3):
            k = ki * 3 + kj
            di, dj = ki - 1, kj - 1
            for i in range(h_img):
                for j in range(w_img):
                    if 0 <= i + di < h_img and 0 <= j + dj < w_img:
                        m[k, i * w_img + j, 0] = 1.0
    return jnp.asarray(m)


def dual_block_forward(x, semantics, params, h_img, w_img, num_heads):
    """x: (B, N, C), semantics: (B, P, C). Returns (x_out, semantics_out)."""
    b, n, c = x.shape
    _, p_tok, _ = semantics.shape
    assert n == h_img * w_img
    d = c // num_heads
    scale = d ** (-0.5)
    hid = params['fc1_w'].shape[0]
    bf16 = jnp.bfloat16

    # ---------- static weight re-layout / packing (wrapper side, free) ----------
    wq_s, wk_s, wv_s = jnp.split(params['qkv_proxy_w'], 3, axis=0)
    bq_s, bk_s, bv_s = jnp.split(params['qkv_proxy_b'], 3, axis=0)
    wk_p, wv_p = jnp.split(params['kv_proxy_w'], 2, axis=0)
    bk_p, bv_p = jnp.split(params['kv_proxy_b'], 2, axis=0)
    wk_x, wv_x = jnp.split(params['kv_w'], 2, axis=0)
    bk_x, bv_x = jnp.split(params['kv_b'], 2, axis=0)

    g1a, g2a, g3a = params['gamma1_attn'], params['gamma2_attn'], params['gamma3_attn']
    g1b, g2b = params['gamma1_blk'], params['gamma2_blk']

    # (10, C, C) bf16: all (C,C) attention matrices, transposed to (in, out) rhs layout.
    # Layer-scale gammas are folded into the value / projection columns.
    wmats = jnp.stack([
        wq_s.T, wk_s.T, wv_s.T * g1a[None, :],
        params['q_proxy_w'].T, wk_p.T, wv_p.T * g2a[None, :],
        params['q_w'].T, wk_x.T, wv_x.T,
        params['proj_w'].T * g1b[None, :],
    ]).astype(bf16)

    # (24, C) f32: LayerNorm params + all C-length biases (gammas folded where applicable).
    vecC = jnp.stack([
        params['norm1_w'], params['norm1_b'],
        params['norm2_w'], params['norm2_b'],
        params['qkv_proxy_ln_w'], params['qkv_proxy_ln_b'],
        params['q_proxy_ln_w'], params['q_proxy_ln_b'],
        params['p_ln_w'], params['p_ln_b'],
        params['proxy_ln_w'], params['proxy_ln_b'],
        bq_s, bk_s, bv_s * g1a,
        params['q_proxy_b'], bk_p, bv_p * g2a,
        params['q_b'], bk_x, bv_x,
        params['proj_b'] * g1b,
        params['mlp_proxy_fc2_b'] * g3a,
        params['fc2_b'] * g2b,
    ])
    assert vecC.shape == (_VECC_ROWS, c) and wmats.shape == (_WMATS_ROWS, c, c)

    # (11, hid) f32: fc1 bias, dw bias, 9 depthwise-conv per-channel taps.
    vecH = jnp.concatenate([
        params['fc1_b'][None, :], params['dw_b'][None, :],
        params['dw_w'].reshape(9, hid),
    ], axis=0)
    assert vecH.shape == (_VECH_ROWS, hid)

    b1p = params['mlp_proxy_fc1_b'][None, :]                              # (1, 4C)
    w1p = params['mlp_proxy_fc1_w'].T.astype(bf16)                        # (C, 4C)
    w2p = (params['mlp_proxy_fc2_w'].T * g3a[None, :]).astype(bf16)       # (4C, C), gamma3 folded
    w1f = params['fc1_w'].T.astype(bf16)                                  # (C, hid)
    w2f = (params['fc2_w'].T * g2b[None, :]).astype(bf16)                 # (hid, C), gamma2_blk folded
    masks = _conv_masks(h_img, w_img)                                     # (9, N, 1)

    wspec = pl.BlockSpec(memory_space=pltpu.MemorySpace.VMEM)   # whole array, resident
    xspec = pl.BlockSpec((1, n, c), lambda i: (i, 0, 0))
    sspec = pl.BlockSpec((1, p_tok, c), lambda i: (i, 0, 0))

    kern = functools.partial(_dual_block_kernel, num_heads, scale, w_img)
    x_out, sem_out = pl.pallas_call(
        kern,
        out_shape=(jax.ShapeDtypeStruct((b, n, c), x.dtype),
                   jax.ShapeDtypeStruct((b, p_tok, c), semantics.dtype)),
        grid_spec=pltpu.PrefetchScalarGridSpec(
            num_scalar_prefetch=0,
            grid=(b,),
            in_specs=[xspec, sspec] + [wspec] * 9,
            out_specs=[xspec, sspec]),
        compiler_params=pltpu.CompilerParams(
            dimension_semantics=("parallel",)),
        input_output_aliases={0: 0, 1: 1},   # x -> x_out, semantics -> semantics_out
    )(x, semantics, wmats, vecC, vecH, b1p, masks, w1p, w2p, w1f, w2f)

    return x_out, sem_out


# ------------------------------ pure-JAX reference ----------------------------

def _layernorm_ref(x, w, b):
    mu = x.mean(axis=-1, keepdims=True)
    var = ((x - mu) ** 2).mean(axis=-1, keepdims=True)
    return (x - mu) / jnp.sqrt(var + _LN_EPS) * w + b


def _mha_ref(q_in, kv_in, wq, bq, wk, bk, wv, bv, num_heads, scale):
    bsz, nq, c = q_in.shape
    nk = kv_in.shape[1]
    d = c // num_heads
    q = q_in @ wq.T + bq
    k = kv_in @ wk.T + bk
    v = kv_in @ wv.T + bv
    q = q.reshape(bsz, nq, num_heads, d).transpose(0, 2, 1, 3)
    k = k.reshape(bsz, nk, num_heads, d).transpose(0, 2, 1, 3)
    v = v.reshape(bsz, nk, num_heads, d).transpose(0, 2, 1, 3)
    attn = jnp.einsum('bhnd,bhmd->bhnm', q, k) * scale
    attn = jax.nn.softmax(attn, axis=-1)
    out = jnp.einsum('bhnm,bhmd->bhnd', attn, v)
    return out.transpose(0, 2, 1, 3).reshape(bsz, nq, c)


def reference_dual_block(x, semantics, p, h_img, w_img, num_heads):
    bsz, n, c = x.shape
    d = c // num_heads
    scale = d ** (-0.5)

    xn = _layernorm_ref(x, p['norm1_w'], p['norm1_b'])
    sem = semantics

    # DualAttention.selfatt
    sn = _layernorm_ref(sem, p['qkv_proxy_ln_w'], p['qkv_proxy_ln_b'])
    wq_p, wk_p, wv_p = jnp.split(p['qkv_proxy_w'], 3, axis=0)
    bq_p, bk_p, bv_p = jnp.split(p['qkv_proxy_b'], 3, axis=0)
    sem = sem + p['gamma1_attn'] * _mha_ref(sn, sn, wq_p, bq_p, wk_p, bk_p,
                                            wv_p, bv_p, num_heads, scale)

    # (proxy <- x) cross attention
    qs = _layernorm_ref(sem, p['q_proxy_ln_w'], p['q_proxy_ln_b'])
    wk2, wv2 = jnp.split(p['kv_proxy_w'], 2, axis=0)
    bk2, bv2 = jnp.split(p['kv_proxy_b'], 2, axis=0)
    sem = sem + _mha_ref(qs, xn, p['q_proxy_w'], p['q_proxy_b'],
                         wk2, bk2, wv2, bv2, num_heads, scale) * p['gamma2_attn']

    # proxy MLP
    pn = _layernorm_ref(sem, p['p_ln_w'], p['p_ln_b'])
    hmid = jnp.maximum(pn @ p['mlp_proxy_fc1_w'].T + p['mlp_proxy_fc1_b'], 0.0)
    sem = sem + p['gamma3_attn'] * (hmid @ p['mlp_proxy_fc2_w'].T + p['mlp_proxy_fc2_b'])

    # (x <- proxy) attention + proj, block residual
    kvn = _layernorm_ref(sem, p['proxy_ln_w'], p['proxy_ln_b'])
    wk3, wv3 = jnp.split(p['kv_w'], 2, axis=0)
    bk3, bv3 = jnp.split(p['kv_b'], 2, axis=0)
    att = _mha_ref(xn, kvn, p['q_w'], p['q_b'], wk3, bk3, wv3, bv3, num_heads, scale)
    _x = att @ p['proj_w'].T + p['proj_b']
    x = x + p['gamma1_blk'] * _x

    # PVT2FFN
    xn2 = _layernorm_ref(x, p['norm2_w'], p['norm2_b'])
    h1 = xn2 @ p['fc1_w'].T + p['fc1_b']
    hid = h1.shape[-1]
    img = h1.reshape(bsz, h_img, w_img, hid)
    pad = jnp.pad(img, ((0, 0), (1, 1), (1, 1), (0, 0)))
    conv = jnp.zeros_like(img)
    for ki in range(3):
        for kj in range(3):
            conv = conv + pad[:, ki:ki + h_img, kj:kj + w_img, :] * p['dw_w'][ki, kj]
    conv = conv + p['dw_b']
    act = _gelu_tanh(conv.reshape(bsz, n, hid))
    x = x + p['gamma2_blk'] * (act @ p['fc2_w'].T + p['fc2_b'])
    return x, sem


# ----------------------------------- demo -------------------------------------

def _make_params(key, c, hid, num_heads):
    keys = iter(jax.random.split(key, 64))
    nrm = lambda shape, s=0.02: s * jax.random.normal(next(keys), shape, dtype=jnp.float32)
    lnw = lambda: 1.0 + 0.1 * jax.random.normal(next(keys), (c,), dtype=jnp.float32)
    lnb = lambda: 0.05 * jax.random.normal(next(keys), (c,), dtype=jnp.float32)
    gam = lambda: jax.random.uniform(next(keys), (c,), dtype=jnp.float32,
                                     minval=0.5, maxval=1.5)
    # NOTE: gammas/biases are randomized (instead of the module's 1e-6 / 0 init) so the
    # reference check actually exercises the full computation path.
    return {
        # DualBlock
        'norm1_w': lnw(), 'norm1_b': lnb(),
        'norm2_w': lnw(), 'norm2_b': lnb(),
        'gamma1_blk': gam(), 'gamma2_blk': gam(),
        # DualAttention
        'q_w': nrm((c, c)), 'q_b': nrm((c,)),
        'kv_w': nrm((2 * c, c)), 'kv_b': nrm((2 * c,)),
        'proj_w': nrm((c, c)), 'proj_b': nrm((c,)),
        'q_proxy_w': nrm((c, c)), 'q_proxy_b': nrm((c,)),
        'kv_proxy_w': nrm((2 * c, c)), 'kv_proxy_b': nrm((2 * c,)),
        'q_proxy_ln_w': lnw(), 'q_proxy_ln_b': lnb(),
        'p_ln_w': lnw(), 'p_ln_b': lnb(),
        'proxy_ln_w': lnw(), 'proxy_ln_b': lnb(),
        'qkv_proxy_ln_w': lnw(), 'qkv_proxy_ln_b': lnb(),
        'qkv_proxy_w': nrm((3 * c, c)), 'qkv_proxy_b': nrm((3 * c,)),
        'mlp_proxy_fc1_w': nrm((4 * c, c)), 'mlp_proxy_fc1_b': nrm((4 * c,)),
        'mlp_proxy_fc2_w': nrm((c, 4 * c)), 'mlp_proxy_fc2_b': nrm((c,)),
        'gamma1_attn': gam(), 'gamma2_attn': gam(), 'gamma3_attn': gam(),
        # PVT2FFN  (dw_w is (kh, kw, channel) == torch (hid,1,3,3).permute(2,3,1,0).squeeze)
        'fc1_w': nrm((hid, c)), 'fc1_b': nrm((hid,)),
        'dw_w': nrm((3, 3, hid), s=0.1), 'dw_b': nrm((hid,)),
        'fc2_w': nrm((c, hid)), 'fc2_b': nrm((c,)),
    }


if __name__ == "__main__":
    B, H_IMG, W_IMG = 2, 8, 8            # N = 64 tokens
    C, NUM_HEADS, MLP_RATIO = 128, 4, 2  # C = 128 -> lane-dense loads/stores
    P_TOK = 8                            # proxy (semantics) tokens
    N = H_IMG * W_IMG
    HID = C * MLP_RATIO

    key = jax.random.PRNGKey(0)
    kx, ks, kp = jax.random.split(key, 3)
    x = jax.random.normal(kx, (B, N, C), dtype=jnp.float32)
    semantics = jax.random.normal(ks, (B, P_TOK, C), dtype=jnp.float32)
    params = _make_params(kp, C, HID, NUM_HEADS)

    # Reference is computed first: the Pallas call aliases (donates) x / semantics buffers.
    x_exp, sem_exp = reference_dual_block(x, semantics, params, H_IMG, W_IMG, NUM_HEADS)
    x_exp = jax.block_until_ready(x_exp)

    x_out, sem_out = dual_block_forward(x, semantics, params, H_IMG, W_IMG, NUM_HEADS)
    x_out = jax.block_until_ready(x_out)
    sem_out = jax.block_until_ready(sem_out)

    assert x_out.shape == (B, N, C) and sem_out.shape == (B, P_TOK, C)
    # bf16 MXU operands + approx-reciprocal softmax -> relaxed tolerance vs f32 reference.
    assert jnp.allclose(x_out, x_exp, atol=2e-2, rtol=2e-2), "x mismatch vs reference"
    assert jnp.allclose(sem_out, sem_exp, atol=2e-2, rtol=2e-2), "semantics mismatch vs reference"

    print("KERNEL_OK")
</pallas_src>

<mosaic_0001>
module attributes {stable_mosaic.version = 11 : i64} {
  func.func @_dual_block_kernel(%arg0: i32, %arg1: memref<1x64x128xf32, #tpu.memory_space<vmem>>, %arg2: memref<1x8x128xf32, #tpu.memory_space<vmem>>, %arg3: memref<10x128x128xbf16, #tpu.memory_space<vmem>>, %arg4: memref<24x128xf32, #tpu.memory_space<vmem>>, %arg5: memref<11x256xf32, #tpu.memory_space<vmem>>, %arg6: memref<1x512xf32, #tpu.memory_space<vmem>>, %arg7: memref<9x64x1xf32, #tpu.memory_space<vmem>>, %arg8: memref<128x512xbf16, #tpu.memory_space<vmem>>, %arg9: memref<512x128xbf16, #tpu.memory_space<vmem>>, %arg10: memref<128x256xbf16, #tpu.memory_space<vmem>>, %arg11: memref<256x128xbf16, #tpu.memory_space<vmem>>, %arg12: memref<1x64x128xf32, #tpu.memory_space<vmem>>, %arg13: memref<1x8x128xf32, #tpu.memory_space<vmem>>) attributes {dimension_semantics = [#tpu.dimension_semantics<parallel>], iteration_bounds = array<i64: 2>, scalar_prefetch = 0 : i64, scratch_operands = 0 : i64, tpu.core_type = #tpu.core_type<tc>, window_params = [{transform_indices = @transform_0, window_bounds = array<i64: 1, 64, 128>}, {transform_indices = @transform_1, window_bounds = array<i64: 1, 8, 128>}, {pipeline_mode = #tpu.pipeline_mode<synchronous>, transform_indices = @transform_2, window_bounds = array<i64: 10, 128, 128>}, {pipeline_mode = #tpu.pipeline_mode<synchronous>, transform_indices = @transform_3, window_bounds = array<i64: 24, 128>}, {pipeline_mode = #tpu.pipeline_mode<synchronous>, transform_indices = @transform_4, window_bounds = array<i64: 11, 256>}, {pipeline_mode = #tpu.pipeline_mode<synchronous>, transform_indices = @transform_5, window_bounds = array<i64: 1, 512>}, {pipeline_mode = #tpu.pipeline_mode<synchronous>, transform_indices = @transform_6, window_bounds = array<i64: 9, 64, 1>}, {pipeline_mode = #tpu.pipeline_mode<synchronous>, transform_indices = @transform_7, window_bounds = array<i64: 128, 512>}, {pipeline_mode = #tpu.pipeline_mode<synchronous>, transform_indices = @transform_8, window_bounds = array<i64: 512, 128>}, {pipeline_mode = #tpu.pipeline_mode<synchronous>, transform_indices = @transform_9, window_bounds = array<i64: 128, 256>}, {pipeline_mode = #tpu.pipeline_mode<synchronous>, transform_indices = @transform_10, window_bounds = array<i64: 256, 128>}, {transform_indices = @transform_11, window_bounds = array<i64: 1, 64, 128>}, {transform_indices = @transform_12, window_bounds = array<i64: 1, 8, 128>}]} {
    %c0 = arith.constant 0 : index
    %c0_0 = arith.constant 0 : index
    %c0_1 = arith.constant 0 : index
    %0 = vector.load %arg1[%c0, %c0_0, %c0_1] : memref<1x64x128xf32, #tpu.memory_space<vmem>>, vector<1x64x128xf32>
    %1 = vector.shape_cast %0 : vector<1x64x128xf32> to vector<64x128xf32>
    %c0_2 = arith.constant 0 : index
    %c0_3 = arith.constant 0 : index
    %c0_4 = arith.constant 0 : index
    %2 = vector.load %arg2[%c0_2, %c0_3, %c0_4] : memref<1x8x128xf32, #tpu.memory_space<vmem>>, vector<1x8x128xf32>
    %3 = vector.shape_cast %2 : vector<1x8x128xf32> to vector<8x128xf32>
    %c0_5 = arith.constant 0 : index
    %c0_6 = arith.constant 0 : index
    %4 = vector.load %arg4[%c0_5, %c0_6] : memref<24x128xf32, #tpu.memory_space<vmem>>, vector<1x128xf32>
    %c1 = arith.constant 1 : index
    %c0_7 = arith.constant 0 : index
    %5 = vector.load %arg4[%c1, %c0_7] : memref<24x128xf32, #tpu.memory_space<vmem>>, vector<1x128xf32>
    %cst = arith.constant dense<0.000000e+00> : vector<64xf32>
    %6 = vector.multi_reduction <add>, %1, %cst [1] : vector<64x128xf32> to vector<64xf32>
    %7 = vector.shape_cast %6 : vector<64xf32> to vector<64x1xf32>
    %cst_8 = arith.constant 1.280000e+02 : f32
    %8 = vector.broadcast %cst_8 : f32 to vector<64x1xf32>
    %9 = arith.divf %7, %8 : vector<64x1xf32>
    %10 = vector.broadcast %9 : vector<64x1xf32> to vector<64x128xf32>
    %11 = arith.subf %1, %10 : vector<64x128xf32>
    %12 = arith.mulf %11, %11 : vector<64x128xf32>
    %cst_9 = arith.constant dense<0.000000e+00> : vector<64xf32>
    %13 = vector.multi_reduction <add>, %12, %cst_9 [1] : vector<64x128xf32> to vector<64xf32>
    %14 = vector.shape_cast %13 : vector<64xf32> to vector<64x1xf32>
    %cst_10 = arith.constant 1.280000e+02 : f32
    %15 = vector.broadcast %cst_10 : f32 to vector<64x1xf32>
    %16 = arith.divf %14, %15 : vector<64x1xf32>
    %cst_11 = arith.constant 9.99999974E-6 : f32
    %17 = vector.broadcast %cst_11 : f32 to vector<64x1xf32>
    %18 = arith.addf %16, %17 : vector<64x1xf32>
    %19 = math.rsqrt %18 : vector<64x1xf32>
    %20 = vector.broadcast %19 : vector<64x1xf32> to vector<64x128xf32>
    %21 = arith.mulf %11, %20 : vector<64x128xf32>
    %22 = vector.broadcast %4 : vector<1x128xf32> to vector<64x128xf32>
    %23 = arith.mulf %21, %22 : vector<64x128xf32>
    %24 = vector.broadcast %5 : vector<1x128xf32> to vector<64x128xf32>
    %25 = arith.addf %23, %24 : vector<64x128xf32>
    %c4 = arith.constant 4 : index
    %c0_12 = arith.constant 0 : index
    %26 = vector.load %arg4[%c4, %c0_12] : memref<24x128xf32, #tpu.memory_space<vmem>>, vector<1x128xf32>
    %c5 = arith.constant 5 : index
    %c0_13 = arith.constant 0 : index
    %27 = vector.load %arg4[%c5, %c0_13] : memref<24x128xf32, #tpu.memory_space<vmem>>, vector<1x128xf32>
    %cst_14 = arith.constant dense<0.000000e+00> : vector<8xf32>
    %28 = vector.multi_reduction <add>, %3, %cst_14 [1] : vector<8x128xf32> to vector<8xf32>
    %29 = vector.shape_cast %28 : vector<8xf32> to vector<8x1xf32>
    %cst_15 = arith.constant 1.280000e+02 : f32
    %30 = vector.broadcast %cst_15 : f32 to vector<8x1xf32>
    %31 = arith.divf %29, %30 : vector<8x1xf32>
    %32 = vector.broadcast %31 : vector<8x1xf32> to vector<8x128xf32>
    %33 = arith.subf %3, %32 : vector<8x128xf32>
    %34 = arith.mulf %33, %33 : vector<8x128xf32>
    %cst_16 = arith.constant dense<0.000000e+00> : vector<8xf32>
    %35 = vector.multi_reduction <add>, %34, %cst_16 [1] : vector<8x128xf32> to vector<8xf32>
    %36 = vector.shape_cast %35 : vector<8xf32> to vector<8x1xf32>
    %cst_17 = arith.constant 1.280000e+02 : f32
    %37 = vector.broadcast %cst_17 : f32 to vector<8x1xf32>
    %38 = arith.divf %36, %37 : vector<8x1xf32>
    %cst_18 = arith.constant 9.99999974E-6 : f32
    %39 = vector.broadcast %cst_18 : f32 to vector<8x1xf32>
    %40 = arith.addf %38, %39 : vector<8x1xf32>
    %41 = math.rsqrt %40 : vector<8x1xf32>
    %42 = vector.broadcast %41 : vector<8x1xf32> to vector<8x128xf32>
    %43 = arith.mulf %33, %42 : vector<8x128xf32>
    %44 = vector.broadcast %26 : vector<1x128xf32> to vector<8x128xf32>
    %45 = arith.mulf %43, %44 : vector<8x128xf32>
    %46 = vector.broadcast %27 : vector<1x128xf32> to vector<8x128xf32>
    %47 = arith.addf %45, %46 : vector<8x128xf32>
    %c0_19 = arith.constant 0 : index
    %c0_20 = arith.constant 0 : index
    %c0_21 = arith.constant 0 : index
    %48 = vector.load %arg3[%c0_19, %c0_20, %c0_21] : memref<10x128x128xbf16, #tpu.memory_space<vmem>>, vector<1x128x128xbf16>
    %49 = vector.shape_cast %48 : vector<1x128x128xbf16> to vector<128x128xbf16>
    %c12 = arith.constant 12 : index
    %c0_22 = arith.constant 0 : index
    %50 = vector.load %arg4[%c12, %c0_22] : memref<24x128xf32, #tpu.memory_space<vmem>>, vector<1x128xf32>
    %c1_23 = arith.constant 1 : index
    %c0_24 = arith.constant 0 : index
    %c0_25 = arith.constant 0 : index
    %51 = vector.load %arg3[%c1_23, %c0_24, %c0_25] : memref<10x128x128xbf16, #tpu.memory_space<vmem>>, vector<1x128x128xbf16>
    %52 = vector.shape_cast %51 : vector<1x128x128xbf16> to vector<128x128xbf16>
    %c13 = arith.constant 13 : index
    %c0_26 = arith.constant 0 : index
    %53 = vector.load %arg4[%c13, %c0_26] : memref<24x128xf32, #tpu.memory_space<vmem>>, vector<1x128xf32>
    %c2 = arith.constant 2 : index
    %c0_27 = arith.constant 0 : index
    %c0_28 = arith.constant 0 : index
    %54 = vector.load %arg3[%c2, %c0_27, %c0_28] : memref<10x128x128xbf16, #tpu.memory_space<vmem>>, vector<1x128x128xbf16>
    %55 = vector.shape_cast %54 : vector<1x128x128xbf16> to vector<128x128xbf16>
    %c14 = arith.constant 14 : index
    %c0_29 = arith.constant 0 : index
    %56 = vector.load %arg4[%c14, %c0_29] : memref<24x128xf32, #tpu.memory_space<vmem>>, vector<1x128xf32>
    %57 = arith.truncf %47 : vector<8x128xf32> to vector<8x128xbf16>
    %cst_30 = arith.constant dense<0.000000e+00> : vector<8x128xf32>
    %58 = tpu.matmul %57, %49, %cst_30 {dimension_numbers = #tpu.dot_dimension_numbers<[1], [0], [0], [1], [0, 0, 1, 1], [], []>} : vector<8x128xbf16>, vector<128x128xbf16>, vector<8x128xf32> -> vector<8x128xf32>
    %59 = vector.broadcast %50 : vector<1x128xf32> to vector<8x128xf32>
    %60 = arith.addf %58, %59 : vector<8x128xf32>
    %61 = arith.truncf %47 : vector<8x128xf32> to vector<8x128xbf16>
    %cst_31 = arith.constant dense<0.000000e+00> : vector<8x128xf32>
    %62 = tpu.matmul %61, %52, %cst_31 {dimension_numbers = #tpu.dot_dimension_numbers<[1], [0], [0], [1], [0, 0, 1, 1], [], []>} : vector<8x128xbf16>, vector<128x128xbf16>, vector<8x128xf32> -> vector<8x128xf32>
    %63 = vector.broadcast %53 : vector<1x128xf32> to vector<8x128xf32>
    %64 = arith.addf %62, %63 : vector<8x128xf32>
    %65 = arith.truncf %47 : vector<8x128xf32> to vector<8x128xbf16>
    %cst_32 = arith.constant dense<0.000000e+00> : vector<8x128xf32>
    %66 = tpu.matmul %65, %55, %cst_32 {dimension_numbers = #tpu.dot_dimension_numbers<[1], [0], [0], [1], [0, 0, 1, 1], [], []>} : vector<8x128xbf16>, vector<128x128xbf16>, vector<8x128xf32> -> vector<8x128xf32>
    %67 = vector.broadcast %56 : vector<1x128xf32> to vector<8x128xf32>
    %68 = arith.addf %66, %67 : vector<8x128xf32>
    %cst_33 = arith.constant 0.176776692 : f32
    %69 = vector.broadcast %cst_33 : f32 to vector<8x128xf32>
    %70 = arith.mulf %60, %69 : vector<8x128xf32>
    %71 = vector.extract_strided_slice %70 {offsets = [0, 0], sizes = [8, 32], strides = [1, 1]} : vector<8x128xf32> to vector<8x32xf32>
    %72 = arith.truncf %71 : vector<8x32xf32> to vector<8x32xbf16>
    %73 = vector.extract_strided_slice %64 {offsets = [0, 0], sizes = [8, 32], strides = [1, 1]} : vector<8x128xf32> to vector<8x32xf32>
    %74 = arith.truncf %73 : vector<8x32xf32> to vector<8x32xbf16>
    %75 = vector.extract_strided_slice %68 {offsets = [0, 0], sizes = [8, 32], strides = [1, 1]} : vector<8x128xf32> to vector<8x32xf32>
    %76 = arith.truncf %75 : vector<8x32xf32> to vector<8x32xbf16>
    %cst_34 = arith.constant dense<0.000000e+00> : vector<8x8xf32>
    %77 = tpu.matmul %72, %74, %cst_34 {dimension_numbers = #tpu.dot_dimension_numbers<[1], [1], [0], [0], [0, 0, 1, 0], [], []>} : vector<8x32xbf16>, vector<8x32xbf16>, vector<8x8xf32> -> vector<8x8xf32>
    %cst_35 = arith.constant dense<0xFF800000> : vector<8xf32>
    %78 = vector.multi_reduction <maximumf>, %77, %cst_35 [1] : vector<8x8xf32> to vector<8xf32>
    %79 = vector.shape_cast %78 : vector<8xf32> to vector<8x1xf32>
    %80 = vector.broadcast %79 : vector<8x1xf32> to vector<8x8xf32>
    %81 = arith.subf %77, %80 : vector<8x8xf32>
    %82 = math.exp %81 : vector<8x8xf32>
    %cst_36 = arith.constant dense<0.000000e+00> : vector<8xf32>
    %83 = vector.multi_reduction <add>, %82, %cst_36 [1] : vector<8x8xf32> to vector<8xf32>
    %84 = vector.shape_cast %83 : vector<8xf32> to vector<8x1xf32>
    %85 = tpu.reciprocal %84 {approx = true} : vector<8x1xf32> -> vector<8x1xf32>
    %86 = vector.broadcast %85 : vector<8x1xf32> to vector<8x8xf32>
    %87 = arith.mulf %82, %86 : vector<8x8xf32>
    %88 = arith.truncf %87 : vector<8x8xf32> to vector<8x8xbf16>
    %cst_37 = arith.constant dense<0.000000e+00> : vector<8x32xf32>
    %89 = tpu.matmul %88, %76, %cst_37 {dimension_numbers = #tpu.dot_dimension_numbers<[1], [0], [0], [1], [0, 0, 1, 1], [], []>} : vector<8x8xbf16>, vector<8x32xbf16>, vector<8x32xf32> -> vector<8x32xf32>
    %90 = vector.extract_strided_slice %70 {offsets = [0, 32], sizes = [8, 32], strides = [1, 1]} : vector<8x128xf32> to vector<8x32xf32>
    %91 = arith.truncf %90 : vector<8x32xf32> to vector<8x32xbf16>
    %92 = vector.extract_strided_slice %64 {offsets = [0, 32], sizes = [8, 32], strides = [1, 1]} : vector<8x128xf32> to vector<8x32xf32>
    %93 = arith.truncf %92 : vector<8x32xf32> to vector<8x32xbf16>
    %94 = vector.extract_strided_slice %68 {offsets = [0, 32], sizes = [8, 32], strides = [1, 1]} : vector<8x128xf32> to vector<8x32xf32>
    %95 = arith.truncf %94 : vector<8x32xf32> to vector<8x32xbf16>
    %cst_38 = arith.constant dense<0.000000e+00> : vector<8x8xf32>
    %96 = tpu.matmul %91, %93, %cst_38 {dimension_numbers = #tpu.dot_dimension_numbers<[1], [1], [0], [0], [0, 0, 1, 0], [], []>} : vector<8x32xbf16>, vector<8x32xbf16>, vector<8x8xf32> -> vector<8x8xf32>
    %cst_39 = arith.constant dense<0xFF800000> : vector<8xf32>
    %97 = vector.multi_reduction <maximumf>, %96, %cst_39 [1] : vector<8x8xf32> to vector<8xf32>
    %98 = vector.shape_cast %97 : vector<8xf32> to vector<8x1xf32>
    %99 = vector.broadcast %98 : vector<8x1xf32> to vector<8x8xf32>
    %100 = arith.subf %96, %99 : vector<8x8xf32>
    %101 = math.exp %100 : vector<8x8xf32>
    %cst_40 = arith.constant dense<0.000000e+00> : vector<8xf32>
    %102 = vector.multi_reduction <add>, %101, %cst_40 [1] : vector<8x8xf32> to vector<8xf32>
    %103 = vector.shape_cast %102 : vector<8xf32> to vector<8x1xf32>
    %104 = tpu.reciprocal %103 {approx = true} : vector<8x1xf32> -> vector<8x1xf32>
    %105 = vector.broadcast %104 : vector<8x1xf32> to vector<8x8xf32>
    %106 = arith.mulf %101, %105 : vector<8x8xf32>
    %107 = arith.truncf %106 : vector<8x8xf32> to vector<8x8xbf16>
    %cst_41 = arith.constant dense<0.000000e+00> : vector<8x32xf32>
    %108 = tpu.matmul %107, %95, %cst_41 {dimension_numbers = #tpu.dot_dimension_numbers<[1], [0], [0], [1], [0, 0, 1, 1], [], []>} : vector<8x8xbf16>, vector<8x32xbf16>, vector<8x32xf32> -> vector<8x32xf32>
    %109 = vector.extract_strided_slice %70 {offsets = [0, 64], sizes = [8, 32], strides = [1, 1]} : vector<8x128xf32> to vector<8x32xf32>
    %110 = arith.truncf %109 : vector<8x32xf32> to vector<8x32xbf16>
    %111 = vector.extract_strided_slice %64 {offsets = [0, 64], sizes = [8, 32], strides = [1, 1]} : vector<8x128xf32> to vector<8x32xf32>
    %112 = arith.truncf %111 : vector<8x32xf32> to vector<8x32xbf16>
    %113 = vector.extract_strided_slice %68 {offsets = [0, 64], sizes = [8, 32], strides = [1, 1]} : vector<8x128xf32> to vector<8x32xf32>
    %114 = arith.truncf %113 : vector<8x32xf32> to vector<8x32xbf16>
    %cst_42 = arith.constant dense<0.000000e+00> : vector<8x8xf32>
    %115 = tpu.matmul %110, %112, %cst_42 {dimension_numbers = #tpu.dot_dimension_numbers<[1], [1], [0], [0], [0, 0, 1, 0], [], []>} : vector<8x32xbf16>, vector<8x32xbf16>, vector<8x8xf32> -> vector<8x8xf32>
    %cst_43 = arith.constant dense<0xFF800000> : vector<8xf32>
    %116 = vector.multi_reduction <maximumf>, %115, %cst_43 [1] : vector<8x8xf32> to vector<8xf32>
    %117 = vector.shape_cast %116 : vector<8xf32> to vector<8x1xf32>
    %118 = vector.broadcast %117 : vector<8x1xf32> to vector<8x8xf32>
    %119 = arith.subf %115, %118 : vector<8x8xf32>
    %120 = math.exp %119 : vector<8x8xf32>
    %cst_44 = arith.constant dense<0.000000e+00> : vector<8xf32>
    %121 = vector.multi_reduction <add>, %120, %cst_44 [1] : vector<8x8xf32> to vector<8xf32>
    %122 = vector.shape_cast %121 : vector<8xf32> to vector<8x1xf32>
    %123 = tpu.reciprocal %122 {approx = true} : vector<8x1xf32> -> vector<8x1xf32>
    %124 = vector.broadcast %123 : vector<8x1xf32> to vector<8x8xf32>
    %125 = arith.mulf %120, %124 : vector<8x8xf32>
    %126 = arith.truncf %125 : vector<8x8xf32> to vector<8x8xbf16>
    %cst_45 = arith.constant dense<0.000000e+00> : vector<8x32xf32>
    %127 = tpu.matmul %126, %114, %cst_45 {dimension_numbers = #tpu.dot_dimension_numbers<[1], [0], [0], [1], [0, 0, 1, 1], [], []>} : vector<8x8xbf16>, vector<8x32xbf16>, vector<8x32xf32> -> vector<8x32xf32>
    %128 = vector.extract_strided_slice %70 {offsets = [0, 96], sizes = [8, 32], strides = [1, 1]} : vector<8x128xf32> to vector<8x32xf32>
    %129 = arith.truncf %128 : vector<8x32xf32> to vector<8x32xbf16>
    %130 = vector.extract_strided_slice %64 {offsets = [0, 96], sizes = [8, 32], strides = [1, 1]} : vector<8x128xf32> to vector<8x32xf32>
    %131 = arith.truncf %130 : vector<8x32xf32> to vector<8x32xbf16>
    %132 = vector.extract_strided_slice %68 {offsets = [0, 96], sizes = [8, 32], strides = [1, 1]} : vector<8x128xf32> to vector<8x32xf32>
    %133 = arith.truncf %132 : vector<8x32xf32> to vector<8x32xbf16>
    %cst_46 = arith.constant dense<0.000000e+00> : vector<8x8xf32>
    %134 = tpu.matmul %129, %131, %cst_46 {dimension_numbers = #tpu.dot_dimension_numbers<[1], [1], [0], [0], [0, 0, 1, 0], [], []>} : vector<8x32xbf16>, vector<8x32xbf16>, vector<8x8xf32> -> vector<8x8xf32>
    %cst_47 = arith.constant dense<0xFF800000> : vector<8xf32>
    %135 = vector.multi_reduction <maximumf>, %134, %cst_47 [1] : vector<8x8xf32> to vector<8xf32>
    %136 = vector.shape_cast %135 : vector<8xf32> to vector<8x1xf32>
    %137 = vector.broadcast %136 : vector<8x1xf32> to vector<8x8xf32>
    %138 = arith.subf %134, %137 : vector<8x8xf32>
    %139 = math.exp %138 : vector<8x8xf32>
    %cst_48 = arith.constant dense<0.000000e+00> : vector<8xf32>
    %140 = vector.multi_reduction <add>, %139, %cst_48 [1] : vector<8x8xf32> to vector<8xf32>
    %141 = vector.shape_cast %140 : vector<8xf32> to vector<8x1xf32>
    %142 = tpu.reciprocal %141 {approx = true} : vector<8x1xf32> -> vector<8x1xf32>
    %143 = vector.broadcast %142 : vector<8x1xf32> to vector<8x8xf32>
    %144 = arith.mulf %139, %143 : vector<8x8xf32>
    %145 = arith.truncf %144 : vector<8x8xf32> to vector<8x8xbf16>
    %cst_49 = arith.constant dense<0.000000e+00> : vector<8x32xf32>
    %146 = tpu.matmul %145, %133, %cst_49 {dimension_numbers = #tpu.dot_dimension_numbers<[1], [0], [0], [1], [0, 0, 1, 1], [], []>} : vector<8x8xbf16>, vector<8x32xbf16>, vector<8x32xf32> -> vector<8x32xf32>
    %147 = tpu.concatenate %89, %108, %127, %146 in 1 : vector<8x32xf32>, vector<8x32xf32>, vector<8x32xf32>, vector<8x32xf32> -> vector<8x128xf32>
    %148 = arith.addf %3, %147 : vector<8x128xf32>
    %c6 = arith.constant 6 : index
    %c0_50 = arith.constant 0 : index
    %149 = vector.load %arg4[%c6, %c0_50] : memref<24x128xf32, #tpu.memory_space<vmem>>, vector<1x128xf32>
    %c7 = arith.constant 7 : index
    %c0_51 = arith.constant 0 : index
    %150 = vector.load %arg4[%c7, %c0_51] : memref<24x128xf32, #tpu.memory_space<vmem>>, vector<1x128xf32>
    %cst_52 = arith.constant dense<0.000000e+00> : vector<8xf32>
    %151 = vector.multi_reduction <add>, %148, %cst_52 [1] : vector<8x128xf32> to vector<8xf32>
    %152 = vector.shape_cast %151 : vector<8xf32> to vector<8x1xf32>
    %cst_53 = arith.constant 1.280000e+02 : f32
    %153 = vector.broadcast %cst_53 : f32 to vector<8x1xf32>
    %154 = arith.divf %152, %153 : vector<8x1xf32>
    %155 = vector.broadcast %154 : vector<8x1xf32> to vector<8x128xf32>
    %156 = arith.subf %148, %155 : vector<8x128xf32>
    %157 = arith.mulf %156, %156 : vector<8x128xf32>
    %cst_54 = arith.constant dense<0.000000e+00> : vector<8xf32>
    %158 = vector.multi_reduction <add>, %157, %cst_54 [1] : vector<8x128xf32> to vector<8xf32>
    %159 = vector.shape_cast %158 : vector<8xf32> to vector<8x1xf32>
    %cst_55 = arith.constant 1.280000e+02 : f32
    %160 = vector.broadcast %cst_55 : f32 to vector<8x1xf32>
    %161 = arith.divf %159, %160 : vector<8x1xf32>
    %cst_56 = arith.constant 9.99999974E-6 : f32
    %162 = vector.broadcast %cst_56 : f32 to vector<8x1xf32>
    %163 = arith.addf %161, %162 : vector<8x1xf32>
    %164 = math.rsqrt %163 : vector<8x1xf32>
    %165 = vector.broadcast %164 : vector<8x1xf32> to vector<8x128xf32>
    %166 = arith.mulf %156, %165 : vector<8x128xf32>
    %167 = vector.broadcast %149 : vector<1x128xf32> to vector<8x128xf32>
    %168 = arith.mulf %166, %167 : vector<8x128xf32>
    %169 = vector.broadcast %150 : vector<1x128xf32> to vector<8x128xf32>
    %170 = arith.addf %168, %169 : vector<8x128xf32>
    %c3 = arith.constant 3 : index
    %c0_57 = arith.constant 0 : index
    %c0_58 = arith.constant 0 : index
    %171 = vector.load %arg3[%c3, %c0_57, %c0_58] : memref<10x128x128xbf16, #tpu.memory_space<vmem>>, vector<1x128x128xbf16>
    %172 = vector.shape_cast %171 : vector<1x128x128xbf16> to vector<128x128xbf16>
    %c15 = arith.constant 15 : index
    %c0_59 = arith.constant 0 : index
    %173 = vector.load %arg4[%c15, %c0_59] : memref<24x128xf32, #tpu.memory_space<vmem>>, vector<1x128xf32>
    %c4_60 = arith.constant 4 : index
    %c0_61 = arith.constant 0 : index
    %c0_62 = arith.constant 0 : index
    %174 = vector.load %arg3[%c4_60, %c0_61, %c0_62] : memref<10x128x128xbf16, #tpu.memory_space<vmem>>, vector<1x128x128xbf16>
    %175 = vector.shape_cast %174 : vector<1x128x128xbf16> to vector<128x128xbf16>
    %c16 = arith.constant 16 : index
    %c0_63 = arith.constant 0 : index
    %176 = vector.load %arg4[%c16, %c0_63] : memref<24x128xf32, #tpu.memory_space<vmem>>, vector<1x128xf32>
    %c5_64 = arith.constant 5 : index
    %c0_65 = arith.constant 0 : index
    %c0_66 = arith.constant 0 : index
    %177 = vector.load %arg3[%c5_64, %c0_65, %c0_66] : memref<10x128x128xbf16, #tpu.memory_space<vmem>>, vector<1x128x128xbf16>
    %178 = vector.shape_cast %177 : vector<1x128x128xbf16> to vector<128x128xbf16>
    %c17 = arith.constant 17 : index
    %c0_67 = arith.constant 0 : index
    %179 = vector.load %arg4[%c17, %c0_67] : memref<24x128xf32, #tpu.memory_space<vmem>>, vector<1x128xf32>
    %180 = arith.truncf %170 : vector<8x128xf32> to vector<8x128xbf16>
    %cst_68 = arith.constant dense<0.000000e+00> : vector<8x128xf32>
    %181 = tpu.matmul %180, %172, %cst_68 {dimension_numbers = #tpu.dot_dimension_numbers<[1], [0], [0], [1], [0, 0, 1, 1], [], []>} : vector<8x128xbf16>, vector<128x128xbf16>, vector<8x128xf32> -> vector<8x128xf32>
    %182 = vector.broadcast %173 : vector<1x128xf32> to vector<8x128xf32>
    %183 = arith.addf %181, %182 : vector<8x128xf32>
    %184 = arith.truncf %25 : vector<64x128xf32> to vector<64x128xbf16>
    %cst_69 = arith.constant dense<0.000000e+00> : vector<64x128xf32>
    %185 = tpu.matmul %184, %175, %cst_69 {dimension_numbers = #tpu.dot_dimension_numbers<[1], [0], [0], [1], [0, 0, 1, 1], [], []>} : vector<64x128xbf16>, vector<128x128xbf16>, vector<64x128xf32> -> vector<64x128xf32>
    %186 = vector.broadcast %176 : vector<1x128xf32> to vector<64x128xf32>
    %187 = arith.addf %185, %186 : vector<64x128xf32>
    %188 = arith.truncf %25 : vector<64x128xf32> to vector<64x128xbf16>
    %cst_70 = arith.constant dense<0.000000e+00> : vector<64x128xf32>
    %189 = tpu.matmul %188, %178, %cst_70 {dimension_numbers = #tpu.dot_dimension_numbers<[1], [0], [0], [1], [0, 0, 1, 1], [], []>} : vector<64x128xbf16>, vector<128x128xbf16>, vector<64x128xf32> -> vector<64x128xf32>
    %190 = vector.broadcast %179 : vector<1x128xf32> to vector<64x128xf32>
    %191 = arith.addf %189, %190 : vector<64x128xf32>
    %cst_71 = arith.constant 0.176776692 : f32
    %192 = vector.broadcast %cst_71 : f32 to vector<8x128xf32>
    %193 = arith.mulf %183, %192 : vector<8x128xf32>
    %194 = vector.extract_strided_slice %193 {offsets = [0, 0], sizes = [8, 32], strides = [1, 1]} : vector<8x128xf32> to vector<8x32xf32>
    %195 = arith.truncf %194 : vector<8x32xf32> to vector<8x32xbf16>
    %196 = vector.extract_strided_slice %187 {offsets = [0, 0], sizes = [64, 32], strides = [1, 1]} : vector<64x128xf32> to vector<64x32xf32>
    %197 = arith.truncf %196 : vector<64x32xf32> to vector<64x32xbf16>
    %198 = vector.extract_strided_slice %191 {offsets = [0, 0], sizes = [64, 32], strides = [1, 1]} : vector<64x128xf32> to vector<64x32xf32>
    %199 = arith.truncf %198 : vector<64x32xf32> to vector<64x32xbf16>
    %cst_72 = arith.constant dense<0.000000e+00> : vector<8x64xf32>
    %200 = tpu.matmul %195, %197, %cst_72 {dimension_numbers = #tpu.dot_dimension_numbers<[1], [1], [0], [0], [0, 0, 1, 0], [], []>} : vector<8x32xbf16>, vector<64x32xbf16>, vector<8x64xf32> -> vector<8x64xf32>
    %cst_73 = arith.constant dense<0xFF800000> : vector<8xf32>
    %201 = vector.multi_reduction <maximumf>, %200, %cst_73 [1] : vector<8x64xf32> to vector<8xf32>
    %202 = vector.shape_cast %201 : vector<8xf32> to vector<8x1xf32>
    %203 = vector.broadcast %202 : vector<8x1xf32> to vector<8x64xf32>
    %204 = arith.subf %200, %203 : vector<8x64xf32>
    %205 = math.exp %204 : vector<8x64xf32>
    %cst_74 = arith.constant dense<0.000000e+00> : vector<8xf32>
    %206 = vector.multi_reduction <add>, %205, %cst_74 [1] : vector<8x64xf32> to vector<8xf32>
    %207 = vector.shape_cast %206 : vector<8xf32> to vector<8x1xf32>
    %208 = tpu.reciprocal %207 {approx = true} : vector<8x1xf32> -> vector<8x1xf32>
    %209 = vector.broadcast %208 : vector<8x1xf32> to vector<8x64xf32>
    %210 = arith.mulf %205, %209 : vector<8x64xf32>
    %211 = arith.truncf %210 : vector<8x64xf32> to vector<8x64xbf16>
    %cst_75 = arith.constant dense<0.000000e+00> : vector<8x32xf32>
    %212 = tpu.matmul %211, %199, %cst_75 {dimension_numbers = #tpu.dot_dimension_numbers<[1], [0], [0], [1], [0, 0, 1, 1], [], []>} : vector<8x64xbf16>, vector<64x32xbf16>, vector<8x32xf32> -> vector<8x32xf32>
    %213 = vector.extract_strided_slice %193 {offsets = [0, 32], sizes = [8, 32], strides = [1, 1]} : vector<8x128xf32> to vector<8x32xf32>
    %214 = arith.truncf %213 : vector<8x32xf32> to vector<8x32xbf16>
    %215 = vector.extract_strided_slice %187 {offsets = [0, 32], sizes = [64, 32], strides = [1, 1]} : vector<64x128xf32> to vector<64x32xf32>
    %216 = arith.truncf %215 : vector<64x32xf32> to vector<64x32xbf16>
    %217 = vector.extract_strided_slice %191 {offsets = [0, 32], sizes = [64, 32], strides = [1, 1]} : vector<64x128xf32> to vector<64x32xf32>
    %218 = arith.truncf %217 : vector<64x32xf32> to vector<64x32xbf16>
    %cst_76 = arith.constant dense<0.000000e+00> : vector<8x64xf32>
    %219 = tpu.matmul %214, %216, %cst_76 {dimension_numbers = #tpu.dot_dimension_numbers<[1], [1], [0], [0], [0, 0, 1, 0], [], []>} : vector<8x32xbf16>, vector<64x32xbf16>, vector<8x64xf32> -> vector<8x64xf32>
    %cst_77 = arith.constant dense<0xFF800000> : vector<8xf32>
    %220 = vector.multi_reduction <maximumf>, %219, %cst_77 [1] : vector<8x64xf32> to vector<8xf32>
    %221 = vector.shape_cast %220 : vector<8xf32> to vector<8x1xf32>
    %222 = vector.broadcast %221 : vector<8x1xf32> to vector<8x64xf32>
    %223 = arith.subf %219, %222 : vector<8x64xf32>
    %224 = math.exp %223 : vector<8x64xf32>
    %cst_78 = arith.constant dense<0.000000e+00> : vector<8xf32>
    %225 = vector.multi_reduction <add>, %224, %cst_78 [1] : vector<8x64xf32> to vector<8xf32>
    %226 = vector.shape_cast %225 : vector<8xf32> to vector<8x1xf32>
    %227 = tpu.reciprocal %226 {approx = true} : vector<8x1xf32> -> vector<8x1xf32>
    %228 = vector.broadcast %227 : vector<8x1xf32> to vector<8x64xf32>
    %229 = arith.mulf %224, %228 : vector<8x64xf32>
    %230 = arith.truncf %229 : vector<8x64xf32> to vector<8x64xbf16>
    %cst_79 = arith.constant dense<0.000000e+00> : vector<8x32xf32>
    %231 = tpu.matmul %230, %218, %cst_79 {dimension_numbers = #tpu.dot_dimension_numbers<[1], [0], [0], [1], [0, 0, 1, 1], [], []>} : vector<8x64xbf16>, vector<64x32xbf16>, vector<8x32xf32> -> vector<8x32xf32>
    %232 = vector.extract_strided_slice %193 {offsets = [0, 64], sizes = [8, 32], strides = [1, 1]} : vector<8x128xf32> to vector<8x32xf32>
    %233 = arith.truncf %232 : vector<8x32xf32> to vector<8x32xbf16>
    %234 = vector.extract_strided_slice %187 {offsets = [0, 64], sizes = [64, 32], strides = [1, 1]} : vector<64x128xf32> to vector<64x32xf32>
    %235 = arith.truncf %234 : vector<64x32xf32> to vector<64x32xbf16>
    %236 = vector.extract_strided_slice %191 {offsets = [0, 64], sizes = [64, 32], strides = [1, 1]} : vector<64x128xf32> to vector<64x32xf32>
    %237 = arith.truncf %236 : vector<64x32xf32> to vector<64x32xbf16>
    %cst_80 = arith.constant dense<0.000000e+00> : vector<8x64xf32>
    %238 = tpu.matmul %233, %235, %cst_80 {dimension_numbers = #tpu.dot_dimension_numbers<[1], [1], [0], [0], [0, 0, 1, 0], [], []>} : vector<8x32xbf16>, vector<64x32xbf16>, vector<8x64xf32> -> vector<8x64xf32>
    %cst_81 = arith.constant dense<0xFF800000> : vector<8xf32>
    %239 = vector.multi_reduction <maximumf>, %238, %cst_81 [1] : vector<8x64xf32> to vector<8xf32>
    %240 = vector.shape_cast %239 : vector<8xf32> to vector<8x1xf32>
    %241 = vector.broadcast %240 : vector<8x1xf32> to vector<8x64xf32>
    %242 = arith.subf %238, %241 : vector<8x64xf32>
    %243 = math.exp %242 : vector<8x64xf32>
    %cst_82 = arith.constant dense<0.000000e+00> : vector<8xf32>
    %244 = vector.multi_reduction <add>, %243, %cst_82 [1] : vector<8x64xf32> to vector<8xf32>
    %245 = vector.shape_cast %244 : vector<8xf32> to vector<8x1xf32>
    %246 = tpu.reciprocal %245 {approx = true} : vector<8x1xf32> -> vector<8x1xf32>
    %247 = vector.broadcast %246 : vector<8x1xf32> to vector<8x64xf32>
    %248 = arith.mulf %243, %247 : vector<8x64xf32>
    %249 = arith.truncf %248 : vector<8x64xf32> to vector<8x64xbf16>
    %cst_83 = arith.constant dense<0.000000e+00> : vector<8x32xf32>
    %250 = tpu.matmul %249, %237, %cst_83 {dimension_numbers = #tpu.dot_dimension_numbers<[1], [0], [0], [1], [0, 0, 1, 1], [], []>} : vector<8x64xbf16>, vector<64x32xbf16>, vector<8x32xf32> -> vector<8x32xf32>
    %251 = vector.extract_strided_slice %193 {offsets = [0, 96], sizes = [8, 32], strides = [1, 1]} : vector<8x128xf32> to vector<8x32xf32>
    %252 = arith.truncf %251 : vector<8x32xf32> to vector<8x32xbf16>
    %253 = vector.extract_strided_slice %187 {offsets = [0, 96], sizes = [64, 32], strides = [1, 1]} : vector<64x128xf32> to vector<64x32xf32>
    %254 = arith.truncf %253 : vector<64x32xf32> to vector<64x32xbf16>
    %255 = vector.extract_strided_slice %191 {offsets = [0, 96], sizes = [64, 32], strides = [1, 1]} : vector<64x128xf32> to vector<64x32xf32>
    %256 = arith.truncf %255 : vector<64x32xf32> to vector<64x32xbf16>
    %cst_84 = arith.constant dense<0.000000e+00> : vector<8x64xf32>
    %257 = tpu.matmul %252, %254, %cst_84 {dimension_numbers = #tpu.dot_dimension_numbers<[1], [1], [0], [0], [0, 0, 1, 0], [], []>} : vector<8x32xbf16>, vector<64x32xbf16>, vector<8x64xf32> -> vector<8x64xf32>
    %cst_85 = arith.constant dense<0xFF800000> : vector<8xf32>
    %258 = vector.multi_reduction <maximumf>, %257, %cst_85 [1] : vector<8x64xf32> to vector<8xf32>
    %259 = vector.shape_cast %258 : vector<8xf32> to vector<8x1xf32>
    %260 = vector.broadcast %259 : vector<8x1xf32> to vector<8x64xf32>
    %261 = arith.subf %257, %260 : vector<8x64xf32>
    %262 = math.exp %261 : vector<8x64xf32>
    %cst_86 = arith.constant dense<0.000000e+00> : vector<8xf32>
    %263 = vector.multi_reduction <add>, %262, %cst_86 [1] : vector<8x64xf32> to vector<8xf32>
    %264 = vector.shape_cast %263 : vector<8xf32> to vector<8x1xf32>
    %265 = tpu.reciprocal %264 {approx = true} : vector<8x1xf32> -> vector<8x1xf32>
    %266 = vector.broadcast %265 : vector<8x1xf32> to vector<8x64xf32>
    %267 = arith.mulf %262, %266 : vector<8x64xf32>
    %268 = arith.truncf %267 : vector<8x64xf32> to vector<8x64xbf16>
    %cst_87 = arith.constant dense<0.000000e+00> : vector<8x32xf32>
    %269 = tpu.matmul %268, %256, %cst_87 {dimension_numbers = #tpu.dot_dimension_numbers<[1], [0], [0], [1], [0, 0, 1, 1], [], []>} : vector<8x64xbf16>, vector<64x32xbf16>, vector<8x32xf32> -> vector<8x32xf32>
    %270 = tpu.concatenate %212, %231, %250, %269 in 1 : vector<8x32xf32>, vector<8x32xf32>, vector<8x32xf32>, vector<8x32xf32> -> vector<8x128xf32>
    %271 = arith.addf %148, %270 : vector<8x128xf32>
    %c8 = arith.constant 8 : index
    %c0_88 = arith.constant 0 : index
    %272 = vector.load %arg4[%c8, %c0_88] : memref<24x128xf32, #tpu.memory_space<vmem>>, vector<1x128xf32>
    %c9 = arith.constant 9 : index
    %c0_89 = arith.constant 0 : index
    %273 = vector.load %arg4[%c9, %c0_89] : memref<24x128xf32, #tpu.memory_space<vmem>>, vector<1x128xf32>
    %cst_90 = arith.constant dense<0.000000e+00> : vector<8xf32>
    %274 = vector.multi_reduction <add>, %271, %cst_90 [1] : vector<8x128xf32> to vector<8xf32>
    %275 = vector.shape_cast %274 : vector<8xf32> to vector<8x1xf32>
    %cst_91 = arith.constant 1.280000e+02 : f32
    %276 = vector.broadcast %cst_91 : f32 to vector<8x1xf32>
    %277 = arith.divf %275, %276 : vector<8x1xf32>
    %278 = vector.broadcast %277 : vector<8x1xf32> to vector<8x128xf32>
    %279 = arith.subf %271, %278 : vector<8x128xf32>
    %280 = arith.mulf %279, %279 : vector<8x128xf32>
    %cst_92 = arith.constant dense<0.000000e+00> : vector<8xf32>
    %281 = vector.multi_reduction <add>, %280, %cst_92 [1] : vector<8x128xf32> to vector<8xf32>
    %282 = vector.shape_cast %281 : vector<8xf32> to vector<8x1xf32>
    %cst_93 = arith.constant 1.280000e+02 : f32
    %283 = vector.broadcast %cst_93 : f32 to vector<8x1xf32>
    %284 = arith.divf %282, %283 : vector<8x1xf32>
    %cst_94 = arith.constant 9.99999974E-6 : f32
    %285 = vector.broadcast %cst_94 : f32 to vector<8x1xf32>
    %286 = arith.addf %284, %285 : vector<8x1xf32>
    %287 = math.rsqrt %286 : vector<8x1xf32>
    %288 = vector.broadcast %287 : vector<8x1xf32> to vector<8x128xf32>
    %289 = arith.mulf %279, %288 : vector<8x128xf32>
    %290 = vector.broadcast %272 : vector<1x128xf32> to vector<8x128xf32>
    %291 = arith.mulf %289, %290 : vector<8x128xf32>
    %292 = vector.broadcast %273 : vector<1x128xf32> to vector<8x128xf32>
    %293 = arith.addf %291, %292 : vector<8x128xf32>
    %294 = arith.truncf %293 : vector<8x128xf32> to vector<8x128xbf16>
    %c0_95 = arith.constant 0 : index
    %c0_96 = arith.constant 0 : index
    %295 = vector.load %arg8[%c0_95, %c0_96] : memref<128x512xbf16, #tpu.memory_space<vmem>>, vector<128x512xbf16>
    %cst_97 = arith.constant dense<0.000000e+00> : vector<8x512xf32>
    %296 = tpu.matmul %294, %295, %cst_97 {dimension_numbers = #tpu.dot_dimension_numbers<[1], [0], [0], [1], [0, 0, 1, 1], [], []>} : vector<8x128xbf16>, vector<128x512xbf16>, vector<8x512xf32> -> vector<8x512xf32>
    %c0_98 = arith.constant 0 : index
    %c0_99 = arith.constant 0 : index
    %297 = vector.load %arg6[%c0_98, %c0_99] : memref<1x512xf32, #tpu.memory_space<vmem>>, vector<1x512xf32>
    %298 = vector.broadcast %297 : vector<1x512xf32> to vector<8x512xf32>
    %299 = arith.addf %296, %298 : vector<8x512xf32>
    %cst_100 = arith.constant 0.000000e+00 : f32
    %300 = vector.broadcast %cst_100 : f32 to vector<8x512xf32>
    %301 = arith.maximumf %299, %300 : vector<8x512xf32>
    %302 = arith.truncf %301 : vector<8x512xf32> to vector<8x512xbf16>
    %c0_101 = arith.constant 0 : index
    %c0_102 = arith.constant 0 : index
    %303 = vector.load %arg9[%c0_101, %c0_102] : memref<512x128xbf16, #tpu.memory_space<vmem>>, vector<512x128xbf16>
    %cst_103 = arith.constant dense<0.000000e+00> : vector<8x128xf32>
    %304 = tpu.matmul %302, %303, %cst_103 {dimension_numbers = #tpu.dot_dimension_numbers<[1], [0], [0], [1], [0, 0, 1, 1], [], []>} : vector<8x512xbf16>, vector<512x128xbf16>, vector<8x128xf32> -> vector<8x128xf32>
    %c22 = arith.constant 22 : index
    %c0_104 = arith.constant 0 : index
    %305 = vector.load %arg4[%c22, %c0_104] : memref<24x128xf32, #tpu.memory_space<vmem>>, vector<1x128xf32>
    %306 = vector.broadcast %305 : vector<1x128xf32> to vector<8x128xf32>
    %307 = arith.addf %304, %306 : vector<8x128xf32>
    %308 = arith.addf %271, %307 : vector<8x128xf32>
    %c0_105 = arith.constant 0 : index
    %c0_106 = arith.constant 0 : index
    %c0_107 = arith.constant 0 : index
    %309 = vector.load %arg13[%c0_105, %c0_106, %c0_107] : memref<1x8x128xf32, #tpu.memory_space<vmem>>, vector<1x8x128xf32>
    %310 = vector.shape_cast %309 : vector<1x8x128xf32> to vector<8x128xf32>
    %311 = vector.shape_cast %308 : vector<8x128xf32> to vector<1x8x128xf32>
    tpu.vector_store %arg13[%c0_105, %c0_106, %c0_107], %311 {strides = array<i32>} : memref<1x8x128xf32, #tpu.memory_space<vmem>>, vector<1x8x128xf32>,
    %c10 = arith.constant 10 : index
    %c0_108 = arith.constant 0 : index
    %312 = vector.load %arg4[%c10, %c0_108] : memref<24x128xf32, #tpu.memory_space<vmem>>, vector<1x128xf32>
    %c11 = arith.constant 11 : index
    %c0_109 = arith.constant 0 : index
    %313 = vector.load %arg4[%c11, %c0_109] : memref<24x128xf32, #tpu.memory_space<vmem>>, vector<1x128xf32>
    %cst_110 = arith.constant dense<0.000000e+00> : vector<8xf32>
    %314 = vector.multi_reduction <add>, %308, %cst_110 [1] : vector<8x128xf32> to vector<8xf32>
    %315 = vector.shape_cast %314 : vector<8xf32> to vector<8x1xf32>
    %cst_111 = arith.constant 1.280000e+02 : f32
    %316 = vector.broadcast %cst_111 : f32 to vector<8x1xf32>
    %317 = arith.divf %315, %316 : vector<8x1xf32>
    %318 = vector.broadcast %317 : vector<8x1xf32> to vector<8x128xf32>
    %319 = arith.subf %308, %318 : vector<8x128xf32>
    %320 = arith.mulf %319, %319 : vector<8x128xf32>
    %cst_112 = arith.constant dense<0.000000e+00> : vector<8xf32>
    %321 = vector.multi_reduction <add>, %320, %cst_112 [1] : vector<8x128xf32> to vector<8xf32>
    %322 = vector.shape_cast %321 : vector<8xf32> to vector<8x1xf32>
    %cst_113 = arith.constant 1.280000e+02 : f32
    %323 = vector.broadcast %cst_113 : f32 to vector<8x1xf32>
    %324 = arith.divf %322, %323 : vector<8x1xf32>
    %cst_114 = arith.constant 9.99999974E-6 : f32
    %325 = vector.broadcast %cst_114 : f32 to vector<8x1xf32>
    %326 = arith.addf %324, %325 : vector<8x1xf32>
    %327 = math.rsqrt %326 : vector<8x1xf32>
    %328 = vector.broadcast %327 : vector<8x1xf32> to vector<8x128xf32>
    %329 = arith.mulf %319, %328 : vector<8x128xf32>
    %330 = vector.broadcast %312 : vector<1x128xf32> to vector<8x128xf32>
    %331 = arith.mulf %329, %330 : vector<8x128xf32>
    %332 = vector.broadcast %313 : vector<1x128xf32> to vector<8x128xf32>
    %333 = arith.addf %331, %332 : vector<8x128xf32>
    %c6_115 = arith.constant 6 : index
    %c0_116 = arith.constant 0 : index
    %c0_117 = arith.constant 0 : index
    %334 = vector.load %arg3[%c6_115, %c0_116, %c0_117] : memref<10x128x128xbf16, #tpu.memory_space<vmem>>, vector<1x128x128xbf16>
    %335 = vector.shape_cast %334 : vector<1x128x128xbf16> to vector<128x128xbf16>
    %c18 = arith.constant 18 : index
    %c0_118 = arith.constant 0 : index
    %336 = vector.load %arg4[%c18, %c0_118] : memref<24x128xf32, #tpu.memory_space<vmem>>, vector<1x128xf32>
    %c7_119 = arith.constant 7 : index
    %c0_120 = arith.constant 0 : index
    %c0_121 = arith.constant 0 : index
    %337 = vector.load %arg3[%c7_119, %c0_120, %c0_121] : memref<10x128x128xbf16, #tpu.memory_space<vmem>>, vector<1x128x128xbf16>
    %338 = vector.shape_cast %337 : vector<1x128x128xbf16> to vector<128x128xbf16>
    %c19 = arith.constant 19 : index
    %c0_122 = arith.constant 0 : index
    %339 = vector.load %arg4[%c19, %c0_122] : memref<24x128xf32, #tpu.memory_space<vmem>>, vector<1x128xf32>
    %c8_123 = arith.constant 8 : index
    %c0_124 = arith.constant 0 : index
    %c0_125 = arith.constant 0 : index
    %340 = vector.load %arg3[%c8_123, %c0_124, %c0_125] : memref<10x128x128xbf16, #tpu.memory_space<vmem>>, vector<1x128x128xbf16>
    %341 = vector.shape_cast %340 : vector<1x128x128xbf16> to vector<128x128xbf16>
    %c20 = arith.constant 20 : index
    %c0_126 = arith.constant 0 : index
    %342 = vector.load %arg4[%c20, %c0_126] : memref<24x128xf32, #tpu.memory_space<vmem>>, vector<1x128xf32>
    %343 = arith.truncf %25 : vector<64x128xf32> to vector<64x128xbf16>
    %cst_127 = arith.constant dense<0.000000e+00> : vector<64x128xf32>
    %344 = tpu.matmul %343, %335, %cst_127 {dimension_numbers = #tpu.dot_dimension_numbers<[1], [0], [0], [1], [0, 0, 1, 1], [], []>} : vector<64x128xbf16>, vector<128x128xbf16>, vector<64x128xf32> -> vector<64x128xf32>
    %345 = vector.broadcast %336 : vector<1x128xf32> to vector<64x128xf32>
    %346 = arith.addf %344, %345 : vector<64x128xf32>
    %347 = arith.truncf %333 : vector<8x128xf32> to vector<8x128xbf16>
    %cst_128 = arith.constant dense<0.000000e+00> : vector<8x128xf32>
    %348 = tpu.matmul %347, %338, %cst_128 {dimension_numbers = #tpu.dot_dimension_numbers<[1], [0], [0], [1], [0, 0, 1, 1], [], []>} : vector<8x128xbf16>, vector<128x128xbf16>, vector<8x128xf32> -> vector<8x128xf32>
    %349 = vector.broadcast %339 : vector<1x128xf32> to vector<8x128xf32>
    %350 = arith.addf %348, %349 : vector<8x128xf32>
    %351 = arith.truncf %333 : vector<8x128xf32> to vector<8x128xbf16>
    %cst_129 = arith.constant dense<0.000000e+00> : vector<8x128xf32>
    %352 = tpu.matmul %351, %341, %cst_129 {dimension_numbers = #tpu.dot_dimension_numbers<[1], [0], [0], [1], [0, 0, 1, 1], [], []>} : vector<8x128xbf16>, vector<128x128xbf16>, vector<8x128xf32> -> vector<8x128xf32>
    %353 = vector.broadcast %342 : vector<1x128xf32> to vector<8x128xf32>
    %354 = arith.addf %352, %353 : vector<8x128xf32>
    %cst_130 = arith.constant 0.176776692 : f32
    %355 = vector.broadcast %cst_130 : f32 to vector<64x128xf32>
    %356 = arith.mulf %346, %355 : vector<64x128xf32>
    %357 = vector.extract_strided_slice %356 {offsets = [0, 0], sizes = [64, 32], strides = [1, 1]} : vector<64x128xf32> to vector<64x32xf32>
    %358 = arith.truncf %357 : vector<64x32xf32> to vector<64x32xbf16>
    %359 = vector.extract_strided_slice %350 {offsets = [0, 0], sizes = [8, 32], strides = [1, 1]} : vector<8x128xf32> to vector<8x32xf32>
    %360 = arith.truncf %359 : vector<8x32xf32> to vector<8x32xbf16>
    %361 = vector.extract_strided_slice %354 {offsets = [0, 0], sizes = [8, 32], strides = [1, 1]} : vector<8x128xf32> to vector<8x32xf32>
    %362 = arith.truncf %361 : vector<8x32xf32> to vector<8x32xbf16>
    %cst_131 = arith.constant dense<0.000000e+00> : vector<64x8xf32>
    %363 = tpu.matmul %358, %360, %cst_131 {dimension_numbers = #tpu.dot_dimension_numbers<[1], [1], [0], [0], [0, 0, 1, 0], [], []>} : vector<64x32xbf16>, vector<8x32xbf16>, vector<64x8xf32> -> vector<64x8xf32>
    %cst_132 = arith.constant dense<0xFF800000> : vector<64xf32>
    %364 = vector.multi_reduction <maximumf>, %363, %cst_132 [1] : vector<64x8xf32> to vector<64xf32>
    %365 = vector.shape_cast %364 : vector<64xf32> to vector<64x1xf32>
    %366 = vector.broadcast %365 : vector<64x1xf32> to vector<64x8xf32>
    %367 = arith.subf %363, %366 : vector<64x8xf32>
    %368 = math.exp %367 : vector<64x8xf32>
    %cst_133 = arith.constant dense<0.000000e+00> : vector<64xf32>
    %369 = vector.multi_reduction <add>, %368, %cst_133 [1] : vector<64x8xf32> to vector<64xf32>
    %370 = vector.shape_cast %369 : vector<64xf32> to vector<64x1xf32>
    %371 = tpu.reciprocal %370 {approx = true} : vector<64x1xf32> -> vector<64x1xf32>
    %372 = vector.broadcast %371 : vector<64x1xf32> to vector<64x8xf32>
    %373 = arith.mulf %368, %372 : vector<64x8xf32>
    %374 = arith.truncf %373 : vector<64x8xf32> to vector<64x8xbf16>
    %cst_134 = arith.constant dense<0.000000e+00> : vector<64x32xf32>
    %375 = tpu.matmul %374, %362, %cst_134 {dimension_numbers = #tpu.dot_dimension_numbers<[1], [0], [0], [1], [0, 0, 1, 1], [], []>} : vector<64x8xbf16>, vector<8x32xbf16>, vector<64x32xf32> -> vector<64x32xf32>
    %376 = vector.extract_strided_slice %356 {offsets = [0, 32], sizes = [64, 32], strides = [1, 1]} : vector<64x128xf32> to vector<64x32xf32>
    %377 = arith.truncf %376 : vector<64x32xf32> to vector<64x32xbf16>
    %378 = vector.extract_strided_slice %350 {offsets = [0, 32], sizes = [8, 32], strides = [1, 1]} : vector<8x128xf32> to vector<8x32xf32>
    %379 = arith.truncf %378 : vector<8x32xf32> to vector<8x32xbf16>
    %380 = vector.extract_strided_slice %354 {offsets = [0, 32], sizes = [8, 32], strides = [1, 1]} : vector<8x128xf32> to vector<8x32xf32>
    %381 = arith.truncf %380 : vector<8x32xf32> to vector<8x32xbf16>
    %cst_135 = arith.constant dense<0.000000e+00> : vector<64x8xf32>
    %382 = tpu.matmul %377, %379, %cst_135 {dimension_numbers = #tpu.dot_dimension_numbers<[1], [1], [0], [0], [0, 0, 1, 0], [], []>} : vector<64x32xbf16>, vector<8x32xbf16>, vector<64x8xf32> -> vector<64x8xf32>
    %cst_136 = arith.constant dense<0xFF800000> : vector<64xf32>
    %383 = vector.multi_reduction <maximumf>, %382, %cst_136 [1] : vector<64x8xf32> to vector<64xf32>
    %384 = vector.shape_cast %383 : vector<64xf32> to vector<64x1xf32>
    %385 = vector.broadcast %384 : vector<64x1xf32> to vector<64x8xf32>
    %386 = arith.subf %382, %385 : vector<64x8xf32>
    %387 = math.exp %386 : vector<64x8xf32>
    %cst_137 = arith.constant dense<0.000000e+00> : vector<64xf32>
    %388 = vector.multi_reduction <add>, %387, %cst_137 [1] : vector<64x8xf32> to vector<64xf32>
    %389 = vector.shape_cast %388 : vector<64xf32> to vector<64x1xf32>
    %390 = tpu.reciprocal %389 {approx = true} : vector<64x1xf32> -> vector<64x1xf32>
    %391 = vector.broadcast %390 : vector<64x1xf32> to vector<64x8xf32>
    %392 = arith.mulf %387, %391 : vector<64x8xf32>
    %393 = arith.truncf %392 : vector<64x8xf32> to vector<64x8xbf16>
    %cst_138 = arith.constant dense<0.000000e+00> : vector<64x32xf32>
    %394 = tpu.matmul %393, %381, %cst_138 {dimension_numbers = #tpu.dot_dimension_numbers<[1], [0], [0], [1], [0, 0, 1, 1], [], []>} : vector<64x8xbf16>, vector<8x32xbf16>, vector<64x32xf32> -> vector<64x32xf32>
    %395 = vector.extract_strided_slice %356 {offsets = [0, 64], sizes = [64, 32], strides = [1, 1]} : vector<64x128xf32> to vector<64x32xf32>
    %396 = arith.truncf %395 : vector<64x32xf32> to vector<64x32xbf16>
    %397 = vector.extract_strided_slice %350 {offsets = [0, 64], sizes = [8, 32], strides = [1, 1]} : vector<8x128xf32> to vector<8x32xf32>
    %398 = arith.truncf %397 : vector<8x32xf32> to vector<8x32xbf16>
    %399 = vector.extract_strided_slice %354 {offsets = [0, 64], sizes = [8, 32], strides = [1, 1]} : vector<8x128xf32> to vector<8x32xf32>
    %400 = arith.truncf %399 : vector<8x32xf32> to vector<8x32xbf16>
    %cst_139 = arith.constant dense<0.000000e+00> : vector<64x8xf32>
    %401 = tpu.matmul %396, %398, %cst_139 {dimension_numbers = #tpu.dot_dimension_numbers<[1], [1], [0], [0], [0, 0, 1, 0], [], []>} : vector<64x32xbf16>, vector<8x32xbf16>, vector<64x8xf32> -> vector<64x8xf32>
    %cst_140 = arith.constant dense<0xFF800000> : vector<64xf32>
    %402 = vector.multi_reduction <maximumf>, %401, %cst_140 [1] : vector<64x8xf32> to vector<64xf32>
    %403 = vector.shape_cast %402 : vector<64xf32> to vector<64x1xf32>
    %404 = vector.broadcast %403 : vector<64x1xf32> to vector<64x8xf32>
    %405 = arith.subf %401, %404 : vector<64x8xf32>
    %406 = math.exp %405 : vector<64x8xf32>
    %cst_141 = arith.constant dense<0.000000e+00> : vector<64xf32>
    %407 = vector.multi_reduction <add>, %406, %cst_141 [1] : vector<64x8xf32> to vector<64xf32>
    %408 = vector.shape_cast %407 : vector<64xf32> to vector<64x1xf32>
    %409 = tpu.reciprocal %408 {approx = true} : vector<64x1xf32> -> vector<64x1xf32>
    %410 = vector.broadcast %409 : vector<64x1xf32> to vector<64x8xf32>
    %411 = arith.mulf %406, %410 : vector<64x8xf32>
    %412 = arith.truncf %411 : vector<64x8xf32> to vector<64x8xbf16>
    %cst_142 = arith.constant dense<0.000000e+00> : vector<64x32xf32>
    %413 = tpu.matmul %412, %400, %cst_142 {dimension_numbers = #tpu.dot_dimension_numbers<[1], [0], [0], [1], [0, 0, 1, 1], [], []>} : vector<64x8xbf16>, vector<8x32xbf16>, vector<64x32xf32> -> vector<64x32xf32>
    %414 = vector.extract_strided_slice %356 {offsets = [0, 96], sizes = [64, 32], strides = [1, 1]} : vector<64x128xf32> to vector<64x32xf32>
    %415 = arith.truncf %414 : vector<64x32xf32> to vector<64x32xbf16>
    %416 = vector.extract_strided_slice %350 {offsets = [0, 96], sizes = [8, 32], strides = [1, 1]} : vector<8x128xf32> to vector<8x32xf32>
    %417 = arith.truncf %416 : vector<8x32xf32> to vector<8x32xbf16>
    %418 = vector.extract_strided_slice %354 {offsets = [0, 96], sizes = [8, 32], strides = [1, 1]} : vector<8x128xf32> to vector<8x32xf32>
    %419 = arith.truncf %418 : vector<8x32xf32> to vector<8x32xbf16>
    %cst_143 = arith.constant dense<0.000000e+00> : vector<64x8xf32>
    %420 = tpu.matmul %415, %417, %cst_143 {dimension_numbers = #tpu.dot_dimension_numbers<[1], [1], [0], [0], [0, 0, 1, 0], [], []>} : vector<64x32xbf16>, vector<8x32xbf16>, vector<64x8xf32> -> vector<64x8xf32>
    %cst_144 = arith.constant dense<0xFF800000> : vector<64xf32>
    %421 = vector.multi_reduction <maximumf>, %420, %cst_144 [1] : vector<64x8xf32> to vector<64xf32>
    %422 = vector.shape_cast %421 : vector<64xf32> to vector<64x1xf32>
    %423 = vector.broadcast %422 : vector<64x1xf32> to vector<64x8xf32>
    %424 = arith.subf %420, %423 : vector<64x8xf32>
    %425 = math.exp %424 : vector<64x8xf32>
    %cst_145 = arith.constant dense<0.000000e+00> : vector<64xf32>
    %426 = vector.multi_reduction <add>, %425, %cst_145 [1] : vector<64x8xf32> to vector<64xf32>
    %427 = vector.shape_cast %426 : vector<64xf32> to vector<64x1xf32>
    %428 = tpu.reciprocal %427 {approx = true} : vector<64x1xf32> -> vector<64x1xf32>
    %429 = vector.broadcast %428 : vector<64x1xf32> to vector<64x8xf32>
    %430 = arith.mulf %425, %429 : vector<64x8xf32>
    %431 = arith.truncf %430 : vector<64x8xf32> to vector<64x8xbf16>
    %cst_146 = arith.constant dense<0.000000e+00> : vector<64x32xf32>
    %432 = tpu.matmul %431, %419, %cst_146 {dimension_numbers = #tpu.dot_dimension_numbers<[1], [0], [0], [1], [0, 0, 1, 1], [], []>} : vector<64x8xbf16>, vector<8x32xbf16>, vector<64x32xf32> -> vector<64x32xf32>
    %433 = tpu.concatenate %375, %394, %413, %432 in 1 : vector<64x32xf32>, vector<64x32xf32>, vector<64x32xf32>, vector<64x32xf32> -> vector<64x128xf32>
    %434 = arith.truncf %433 : vector<64x128xf32> to vector<64x128xbf16>
    %c9_147 = arith.constant 9 : index
    %c0_148 = arith.constant 0 : index
    %c0_149 = arith.constant 0 : index
    %435 = vector.load %arg3[%c9_147, %c0_148, %c0_149] : memref<10x128x128xbf16, #tpu.memory_space<vmem>>, vector<1x128x128xbf16>
    %436 = vector.shape_cast %435 : vector<1x128x128xbf16> to vector<128x128xbf16>
    %cst_150 = arith.constant dense<0.000000e+00> : vector<64x128xf32>
    %437 = tpu.matmul %434, %436, %cst_150 {dimension_numbers = #tpu.dot_dimension_numbers<[1], [0], [0], [1], [0, 0, 1, 1], [], []>} : vector<64x128xbf16>, vector<128x128xbf16>, vector<64x128xf32> -> vector<64x128xf32>
    %c21 = arith.constant 21 : index
    %c0_151 = arith.constant 0 : index
    %438 = vector.load %arg4[%c21, %c0_151] : memref<24x128xf32, #tpu.memory_space<vmem>>, vector<1x128xf32>
    %439 = vector.broadcast %438 : vector<1x128xf32> to vector<64x128xf32>
    %440 = arith.addf %437, %439 : vector<64x128xf32>
    %441 = arith.addf %1, %440 : vector<64x128xf32>
    %c2_152 = arith.constant 2 : index
    %c0_153 = arith.constant 0 : index
    %442 = vector.load %arg4[%c2_152, %c0_153] : memref<24x128xf32, #tpu.memory_space<vmem>>, vector<1x128xf32>
    %c3_154 = arith.constant 3 : index
    %c0_155 = arith.constant 0 : index
    %443 = vector.load %arg4[%c3_154, %c0_155] : memref<24x128xf32, #tpu.memory_space<vmem>>, vector<1x128xf32>
    %cst_156 = arith.constant dense<0.000000e+00> : vector<64xf32>
    %444 = vector.multi_reduction <add>, %441, %cst_156 [1] : vector<64x128xf32> to vector<64xf32>
    %445 = vector.shape_cast %444 : vector<64xf32> to vector<64x1xf32>
    %cst_157 = arith.constant 1.280000e+02 : f32
    %446 = vector.broadcast %cst_157 : f32 to vector<64x1xf32>
    %447 = arith.divf %445, %446 : vector<64x1xf32>
    %448 = vector.broadcast %447 : vector<64x1xf32> to vector<64x128xf32>
    %449 = arith.subf %441, %448 : vector<64x128xf32>
    %450 = arith.mulf %449, %449 : vector<64x128xf32>
    %cst_158 = arith.constant dense<0.000000e+00> : vector<64xf32>
    %451 = vector.multi_reduction <add>, %450, %cst_158 [1] : vector<64x128xf32> to vector<64xf32>
    %452 = vector.shape_cast %451 : vector<64xf32> to vector<64x1xf32>
    %cst_159 = arith.constant 1.280000e+02 : f32
    %453 = vector.broadcast %cst_159 : f32 to vector<64x1xf32>
    %454 = arith.divf %452, %453 : vector<64x1xf32>
    %cst_160 = arith.constant 9.99999974E-6 : f32
    %455 = vector.broadcast %cst_160 : f32 to vector<64x1xf32>
    %456 = arith.addf %454, %455 : vector<64x1xf32>
    %457 = math.rsqrt %456 : vector<64x1xf32>
    %458 = vector.broadcast %457 : vector<64x1xf32> to vector<64x128xf32>
    %459 = arith.mulf %449, %458 : vector<64x128xf32>
    %460 = vector.broadcast %442 : vector<1x128xf32> to vector<64x128xf32>
    %461 = arith.mulf %459, %460 : vector<64x128xf32>
    %462 = vector.broadcast %443 : vector<1x128xf32> to vector<64x128xf32>
    %463 = arith.addf %461, %462 : vector<64x128xf32>
    %464 = arith.truncf %463 : vector<64x128xf32> to vector<64x128xbf16>
    %c0_161 = arith.constant 0 : index
    %c0_162 = arith.constant 0 : index
    %465 = vector.load %arg10[%c0_161, %c0_162] : memref<128x256xbf16, #tpu.memory_space<vmem>>, vector<128x256xbf16>
    %cst_163 = arith.constant dense<0.000000e+00> : vector<64x256xf32>
    %466 = tpu.matmul %464, %465, %cst_163 {dimension_numbers = #tpu.dot_dimension_numbers<[1], [0], [0], [1], [0, 0, 1, 1], [], []>} : vector<64x128xbf16>, vector<128x256xbf16>, vector<64x256xf32> -> vector<64x256xf32>
    %c0_164 = arith.constant 0 : index
    %c0_165 = arith.constant 0 : index
    %467 = vector.load %arg5[%c0_164, %c0_165] : memref<11x256xf32, #tpu.memory_space<vmem>>, vector<1x256xf32>
    %468 = vector.broadcast %467 : vector<1x256xf32> to vector<64x256xf32>
    %469 = arith.addf %466, %468 : vector<64x256xf32>
    %cst_166 = arith.constant 0.000000e+00 : f32
    %470 = vector.broadcast %cst_166 : f32 to vector<64x256xf32>
    %c9_i32 = arith.constant 9 : i32
    %471 = tpu.dynamic_rotate %469 by %c9_i32 dim 0 : vector<64x256xf32>, i32 -> vector<64x256xf32>
    %c0_167 = arith.constant 0 : index
    %c0_168 = arith.constant 0 : index
    %c0_169 = arith.constant 0 : index
    %472 = vector.load %arg7[%c0_167, %c0_168, %c0_169] : memref<9x64x1xf32, #tpu.memory_space<vmem>>, vector<1x64x1xf32>
    %473 = vector.shape_cast %472 : vector<1x64x1xf32> to vector<64x1xf32>
    %474 = vector.broadcast %473 : vector<64x1xf32> to vector<64x256xf32>
    %475 = arith.mulf %471, %474 : vector<64x256xf32>
    %c2_170 = arith.constant 2 : index
    %c0_171 = arith.constant 0 : index
    %476 = vector.load %arg5[%c2_170, %c0_171] : memref<11x256xf32, #tpu.memory_space<vmem>>, vector<1x256xf32>
    %477 = vector.broadcast %476 : vector<1x256xf32> to vector<64x256xf32>
    %478 = arith.mulf %475, %477 : vector<64x256xf32>
    %479 = arith.addf %470, %478 : vector<64x256xf32>
    %c8_i32 = arith.constant 8 : i32
    %480 = tpu.dynamic_rotate %469 by %c8_i32 dim 0 : vector<64x256xf32>, i32 -> vector<64x256xf32>
    %c1_172 = arith.constant 1 : index
    %c0_173 = arith.constant 0 : index
    %c0_174 = arith.constant 0 : index
    %481 = vector.load %arg7[%c1_172, %c0_173, %c0_174] : memref<9x64x1xf32, #tpu.memory_space<vmem>>, vector<1x64x1xf32>
    %482 = vector.shape_cast %481 : vector<1x64x1xf32> to vector<64x1xf32>
    %483 = vector.broadcast %482 : vector<64x1xf32> to vector<64x256xf32>
    %484 = arith.mulf %480, %483 : vector<64x256xf32>
    %c3_175 = arith.constant 3 : index
    %c0_176 = arith.constant 0 : index
    %485 = vector.load %arg5[%c3_175, %c0_176] : memref<11x256xf32, #tpu.memory_space<vmem>>, vector<1x256xf32>
    %486 = vector.broadcast %485 : vector<1x256xf32> to vector<64x256xf32>
    %487 = arith.mulf %484, %486 : vector<64x256xf32>
    %488 = arith.addf %479, %487 : vector<64x256xf32>
    %c7_i32 = arith.constant 7 : i32
    %489 = tpu.dynamic_rotate %469 by %c7_i32 dim 0 : vector<64x256xf32>, i32 -> vector<64x256xf32>
    %c2_177 = arith.constant 2 : index
    %c0_178 = arith.constant 0 : index
    %c0_179 = arith.constant 0 : index
    %490 = vector.load %arg7[%c2_177, %c0_178, %c0_179] : memref<9x64x1xf32, #tpu.memory_space<vmem>>, vector<1x64x1xf32>
    %491 = vector.shape_cast %490 : vector<1x64x1xf32> to vector<64x1xf32>
    %492 = vector.broadcast %491 : vector<64x1xf32> to vector<64x256xf32>
    %493 = arith.mulf %489, %492 : vector<64x256xf32>
    %c4_180 = arith.constant 4 : index
    %c0_181 = arith.constant 0 : index
    %494 = vector.load %arg5[%c4_180, %c0_181] : memref<11x256xf32, #tpu.memory_space<vmem>>, vector<1x256xf32>
    %495 = vector.broadcast %494 : vector<1x256xf32> to vector<64x256xf32>
    %496 = arith.mulf %493, %495 : vector<64x256xf32>
    %497 = arith.addf %488, %496 : vector<64x256xf32>
    %c1_i32 = arith.constant 1 : i32
    %498 = tpu.dynamic_rotate %469 by %c1_i32 dim 0 : vector<64x256xf32>, i32 -> vector<64x256xf32>
    %c3_182 = arith.constant 3 : index
    %c0_183 = arith.constant 0 : index
    %c0_184 = arith.constant 0 : index
    %499 = vector.load %arg7[%c3_182, %c0_183, %c0_184] : memref<9x64x1xf32, #tpu.memory_space<vmem>>, vector<1x64x1xf32>
    %500 = vector.shape_cast %499 : vector<1x64x1xf32> to vector<64x1xf32>
    %501 = vector.broadcast %500 : vector<64x1xf32> to vector<64x256xf32>
    %502 = arith.mulf %498, %501 : vector<64x256xf32>
    %c5_185 = arith.constant 5 : index
    %c0_186 = arith.constant 0 : index
    %503 = vector.load %arg5[%c5_185, %c0_186] : memref<11x256xf32, #tpu.memory_space<vmem>>, vector<1x256xf32>
    %504 = vector.broadcast %503 : vector<1x256xf32> to vector<64x256xf32>
    %505 = arith.mulf %502, %504 : vector<64x256xf32>
    %506 = arith.addf %497, %505 : vector<64x256xf32>
    %c4_187 = arith.constant 4 : index
    %c0_188 = arith.constant 0 : index
    %c0_189 = arith.constant 0 : index
    %507 = vector.load %arg7[%c4_187, %c0_188, %c0_189] : memref<9x64x1xf32, #tpu.memory_space<vmem>>, vector<1x64x1xf32>
    %508 = vector.shape_cast %507 : vector<1x64x1xf32> to vector<64x1xf32>
    %509 = vector.broadcast %508 : vector<64x1xf32> to vector<64x256xf32>
    %510 = arith.mulf %469, %509 : vector<64x256xf32>
    %c6_190 = arith.constant 6 : index
    %c0_191 = arith.constant 0 : index
    %511 = vector.load %arg5[%c6_190, %c0_191] : memref<11x256xf32, #tpu.memory_space<vmem>>, vector<1x256xf32>
    %512 = vector.broadcast %511 : vector<1x256xf32> to vector<64x256xf32>
    %513 = arith.mulf %510, %512 : vector<64x256xf32>
    %514 = arith.addf %506, %513 : vector<64x256xf32>
    %c63_i32 = arith.constant 63 : i32
    %515 = tpu.dynamic_rotate %469 by %c63_i32 dim 0 : vector<64x256xf32>, i32 -> vector<64x256xf32>
    %c5_192 = arith.constant 5 : index
    %c0_193 = arith.constant 0 : index
    %c0_194 = arith.constant 0 : index
    %516 = vector.load %arg7[%c5_192, %c0_193, %c0_194] : memref<9x64x1xf32, #tpu.memory_space<vmem>>, vector<1x64x1xf32>
    %517 = vector.shape_cast %516 : vector<1x64x1xf32> to vector<64x1xf32>
    %518 = vector.broadcast %517 : vector<64x1xf32> to vector<64x256xf32>
    %519 = arith.mulf %515, %518 : vector<64x256xf32>
    %c7_195 = arith.constant 7 : index
    %c0_196 = arith.constant 0 : index
    %520 = vector.load %arg5[%c7_195, %c0_196] : memref<11x256xf32, #tpu.memory_space<vmem>>, vector<1x256xf32>
    %521 = vector.broadcast %520 : vector<1x256xf32> to vector<64x256xf32>
    %522 = arith.mulf %519, %521 : vector<64x256xf32>
    %523 = arith.addf %514, %522 : vector<64x256xf32>
    %c57_i32 = arith.constant 57 : i32
    %524 = tpu.dynamic_rotate %469 by %c57_i32 dim 0 : vector<64x256xf32>, i32 -> vector<64x256xf32>
    %c6_197 = arith.constant 6 : index
    %c0_198 = arith.constant 0 : index
    %c0_199 = arith.constant 0 : index
    %525 = vector.load %arg7[%c6_197, %c0_198, %c0_199] : memref<9x64x1xf32, #tpu.memory_space<vmem>>, vector<1x64x1xf32>
    %526 = vector.shape_cast %525 : vector<1x64x1xf32> to vector<64x1xf32>
    %527 = vector.broadcast %526 : vector<64x1xf32> to vector<64x256xf32>
    %528 = arith.mulf %524, %527 : vector<64x256xf32>
    %c8_200 = arith.constant 8 : index
    %c0_201 = arith.constant 0 : index
    %529 = vector.load %arg5[%c8_200, %c0_201] : memref<11x256xf32, #tpu.memory_space<vmem>>, vector<1x256xf32>
    %530 = vector.broadcast %529 : vector<1x256xf32> to vector<64x256xf32>
    %531 = arith.mulf %528, %530 : vector<64x256xf32>
    %532 = arith.addf %523, %531 : vector<64x256xf32>
    %c56_i32 = arith.constant 56 : i32
    %533 = tpu.dynamic_rotate %469 by %c56_i32 dim 0 : vector<64x256xf32>, i32 -> vector<64x256xf32>
    %c7_202 = arith.constant 7 : index
    %c0_203 = arith.constant 0 : index
    %c0_204 = arith.constant 0 : index
    %534 = vector.load %arg7[%c7_202, %c0_203, %c0_204] : memref<9x64x1xf32, #tpu.memory_space<vmem>>, vector<1x64x1xf32>
    %535 = vector.shape_cast %534 : vector<1x64x1xf32> to vector<64x1xf32>
    %536 = vector.broadcast %535 : vector<64x1xf32> to vector<64x256xf32>
    %537 = arith.mulf %533, %536 : vector<64x256xf32>
    %c9_205 = arith.constant 9 : index
    %c0_206 = arith.constant 0 : index
    %538 = vector.load %arg5[%c9_205, %c0_206] : memref<11x256xf32, #tpu.memory_space<vmem>>, vector<1x256xf32>
    %539 = vector.broadcast %538 : vector<1x256xf32> to vector<64x256xf32>
    %540 = arith.mulf %537, %539 : vector<64x256xf32>
    %541 = arith.addf %532, %540 : vector<64x256xf32>
    %c55_i32 = arith.constant 55 : i32
    %542 = tpu.dynamic_rotate %469 by %c55_i32 dim 0 : vector<64x256xf32>, i32 -> vector<64x256xf32>
    %c8_207 = arith.constant 8 : index
    %c0_208 = arith.constant 0 : index
    %c0_209 = arith.constant 0 : index
    %543 = vector.load %arg7[%c8_207, %c0_208, %c0_209] : memref<9x64x1xf32, #tpu.memory_space<vmem>>, vector<1x64x1xf32>
    %544 = vector.shape_cast %543 : vector<1x64x1xf32> to vector<64x1xf32>
    %545 = vector.broadcast %544 : vector<64x1xf32> to vector<64x256xf32>
    %546 = arith.mulf %542, %545 : vector<64x256xf32>
    %c10_210 = arith.constant 10 : index
    %c0_211 = arith.constant 0 : index
    %547 = vector.load %arg5[%c10_210, %c0_211] : memref<11x256xf32, #tpu.memory_space<vmem>>, vector<1x256xf32>
    %548 = vector.broadcast %547 : vector<1x256xf32> to vector<64x256xf32>
    %549 = arith.mulf %546, %548 : vector<64x256xf32>
    %550 = arith.addf %541, %549 : vector<64x256xf32>
    %c1_212 = arith.constant 1 : index
    %c0_213 = arith.constant 0 : index
    %551 = vector.load %arg5[%c1_212, %c0_213] : memref<11x256xf32, #tpu.memory_space<vmem>>, vector<1x256xf32>
    %552 = vector.broadcast %551 : vector<1x256xf32> to vector<64x256xf32>
    %553 = arith.addf %550, %552 : vector<64x256xf32>
    %cst_214 = arith.constant 5.000000e-01 : f32
    %554 = vector.broadcast %cst_214 : f32 to vector<64x256xf32>
    %555 = arith.mulf %554, %553 : vector<64x256xf32>
    %cst_215 = arith.constant 4.471500e-02 : f32
    %556 = vector.broadcast %cst_215 : f32 to vector<64x256xf32>
    %557 = arith.mulf %556, %553 : vector<64x256xf32>
    %558 = arith.mulf %557, %553 : vector<64x256xf32>
    %559 = arith.mulf %558, %553 : vector<64x256xf32>
    %560 = arith.addf %553, %559 : vector<64x256xf32>
    %cst_216 = arith.constant 0.797884583 : f32
    %561 = vector.broadcast %cst_216 : f32 to vector<64x256xf32>
    %562 = arith.mulf %561, %560 : vector<64x256xf32>
    %563 = math.tanh %562 : vector<64x256xf32>
    %cst_217 = arith.constant 1.000000e+00 : f32
    %564 = vector.broadcast %cst_217 : f32 to vector<64x256xf32>
    %565 = arith.addf %564, %563 : vector<64x256xf32>
    %566 = arith.mulf %555, %565 : vector<64x256xf32>
    %567 = arith.truncf %566 : vector<64x256xf32> to vector<64x256xbf16>
    %c0_218 = arith.constant 0 : index
    %c0_219 = arith.constant 0 : index
    %568 = vector.load %arg11[%c0_218, %c0_219] : memref<256x128xbf16, #tpu.memory_space<vmem>>, vector<256x128xbf16>
    %cst_220 = arith.constant dense<0.000000e+00> : vector<64x128xf32>
    %569 = tpu.matmul %567, %568, %cst_220 {dimension_numbers = #tpu.dot_dimension_numbers<[1], [0], [0], [1], [0, 0, 1, 1], [], []>} : vector<64x256xbf16>, vector<256x128xbf16>, vector<64x128xf32> -> vector<64x128xf32>
    %c23 = arith.constant 23 : index
    %c0_221 = arith.constant 0 : index
    %570 = vector.load %arg4[%c23, %c0_221] : memref<24x128xf32, #tpu.memory_space<vmem>>, vector<1x128xf32>
    %571 = vector.broadcast %570 : vector<1x128xf32> to vector<64x128xf32>
    %572 = arith.addf %569, %571 : vector<64x128xf32>
    %573 = arith.addf %441, %572 : vector<64x128xf32>
    %c0_222 = arith.constant 0 : index
    %c0_223 = arith.constant 0 : index
    %c0_224 = arith.constant 0 : index
    %574 = vector.load %arg12[%c0_222, %c0_223, %c0_224] : memref<1x64x128xf32, #tpu.memory_space<vmem>>, vector<1x64x128xf32>
    %575 = vector.shape_cast %574 : vector<1x64x128xf32> to vector<64x128xf32>
    %576 = vector.shape_cast %573 : vector<64x128xf32> to vector<1x64x128xf32>
    tpu.vector_store %arg12[%c0_222, %c0_223, %c0_224], %576 {strides = array<i32>} : memref<1x64x128xf32, #tpu.memory_space<vmem>>, vector<1x64x128xf32>,
    return
  }
  func.func @transform_0(%arg0: i32) -> (i32, i32, i32) {
    %c0_i32 = arith.constant 0 : i32
    %c0_i32_0 = arith.constant 0 : i32
    %c0_i32_1 = arith.constant 0 : i32
    return %arg0, %c0_i32, %c0_i32_0 : i32, i32, i32
  }
  func.func @transform_1(%arg0: i32) -> (i32, i32, i32) {
    %c0_i32 = arith.constant 0 : i32
    %c0_i32_0 = arith.constant 0 : i32
    %c0_i32_1 = arith.constant 0 : i32
    return %arg0, %c0_i32, %c0_i32_0 : i32, i32, i32
  }
  func.func @transform_2(%arg0: i32) -> (i32, i32, i32) {
    %c0_i32 = arith.constant 0 : i32
    %c0_i32_0 = arith.constant 0 : i32
    %c0_i32_1 = arith.constant 0 : i32
    %c0_i32_2 = arith.constant 0 : i32
    return %c0_i32, %c0_i32_0, %c0_i32_1 : i32, i32, i32
  }
  func.func @transform_3(%arg0: i32) -> (i32, i32) {
    %c0_i32 = arith.constant 0 : i32
    %c0_i32_0 = arith.constant 0 : i32
    %c0_i32_1 = arith.constant 0 : i32
    return %c0_i32, %c0_i32_0 : i32, i32
  }
  func.func @transform_4(%arg0: i32) -> (i32, i32) {
    %c0_i32 = arith.constant 0 : i32
    %c0_i32_0 = arith.constant 0 : i32
    %c0_i32_1 = arith.constant 0 : i32
    return %c0_i32, %c0_i32_0 : i32, i32
  }
  func.func @transform_5(%arg0: i32) -> (i32, i32) {
    %c0_i32 = arith.constant 0 : i32
    %c0_i32_0 = arith.constant 0 : i32
    %c0_i32_1 = arith.constant 0 : i32
    return %c0_i32, %c0_i32_0 : i32, i32
  }
  func.func @transform_6(%arg0: i32) -> (i32, i32, i32) {
    %c0_i32 = arith.constant 0 : i32
    %c0_i32_0 = arith.constant 0 : i32
    %c0_i32_1 = arith.constant 0 : i32
    %c0_i32_2 = arith.constant 0 : i32
    return %c0_i32, %c0_i32_0, %c0_i32_1 : i32, i32, i32
  }
  func.func @transform_7(%arg0: i32) -> (i32, i32) {
    %c0_i32 = arith.constant 0 : i32
    %c0_i32_0 = arith.constant 0 : i32
    %c0_i32_1 = arith.constant 0 : i32
    return %c0_i32, %c0_i32_0 : i32, i32
  }
  func.func @transform_8(%arg0: i32) -> (i32, i32) {
    %c0_i32 = arith.constant 0 : i32
    %c0_i32_0 = arith.constant 0 : i32
    %c0_i32_1 = arith.constant 0 : i32
    return %c0_i32, %c0_i32_0 : i32, i32
  }
  func.func @transform_9(%arg0: i32) -> (i32, i32) {
    %c0_i32 = arith.constant 0 : i32
    %c0_i32_0 = arith.constant 0 : i32
    %c0_i32_1 = arith.constant 0 : i32
    return %c0_i32, %c0_i32_0 : i32, i32
  }
  func.func @transform_10(%arg0: i32) -> (i32, i32) {
    %c0_i32 = arith.constant 0 : i32
    %c0_i32_0 = arith.constant 0 : i32
    %c0_i32_1 = arith.constant 0 : i32
    return %c0_i32, %c0_i32_0 : i32, i32
  }
  func.func @transform_11(%arg0: i32) -> (i32, i32, i32) {
    %c0_i32 = arith.constant 0 : i32
    %c0_i32_0 = arith.constant 0 : i32
    %c0_i32_1 = arith.constant 0 : i32
    return %arg0, %c0_i32, %c0_i32_0 : i32, i32, i32
  }
  func.func @transform_12(%arg0: i32) -> (i32, i32, i32) {
    %c0_i32 = arith.constant 0 : i32
    %c0_i32_0 = arith.constant 0 : i32
    %c0_i32_1 = arith.constant 0 : i32
    return %arg0, %c0_i32, %c0_i32_0 : i32, i32, i32
  }
}

</mosaic_0001>

<llo_original>
// kernel: tpu_custom_call.1
$region0: #{tpu_custom_call.1}
  #allocation0 [shape = 'u32[]', space=smem, size = 0x4, offset = 0x4, fixed_abs, tag = 'smem constant byte address 0x4 - core index']
  #allocation1 [shape = 'u32[72,128]{1,0:T(1,128)}', space=vmem, size = 0x9000, scoped, tag = 'internal scratch']
  %s0 = inlined_call_operand.hbm [shape: f32[2,64,128], index: 0, kind: input, shape index: {}, may-alias: {0,11}]
  %s1 = inlined_call_operand.hbm [shape: f32[2,8,128], index: 1, kind: input, shape index: {}, may-alias: {1,12}]
  %s2 = inlined_call_operand.vmem [shape: bf16[10,128,128], index: 2, kind: input, shape index: {}]
  %s3 = inlined_call_operand.vmem [shape: f32[24,128], index: 3, kind: input, shape index: {}]
  %s4 = inlined_call_operand.vmem [shape: f32[11,256], index: 4, kind: input, shape index: {}]
  %s5 = inlined_call_operand.vmem [shape: f32[1,512], index: 5, kind: input, shape index: {}]
  %s6 = inlined_call_operand.vmem [shape: f32[9,64,1], index: 6, kind: input, shape index: {}]
  %s7 = inlined_call_operand.hbm [shape: bf16[128,512], index: 7, kind: input, shape index: {}]
  %s8 = inlined_call_operand.hbm [shape: bf16[512,128], index: 8, kind: input, shape index: {}]
  %s9 = inlined_call_operand.vmem [shape: bf16[128,256], index: 9, kind: input, shape index: {}]
  %s10 = inlined_call_operand.hbm [shape: bf16[256,128], index: 10, kind: input, shape index: {}]
  %s11 = inlined_call_operand.hbm [shape: f32[2,64,128], index: 11, kind: output, shape index: {0}, may-alias: {0,11}]
  %s12 = inlined_call_operand.hbm [shape: f32[2,8,128], index: 12, kind: output, shape index: {1}, may-alias: {1,12}]
  %13 = xla_tuple %s11, %s12
  %s14 = sld [smem:[#allocation0]]
  $region105: #{tpu_custom_call.1} parent=0
    _
  %s16 = ssub.s32 1, %s14
  %s17 = scalar_select 0, %s16, %s14
  $region1: #{tpu_custom_call.1} parent=0
    #allocation2 [shape = 'u8[65536]{0}', space=vmem, size = 0x10000, scoped, tag = 'input window, operand 0']
    #allocation3 [shape = 's32[2]{0}', space=sflag, size = 0x8, scoped, tag = 'scoped memory for tpu_custom_call.1']
    #allocation4 [shape = 's32[2]{0}', space=sflag, size = 0x8, scoped, tag = 'scoped memory for tpu_custom_call.1']
    #allocation5 [shape = 'u8[8192]{0}', space=vmem, size = 0x2000, scoped, tag = 'input window, operand 1']
    #allocation6 [shape = 's32[2]{0}', space=sflag, size = 0x8, scoped, tag = 'scoped memory for tpu_custom_call.1']
    #allocation7 [shape = 'u8[131072]{0}', space=vmem, size = 0x20000, scoped, tag = 'input window, operand 7, single buffered']
    #allocation8 [shape = 'u8[131072]{0}', space=vmem, size = 0x20000, scoped, tag = 'input window, operand 8, single buffered']
    #allocation9 [shape = 's32[1]{0}', space=sflag, size = 0x4, scoped, tag = 'scoped memory for tpu_custom_call.1']
    #allocation10 [shape = 'u8[65536]{0}', space=vmem, size = 0x10000, scoped, tag = 'input window, operand 10, single buffered']
    #allocation11 [shape = 'u8[65536]{0}', space=vmem, size = 0x10000, scoped, tag = 'output window, operand 0']
    #allocation12 [shape = 'u8[8192]{0}', space=vmem, size = 0x2000, scoped, tag = 'output window, operand 1']
    #allocation13 [shape = 's32[2]{0}', space=sflag, size = 0x8, scoped, tag = 'scoped memory for tpu_custom_call.1']
    %18 = vsyncpa [#allocation3], 0
    %s19 = scalar_lea.sflag [#allocation3], 1
    %20 = vsyncpa %s19, 0
    %21 = vsyncpa [#allocation6], 0
    %s22 = scalar_lea.sflag [#allocation6], 1
    %23 = vsyncpa %s22, 0
    %24 = vsyncpa [#allocation9], 0
    %25 = vsyncpa [#allocation4], 0
    %s26 = scalar_lea.sflag [#allocation4], 1
    %27 = vsyncpa %s26, 0
    %28 = vsyncpa [#allocation13], 0
    %s29 = scalar_lea.sflag [#allocation13], 1
    %30 = vsyncpa %s29, 0
    loop: start=0, step=1, limit=4
    $region2: #{tpu_custom_call.1} parent=1 // loop_pre_header
      _
    $region3: #{tpu_custom_call.1} parent=1 // loop_header
      %s32 = sphi 0, %s36
      %p33 = scmp.ge.s32.totalorder %s32, 4
      %s42 = sphi 0, %s44
      %s45 = sphi 0, %s42
      %s46 = sphi 0, %s45
      %s62 = sphi 0, %s46
      %s68 = sphi 0, %s70
      %s71 = sphi 0, %s68
      %s72 = sphi 0, %s71
      %s88 = sphi 0, %s72
      %s92 = sphi 0, %s92
      %s94 = sphi 0, %s92
      %s95 = sphi 0, %s94
      %s109 = sphi 0, %s95
      %s113 = sphi 0, %s113
      %s115 = sphi 0, %s113
      %s116 = sphi 0, %s115
      %s130 = sphi 0, %s116
      %s134 = sphi 0, %s134
      %s136 = sphi 0, %s134
      %s137 = sphi 0, %s136
      %s151 = sphi 0, %s137
      %s155 = sphi 0, %s155
      %s157 = sphi 0, %s155
      %s158 = sphi 0, %s157
      %s172 = sphi 0, %s158
      %s176 = sphi 0, %s176
      %s178 = sphi 0, %s176
      %s179 = sphi 0, %s178
      %s193 = sphi 0, %s179
      %s197 = sphi 0, %s197
      %s199 = sphi 0, %s197
      %s200 = sphi 0, %s199
      %s214 = sphi 0, %s200
      %s218 = sphi 0, %s218
      %s220 = sphi 0, %s218
      %s221 = sphi 0, %s220
      %s235 = sphi 0, %s221
      %s239 = sphi 0, %s239
      %s241 = sphi 0, %s239
      %s242 = sphi 0, %s241
      %s256 = sphi 0, %s242
      %s260 = sphi 0, %s260
      %s262 = sphi 0, %s260
      %s263 = sphi 0, %s262
      %s277 = sphi 0, %s263
      %s283 = sphi 0, %s285
      %s286 = sphi 0, %s283
      %s287 = sphi 0, %s286
      %s303 = sphi 0, %s287
      %s309 = sphi 0, %s311
      %s312 = sphi 0, %s309
      %s313 = sphi 0, %s312
      %s329 = sphi 0, %s313
    $region4: #{tpu_custom_call.1} parent=1 // loop_header_branch
      %35 = sbr.rel (%p33) target = $region8
    $region5: #{tpu_custom_call.1} parent=1 // loop_body
      %s37 = ssub.s32 %s32, 1
      %s38 = ssub.s32 %s32, 2
      %s39 = sadd.s32 %s32, 1
      %s40 = ssub.s32 %s32, %s39
      %p41 = scmp.eq.s32.totalorder %s40, 0
      %s43 = sadd.s32 %s42, 1
      %s44 = scalar_select %p41, %s42, %s43
      %p47 = pneg %p41
      %p48 = scmp.eq.s32.totalorder %s32, 1
      %p49 = por %p47, %p48
      %p50 = scmp.ne.s32.totalorder %s42, %s45
      %p51 = scmp.eq.s32.totalorder %s32, 0
      %p52 = por %p50, %p51
      %p53 = scmp.ne.s32.totalorder %s42, %s45
      %p54 = scmp.eq.s32.totalorder %s37, 1
      %p55 = por %p53, %p54
      %p56 = scmp.ne.s32.totalorder %s45, %s46
      %p57 = scmp.eq.s32.totalorder %s37, 0
      %p58 = por %p56, %p57
      %p59 = scmp.ne.s32.totalorder %s45, %s46
      %p60 = scmp.eq.s32.totalorder %s38, 1
      %p61 = por %p59, %p60
      %p63 = scmp.ne.s32.totalorder %s46, %s62
      %p64 = scmp.eq.s32.totalorder %s38, 0
      %p65 = por %p63, %p64
      %s66 = ssub.s32 %s32, %s39
      %p67 = scmp.eq.s32.totalorder %s66, 0
      %s69 = sadd.s32 %s68, 1
      %s70 = scalar_select %p67, %s68, %s69
      %p73 = pneg %p67
      %p74 = scmp.eq.s32.totalorder %s32, 1
      %p75 = por %p73, %p74
      %p76 = scmp.ne.s32.totalorder %s68, %s71
      %p77 = scmp.eq.s32.totalorder %s32, 0
      %p78 = por %p76, %p77
      %p79 = scmp.ne.s32.totalorder %s68, %s71
      %p80 = scmp.eq.s32.totalorder %s37, 1
      %p81 = por %p79, %p80
      %p82 = scmp.ne.s32.totalorder %s71, %s72
      %p83 = scmp.eq.s32.totalorder %s37, 0
      %p84 = por %p82, %p83
      %p85 = scmp.ne.s32.totalorder %s71, %s72
      %p86 = scmp.eq.s32.totalorder %s38, 1
      %p87 = por %p85, %p86
      %p89 = scmp.ne.s32.totalorder %s72, %s88
      %p90 = scmp.eq.s32.totalorder %s38, 0
      %p91 = por %p89, %p90
      %s93 = sadd.s32 %s92, 1
      %p96 = scmp.eq.s32.totalorder %s32, 1
      %p97 = scmp.ne.s32.totalorder %s92, %s94
      %p98 = scmp.eq.s32.totalorder %s32, 0
      %p99 = por %p97, %p98
      %p100 = scmp.ne.s32.totalorder %s92, %s94
      %p101 = scmp.eq.s32.totalorder %s37, 1
      %p102 = por %p100, %p101
      %p103 = scmp.ne.s32.totalorder %s94, %s95
      %p104 = scmp.eq.s32.totalorder %s37, 0
      %p105 = por %p103, %p104
      %p106 = scmp.ne.s32.totalorder %s94, %s95
      %p107 = scmp.eq.s32.totalorder %s38, 1
      %p108 = por %p106, %p107
      %p110 = scmp.ne.s32.totalorder %s95, %s109
      %p111 = scmp.eq.s32.totalorder %s38, 0
      %p112 = por %p110, %p111
      %s114 = sadd.s32 %s113, 1
      %p117 = scmp.eq.s32.totalorder %s32, 1
      %p118 = scmp.ne.s32.totalorder %s113, %s115
      %p119 = scmp.eq.s32.totalorder %s32, 0
      %p120 = por %p118, %p119
      %p121 = scmp.ne.s32.totalorder %s113, %s115
      %p122 = scmp.eq.s32.totalorder %s37, 1
      %p123 = por %p121, %p122
      %p124 = scmp.ne.s32.totalorder %s115, %s116
      %p125 = scmp.eq.s32.totalorder %s37, 0
      %p126 = por %p124, %p125
      %p127 = scmp.ne.s32.totalorder %s115, %s116
      %p128 = scmp.eq.s32.totalorder %s38, 1
      %p129 = por %p127, %p128
      %p131 = scmp.ne.s32.totalorder %s116, %s130
      %p132 = scmp.eq.s32.totalorder %s38, 0
      %p133 = por %p131, %p132
      %s135 = sadd.s32 %s134, 1
      %p138 = scmp.eq.s32.totalorder %s32, 1
      %p139 = scmp.ne.s32.totalorder %s134, %s136
      %p140 = scmp.eq.s32.totalorder %s32, 0
      %p141 = por %p139, %p140
      %p142 = scmp.ne.s32.totalorder %s134, %s136
      %p143 = scmp.eq.s32.totalorder %s37, 1
      %p144 = por %p142, %p143
      %p145 = scmp.ne.s32.totalorder %s136, %s137
      %p146 = scmp.eq.s32.totalorder %s37, 0
      %p147 = por %p145, %p146
      %p148 = scmp.ne.s32.totalorder %s136, %s137
      %p149 = scmp.eq.s32.totalorder %s38, 1
      %p150 = por %p148, %p149
      %p152 = scmp.ne.s32.totalorder %s137, %s151
      %p153 = scmp.eq.s32.totalorder %s38, 0
      %p154 = por %p152, %p153
      %s156 = sadd.s32 %s155, 1
      %p159 = scmp.eq.s32.totalorder %s32, 1
      %p160 = scmp.ne.s32.totalorder %s155, %s157
      %p161 = scmp.eq.s32.totalorder %s32, 0
      %p162 = por %p160, %p161
      %p163 = scmp.ne.s32.totalorder %s155, %s157
      %p164 = scmp.eq.s32.totalorder %s37, 1
      %p165 = por %p163, %p164
      %p166 = scmp.ne.s32.totalorder %s157, %s158
      %p167 = scmp.eq.s32.totalorder %s37, 0
      %p168 = por %p166, %p167
      %p169 = scmp.ne.s32.totalorder %s157, %s158
      %p170 = scmp.eq.s32.totalorder %s38, 1
      %p171 = por %p169, %p170
      %p173 = scmp.ne.s32.totalorder %s158, %s172
      %p174 = scmp.eq.s32.totalorder %s38, 0
      %p175 = por %p173, %p174
      %s177 = sadd.s32 %s176, 1
      %p180 = scmp.eq.s32.totalorder %s32, 1
      %p181 = scmp.ne.s32.totalorder %s176, %s178
      %p182 = scmp.eq.s32.totalorder %s32, 0
      %p183 = por %p181, %p182
      %p184 = scmp.ne.s32.totalorder %s176, %s178
      %p185 = scmp.eq.s32.totalorder %s37, 1
      %p186 = por %p184, %p185
      %p187 = scmp.ne.s32.totalorder %s178, %s179
      %p188 = scmp.eq.s32.totalorder %s37, 0
      %p189 = por %p187, %p188
      %p190 = scmp.ne.s32.totalorder %s178, %s179
      %p191 = scmp.eq.s32.totalorder %s38, 1
      %p192 = por %p190, %p191
      %p194 = scmp.ne.s32.totalorder %s179, %s193
      %p195 = scmp.eq.s32.totalorder %s38, 0
      %p196 = por %p194, %p195
      %s198 = sadd.s32 %s197, 1
      %p201 = scmp.eq.s32.totalorder %s32, 1
      %p202 = scmp.ne.s32.totalorder %s197, %s199
      %p203 = scmp.eq.s32.totalorder %s32, 0
      %p204 = por %p202, %p203
      %p205 = scmp.ne.s32.totalorder %s197, %s199
      %p206 = scmp.eq.s32.totalorder %s37, 1
      %p207 = por %p205, %p206
      %p208 = scmp.ne.s32.totalorder %s199, %s200
      %p209 = scmp.eq.s32.totalorder %s37, 0
      %p210 = por %p208, %p209
      %p211 = scmp.ne.s32.totalorder %s199, %s200
      %p212 = scmp.eq.s32.totalorder %s38, 1
      %p213 = por %p211, %p212
      %p215 = scmp.ne.s32.totalorder %s200, %s214
      %p216 = scmp.eq.s32.totalorder %s38, 0
      %p217 = por %p215, %p216
      %s219 = sadd.s32 %s218, 1
      %p222 = scmp.eq.s32.totalorder %s32, 1
      %p223 = scmp.ne.s32.totalorder %s218, %s220
      %p224 = scmp.eq.s32.totalorder %s32, 0
      %p225 = por %p223, %p224
      %p226 = scmp.ne.s32.totalorder %s218, %s220
      %p227 = scmp.eq.s32.totalorder %s37, 1
      %p228 = por %p226, %p227
      %p229 = scmp.ne.s32.totalorder %s220, %s221
      %p230 = scmp.eq.s32.totalorder %s37, 0
      %p231 = por %p229, %p230
      %p232 = scmp.ne.s32.totalorder %s220, %s221
      %p233 = scmp.eq.s32.totalorder %s38, 1
      %p234 = por %p232, %p233
      %p236 = scmp.ne.s32.totalorder %s221, %s235
      %p237 = scmp.eq.s32.totalorder %s38, 0
      %p238 = por %p236, %p237
      %s240 = sadd.s32 %s239, 1
      %p243 = scmp.eq.s32.totalorder %s32, 1
      %p244 = scmp.ne.s32.totalorder %s239, %s241
      %p245 = scmp.eq.s32.totalorder %s32, 0
      %p246 = por %p244, %p245
      %p247 = scmp.ne.s32.totalorder %s239, %s241
      %p248 = scmp.eq.s32.totalorder %s37, 1
      %p249 = por %p247, %p248
      %p250 = scmp.ne.s32.totalorder %s241, %s242
      %p251 = scmp.eq.s32.totalorder %s37, 0
      %p252 = por %p250, %p251
      %p253 = scmp.ne.s32.totalorder %s241, %s242
      %p254 = scmp.eq.s32.totalorder %s38, 1
      %p255 = por %p253, %p254
      %p257 = scmp.ne.s32.totalorder %s242, %s256
      %p258 = scmp.eq.s32.totalorder %s38, 0
      %p259 = por %p257, %p258
      %s261 = sadd.s32 %s260, 1
      %p264 = scmp.eq.s32.totalorder %s32, 1
      %p265 = scmp.ne.s32.totalorder %s260, %s262
      %p266 = scmp.eq.s32.totalorder %s32, 0
      %p267 = por %p265, %p266
      %p268 = scmp.ne.s32.totalorder %s260, %s262
      %p269 = scmp.eq.s32.totalorder %s37, 1
      %p270 = por %p268, %p269
      %p271 = scmp.ne.s32.totalorder %s262, %s263
      %p272 = scmp.eq.s32.totalorder %s37, 0
      %p273 = por %p271, %p272
      %p274 = scmp.ne.s32.totalorder %s262, %s263
      %p275 = scmp.eq.s32.totalorder %s38, 1
      %p276 = por %p274, %p275
      %p278 = scmp.ne.s32.totalorder %s263, %s277
      %p279 = scmp.eq.s32.totalorder %s38, 0
      %p280 = por %p278, %p279
      %s281 = ssub.s32 %s32, %s39
      %p282 = scmp.eq.s32.totalorder %s281, 0
      %s284 = sadd.s32 %s283, 1
      %s285 = scalar_select %p282, %s283, %s284
      %p288 = pneg %p282
      %p289 = scmp.eq.s32.totalorder %s32, 1
      %p290 = por %p288, %p289
      %p291 = scmp.ne.s32.totalorder %s283, %s286
      %p292 = scmp.eq.s32.totalorder %s32, 0
      %p293 = por %p291, %p292
      %p294 = scmp.ne.s32.totalorder %s283, %s286
      %p295 = scmp.eq.s32.totalorder %s37, 1
      %p296 = por %p294, %p295
      %p297 = scmp.ne.s32.totalorder %s286, %s287
      %p298 = scmp.eq.s32.totalorder %s37, 0
      %p299 = por %p297, %p298
      %p300 = scmp.ne.s32.totalorder %s286, %s287
      %p301 = scmp.eq.s32.totalorder %s38, 1
      %p302 = por %p300, %p301
      %p304 = scmp.ne.s32.totalorder %s287, %s303
      %p305 = scmp.eq.s32.totalorder %s38, 0
      %p306 = por %p304, %p305
      %s307 = ssub.s32 %s32, %s39
      %p308 = scmp.eq.s32.totalorder %s307, 0
      %s310 = sadd.s32 %s309, 1
      %s311 = scalar_select %p308, %s309, %s310
      %p314 = pneg %p308
      %p315 = scmp.eq.s32.totalorder %s32, 1
      %p316 = por %p314, %p315
      %p317 = scmp.ne.s32.totalorder %s309, %s312
      %p318 = scmp.eq.s32.totalorder %s32, 0
      %p319 = por %p317, %p318
      %p320 = scmp.ne.s32.totalorder %s309, %s312
      %p321 = scmp.eq.s32.totalorder %s37, 1
      %p322 = por %p320, %p321
      %p323 = scmp.ne.s32.totalorder %s312, %s313
      %p324 = scmp.eq.s32.totalorder %s37, 0
      %p325 = por %p323, %p324
      %p326 = scmp.ne.s32.totalorder %s312, %s313
      %p327 = scmp.eq.s32.totalorder %s38, 1
      %p328 = por %p326, %p327
      %p330 = scmp.ne.s32.totalorder %s313, %s329
      %p331 = scmp.eq.s32.totalorder %s38, 0
      %p332 = por %p330, %p331
      %p333 = scmp.le.s32.totalorder 1, %s32
      %p334 = scmp.lt.s32.totalorder %s32, 3
      %p335 = pnand %p333, %p334
      %p336 = pneg %p335
      // Predicated region
      $region9: #{tpu_custom_call.1} parent=5 // pred_check
        _
      $region10: #{tpu_custom_call.1} parent=5 // pred_check_branch
        %338 = sbr.rel (%p335) target = $region12
      $region11: #{tpu_custom_call.1} parent=5 // pred_region
        %s339 = ssub.s32 %s32, 1
        // Predicated region
        $region13: #{tpu_custom_call.1} parent=11 // pred_check
          %p340 = pneg %p105
        $region14: #{tpu_custom_call.1} parent=11 // pred_check_branch
          %342 = sbr.rel (%p340) target = $region16
        $region15: #{tpu_custom_call.1} parent=11 // pred_region
          _
        $region16: #{tpu_custom_call.1} parent=11 // pred_fallthru
          _
        // Predicated region
        $region17: #{tpu_custom_call.1} parent=11 // pred_check
          %p343 = pneg %p126
        $region18: #{tpu_custom_call.1} parent=11 // pred_check_branch
          %345 = sbr.rel (%p343) target = $region20
        $region19: #{tpu_custom_call.1} parent=11 // pred_region
          _
        $region20: #{tpu_custom_call.1} parent=11 // pred_fallthru
          _
        // Predicated region
        $region21: #{tpu_custom_call.1} parent=11 // pred_check
          %p346 = pneg %p147
        $region22: #{tpu_custom_call.1} parent=11 // pred_check_branch
          %348 = sbr.rel (%p346) target = $region24
        $region23: #{tpu_custom_call.1} parent=11 // pred_region
          _
        $region24: #{tpu_custom_call.1} parent=11 // pred_fallthru
          _
        // Predicated region
        $region25: #{tpu_custom_call.1} parent=11 // pred_check
          %p349 = pneg %p168
        $region26: #{tpu_custom_call.1} parent=11 // pred_check_branch
          %351 = sbr.rel (%p349) target = $region28
        $region27: #{tpu_custom_call.1} parent=11 // pred_region
          _
        $region28: #{tpu_custom_call.1} parent=11 // pred_fallthru
          _
        // Predicated region
        $region29: #{tpu_custom_call.1} parent=11 // pred_check
          %p352 = pneg %p189
        $region30: #{tpu_custom_call.1} parent=11 // pred_check_branch
          %354 = sbr.rel (%p352) target = $region32
        $region31: #{tpu_custom_call.1} parent=11 // pred_region
          _
        $region32: #{tpu_custom_call.1} parent=11 // pred_fallthru
          _
        // Predicated region
        $region33: #{tpu_custom_call.1} parent=11 // pred_check
          %p355 = pneg %p210
        $region34: #{tpu_custom_call.1} parent=11 // pred_check_branch
          %357 = sbr.rel (%p355) target = $region36
        $region35: #{tpu_custom_call.1} parent=11 // pred_region
          %359 = vsyncadd [#allocation6], 0
          %s360 = sshll.u32 %s7, 4
          %s361 = int_to_ptr.hbm [resolvable:$true] %s360
          %s362 = sshll.u32 [#allocation7], 4
          %s363 = int_to_ptr.vmem [resolvable:$true] %s362
          %368 = dma.hbm_to_vmem [thread:$0]  %s361, 4096, %s363, [#allocation6], 256, 256, 16
        $region36: #{tpu_custom_call.1} parent=11 // pred_fallthru
          _
        // Predicated region
        $region37: #{tpu_custom_call.1} parent=11 // pred_check
          %p369 = pneg %p231
        $region38: #{tpu_custom_call.1} parent=11 // pred_check_branch
          %371 = sbr.rel (%p369) target = $region40
        $region39: #{tpu_custom_call.1} parent=11 // pred_region
          %373 = vsyncadd [#allocation9], 0
          %s374 = sshll.u32 %s8, 4
          %s375 = int_to_ptr.hbm [resolvable:$true] %s374
          %s376 = sshll.u32 [#allocation8], 4
          %s377 = int_to_ptr.vmem [resolvable:$true] %s376
          %382 = dma.hbm_to_vmem [thread:$0]  %s375, 4096, %s377, [#allocation9], 64, 64, 4
        $region40: #{tpu_custom_call.1} parent=11 // pred_fallthru
          _
        // Predicated region
        $region41: #{tpu_custom_call.1} parent=11 // pred_check
          %p383 = pneg %p252
        $region42: #{tpu_custom_call.1} parent=11 // pred_check_branch
          %385 = sbr.rel (%p383) target = $region44
        $region43: #{tpu_custom_call.1} parent=11 // pred_region
          _
        $region44: #{tpu_custom_call.1} parent=11 // pred_fallthru
          _
        // Predicated region
        $region45: #{tpu_custom_call.1} parent=11 // pred_check
          %p386 = pneg %p273
        $region46: #{tpu_custom_call.1} parent=11 // pred_check_branch
          %388 = sbr.rel (%p386) target = $region48
        $region47: #{tpu_custom_call.1} parent=11 // pred_region
          %390 = vsyncadd [#allocation9], 0
          %s391 = sshll.u32 %s10, 4
          %s392 = int_to_ptr.hbm [resolvable:$true] %s391
          %s393 = sshll.u32 [#allocation10], 4
          %s394 = int_to_ptr.vmem [resolvable:$true] %s393
          %399 = dma.hbm_to_vmem [thread:$0]  %s392, 2048, %s394, [#allocation9], 64, 64, 4
        $region48: #{tpu_custom_call.1} parent=11 // pred_fallthru
          _
      $region12: #{tpu_custom_call.1} parent=5 // pred_fallthru
        _
      %p400 = scmp.lt.s32.totalorder %s32, 2
      // Predicated region
      $region49: #{tpu_custom_call.1} parent=5 // pred_check
        %p401 = pneg %p400
      $region50: #{tpu_custom_call.1} parent=5 // pred_check_branch
        %403 = sbr.rel (%p401) target = $region52
      $region51: #{tpu_custom_call.1} parent=5 // pred_region
        // Predicated region
        $region53: #{tpu_custom_call.1} parent=51 // pred_check
          %p404 = pneg %p52
        $region54: #{tpu_custom_call.1} parent=51 // pred_check_branch
          %406 = sbr.rel (%p404) target = $region56
        $region55: #{tpu_custom_call.1} parent=51 // pred_region
          %s407 = sand.u32 %s42, 1
          %s408 = scalar_lea.sflag [#allocation3], %s407
          %s409 = sand.u32 %s42, 1
          %s410 = smul.addr %s409, 64
          %s411 = scalar_lea.vmem [#allocation2], %s410
          %413 = vsyncadd %s408, 0
          %s414 = smul.addr %s32, 8
          %s415 = smul.addr %s414, 8
          %s416 = scalar_lea.hbm %s0, %s415
          %s417 = sshll.u32 %s416, 4
          %s418 = int_to_ptr.hbm [resolvable:$true] %s417
          %s419 = sshll.u32 %s411, 4
          %s420 = int_to_ptr.vmem [resolvable:$true] %s419
          %425 = dma.hbm_to_vmem [thread:$0]  %s418, 1024, %s420, %s408, 128, 128, 8
        $region56: #{tpu_custom_call.1} parent=51 // pred_fallthru
          _
        // Predicated region
        $region57: #{tpu_custom_call.1} parent=51 // pred_check
          %p426 = pneg %p78
        $region58: #{tpu_custom_call.1} parent=51 // pred_check_branch
          %428 = sbr.rel (%p426) target = $region60
        $region59: #{tpu_custom_call.1} parent=51 // pred_region
          %s429 = sand.u32 %s32, 1
          %s430 = scalar_lea.sflag [#allocation6], %s429
          %s431 = sand.u32 %s68, 1
          %s432 = smul.addr %s431, 8
          %s433 = scalar_lea.vmem [#allocation5], %s432
          %435 = vsyncadd %s430, 0
          %s436 = smul.addr %s32, 8
          %s437 = scalar_lea.hbm %s1, %s436
          %s439 = sshll.u32 %s437, 4
          %s440 = int_to_ptr.hbm [resolvable:$true] %s439
          %s441 = sshll.u32 %s433, 4
          %s442 = int_to_ptr.vmem [resolvable:$true] %s441
          %444 = dma.hbm_to_vmem [thread:$0]  %s440, 128, %s442, %s430
        $region60: #{tpu_custom_call.1} parent=51 // pred_fallthru
          _
      $region52: #{tpu_custom_call.1} parent=5 // pred_fallthru
        _
      %p445 = scmp.le.s32.totalorder 1, %s32
      %p446 = scmp.lt.s32.totalorder %s32, 3
      %p447 = pnand %p445, %p446
      %p448 = pneg %p447
      // Predicated region
      $region61: #{tpu_custom_call.1} parent=5 // pred_check
        _
      $region62: #{tpu_custom_call.1} parent=5 // pred_check_branch
        %450 = sbr.rel (%p447) target = $region64
      $region63: #{tpu_custom_call.1} parent=5 // pred_region
        %s451 = ssub.s32 %s32, 1
        %s452 = sand.u32 %s45, 1
        %s453 = scalar_lea.sflag [#allocation3], %s452
        %s454 = sand.u32 %s45, 1
        %s455 = smul.addr %s454, 64
        %s456 = scalar_lea.vmem [#allocation2], %s455
        // Predicated region
        $region65: #{tpu_custom_call.1} parent=63 // pred_check
          %p457 = pneg %p58
        $region66: #{tpu_custom_call.1} parent=63 // pred_check_branch
          %459 = sbr.rel (%p457) target = $region68
        $region67: #{tpu_custom_call.1} parent=63 // pred_region
          %461 = dma.done %s453, 1024
        $region68: #{tpu_custom_call.1} parent=63 // pred_fallthru
          _
        %s462 = sand.u32 %s37, 1
        %s463 = scalar_lea.sflag [#allocation6], %s462
        %s464 = sand.u32 %s71, 1
        %s465 = smul.addr %s464, 8
        %s466 = scalar_lea.vmem [#allocation5], %s465
        // Predicated region
        $region69: #{tpu_custom_call.1} parent=63 // pred_check
          %p467 = pneg %p84
        $region70: #{tpu_custom_call.1} parent=63 // pred_check_branch
          %469 = sbr.rel (%p467) target = $region72
        $region71: #{tpu_custom_call.1} parent=63 // pred_region
          %471 = dma.done %s463, 128
        $region72: #{tpu_custom_call.1} parent=63 // pred_fallthru
          _
        // Predicated region
        $region73: #{tpu_custom_call.1} parent=63 // pred_check
          %p472 = pneg %p210
        $region74: #{tpu_custom_call.1} parent=63 // pred_check_branch
          %474 = sbr.rel (%p472) target = $region76
        $region75: #{tpu_custom_call.1} parent=63 // pred_region
          %476 = dma.done [#allocation6], 4096
        $region76: #{tpu_custom_call.1} parent=63 // pred_fallthru
          _
        // Predicated region
        $region77: #{tpu_custom_call.1} parent=63 // pred_check
          %p477 = pneg %p231
        $region78: #{tpu_custom_call.1} parent=63 // pred_check_branch
          %479 = sbr.rel (%p477) target = $region80
        $region79: #{tpu_custom_call.1} parent=63 // pred_region
          %481 = dma.done [#allocation9], 4096
        $region80: #{tpu_custom_call.1} parent=63 // pred_fallthru
          _
        // Predicated region
        $region81: #{tpu_custom_call.1} parent=63 // pred_check
          %p482 = pneg %p273
        $region82: #{tpu_custom_call.1} parent=63 // pred_check_branch
          %484 = sbr.rel (%p482) target = $region84
        $region83: #{tpu_custom_call.1} parent=63 // pred_region
          %486 = dma.done [#allocation9], 2048
        $region84: #{tpu_custom_call.1} parent=63 // pred_fallthru
          _
        %s487 = sand.u32 %s45, 1
        %s488 = scalar_lea.sflag [#allocation3], %s487
        %s489 = sand.u32 %s45, 1
        %s490 = smul.addr %s489, 64
        %s491 = scalar_lea.vmem [#allocation2], %s490
        %p492 = pneg %p58
        %p493 = pneg %p55
        %s494 = sand.u32 %s37, 1
        %s495 = scalar_lea.sflag [#allocation6], %s494
        %s496 = sand.u32 %s71, 1
        %s497 = smul.addr %s496, 8
        %s498 = scalar_lea.vmem [#allocation5], %s497
        %p499 = pneg %p84
        %p500 = pneg %p81
        %p501 = pneg %p105
        %p502 = pneg %p102
        %p503 = pneg %p126
        %p504 = pneg %p123
        %p505 = pneg %p147
        %p506 = pneg %p144
        %p507 = pneg %p168
        %p508 = pneg %p165
        %p509 = pneg %p189
        %p510 = pneg %p186
        %p511 = pneg %p210
        %p512 = pneg %p207
        %p513 = pneg %p231
        %p514 = pneg %p228
        %p515 = pneg %p252
        %p516 = pneg %p249
        %p517 = pneg %p273
        %p518 = pneg %p270
        %p519 = pneg %p299
        %p520 = pneg %p296
        %s521 = sand.u32 %s286, 1
        %s522 = scalar_lea.sflag [#allocation4], %s521
        %s523 = sand.u32 %s286, 1
        %s524 = smul.addr %s523, 64
        %s525 = scalar_lea.vmem [#allocation11], %s524
        %p526 = pneg %p325
        %p527 = pneg %p322
        %s528 = sand.u32 %s312, 1
        %s529 = scalar_lea.sflag [#allocation13], %s528
        %s530 = sand.u32 %s312, 1
        %s531 = smul.addr %s530, 8
        %s532 = scalar_lea.vmem [#allocation12], %s531
        %v534 = vld [vmem:[%s456] sm:$0xff]
        %v535 = vld [vmem:[%s456 + $0x8] sm:$0xff]
        %v536 = vld [vmem:[%s456 + $0x10] sm:$0xff]
        %v537 = vld [vmem:[%s456 + $0x18] sm:$0xff]
        %v538 = vld [vmem:[%s456 + $0x20] sm:$0xff]
        %v539 = vld [vmem:[%s456 + $0x28] sm:$0xff]
        %v540 = vld [vmem:[%s456 + $0x30] sm:$0xff]
        %v541 = vld [vmem:[%s456 + $0x38] sm:$0xff]
        %v542 = vld [vmem:[%s466] sm:$0xff]
        %v543 = vld [vmem:[%s3] sm:$0x1]
        %v544 = vld [vmem:[%s3 + $0x1] sm:$0x1]
        %545 = vadd.xlane.f32.xlu0 %v534
        %v546 = vpop.xlane.xlu0 %545
        %547 = vadd.xlane.f32.xlu0 %v535
        %v548 = vpop.xlane.xlu0 %547
        %549 = vadd.xlane.f32.xlu0 %v536
        %v550 = vpop.xlane.xlu0 %549
        %551 = vadd.xlane.f32.xlu0 %v537
        %v552 = vpop.xlane.xlu0 %551
        %553 = vadd.xlane.f32.xlu0 %v538
        %v554 = vpop.xlane.xlu0 %553
        %555 = vadd.xlane.f32.xlu0 %v539
        %v556 = vpop.xlane.xlu0 %555
        %557 = vadd.xlane.f32.xlu0 %v540
        %v558 = vpop.xlane.xlu0 %557
        %559 = vadd.xlane.f32.xlu0 %v541
        %v560 = vpop.xlane.xlu0 %559
        %v561 = vrcp.pop 128.0
        %v562 = vmul.f32 128.0, %v561
        %v563 = vsub.f32 1.0, %v562
        %v564 = vmul.f32 %v561, %v563
        %v565 = vadd.f32 %v561, %v564
        %vm566 = vweird.f32 %v561
        %v567 = vsel %vm566, %v561, %v565
        %v568 = vmul.f32 %v546, %v567
        %v569 = vmul.f32 %v548, %v567
        %v570 = vmul.f32 %v550, %v567
        %v571 = vmul.f32 %v552, %v567
        %v572 = vmul.f32 %v554, %v567
        %v573 = vmul.f32 %v556, %v567
        %v574 = vmul.f32 %v558, %v567
        %v575 = vmul.f32 %v560, %v567
        %v576 = vsub.f32 %v534, %v568
        %v577 = vsub.f32 %v535, %v569
        %v578 = vsub.f32 %v536, %v570
        %v579 = vsub.f32 %v537, %v571
        %v580 = vsub.f32 %v538, %v572
        %v581 = vsub.f32 %v539, %v573
        %v582 = vsub.f32 %v540, %v574
        %v583 = vsub.f32 %v541, %v575
        %v584 = vmul.f32 %v576, %v576
        %v585 = vmul.f32 %v577, %v577
        %v586 = vmul.f32 %v578, %v578
        %v587 = vmul.f32 %v579, %v579
        %v588 = vmul.f32 %v580, %v580
        %v589 = vmul.f32 %v581, %v581
        %v590 = vmul.f32 %v582, %v582
        %v591 = vmul.f32 %v583, %v583
        %592 = vadd.xlane.f32.xlu0 %v584
        %v593 = vpop.xlane.xlu0 %592
        %594 = vadd.xlane.f32.xlu0 %v585
        %v595 = vpop.xlane.xlu0 %594
        %596 = vadd.xlane.f32.xlu0 %v586
        %v597 = vpop.xlane.xlu0 %596
        %598 = vadd.xlane.f32.xlu0 %v587
        %v599 = vpop.xlane.xlu0 %598
        %600 = vadd.xlane.f32.xlu0 %v588
        %v601 = vpop.xlane.xlu0 %600
        %602 = vadd.xlane.f32.xlu0 %v589
        %v603 = vpop.xlane.xlu0 %602
        %604 = vadd.xlane.f32.xlu0 %v590
        %v605 = vpop.xlane.xlu0 %604
        %606 = vadd.xlane.f32.xlu0 %v591
        %v607 = vpop.xlane.xlu0 %606
        %v608 = vmul.f32 %v593, %v567
        %v609 = vmul.f32 %v595, %v567
        %v610 = vmul.f32 %v597, %v567
        %v611 = vmul.f32 %v599, %v567
        %v612 = vmul.f32 %v601, %v567
        %v613 = vmul.f32 %v603, %v567
        %v614 = vmul.f32 %v605, %v567
        %v615 = vmul.f32 %v607, %v567
        %v616 = vadd.f32 %v608, 1e-05
        %v617 = vadd.f32 %v609, 1e-05
        %v618 = vadd.f32 %v610, 1e-05
        %v619 = vadd.f32 %v611, 1e-05
        %v620 = vadd.f32 %v612, 1e-05
        %v621 = vadd.f32 %v613, 1e-05
        %v622 = vadd.f32 %v614, 1e-05
        %v623 = vadd.f32 %v615, 1e-05
        %v624 = vrsqrt.pop %v616
        %v625 = vmul.f32 %v624, %v616
        %v626 = vmul.f32 %v625, %v624
        %v627 = vmul.f32 0.5, %v626
        %v628 = vsub.f32 1.5, %v627
        %v629 = vmul.f32 %v624, %v628
        %vm630 = vweird.f32 %v616
        %vm631 = vweird.f32 %v624
        %vm632 = vmor %vm630, %vm631
        %v633 = vsel %vm632, %v624, %v629
        %v634 = vrsqrt.pop %v617
        %v635 = vmul.f32 %v634, %v617
        %v636 = vmul.f32 %v635, %v634
        %v637 = vmul.f32 0.5, %v636
        %v638 = vsub.f32 1.5, %v637
        %v639 = vmul.f32 %v634, %v638
        %vm640 = vweird.f32 %v617
        %vm641 = vweird.f32 %v634
        %vm642 = vmor %vm640, %vm641
        %v643 = vsel %vm642, %v634, %v639
        %v644 = vrsqrt.pop %v618
        %v645 = vmul.f32 %v644, %v618
        %v646 = vmul.f32 %v645, %v644
        %v647 = vmul.f32 0.5, %v646
        %v648 = vsub.f32 1.5, %v647
        %v649 = vmul.f32 %v644, %v648
        %vm650 = vweird.f32 %v618
        %vm651 = vweird.f32 %v644
        %vm652 = vmor %vm650, %vm651
        %v653 = vsel %vm652, %v644, %v649
        %v654 = vrsqrt.pop %v619
        %v655 = vmul.f32 %v654, %v619
        %v656 = vmul.f32 %v655, %v654
        %v657 = vmul.f32 0.5, %v656
        %v658 = vsub.f32 1.5, %v657
        %v659 = vmul.f32 %v654, %v658
        %vm660 = vweird.f32 %v619
        %vm661 = vweird.f32 %v654
        %vm662 = vmor %vm660, %vm661
        %v663 = vsel %vm662, %v654, %v659
        %v664 = vrsqrt.pop %v620
        %v665 = vmul.f32 %v664, %v620
        %v666 = vmul.f32 %v665, %v664
        %v667 = vmul.f32 0.5, %v666
        %v668 = vsub.f32 1.5, %v667
        %v669 = vmul.f32 %v664, %v668
        %vm670 = vweird.f32 %v620
        %vm671 = vweird.f32 %v664
        %vm672 = vmor %vm670, %vm671
        %v673 = vsel %vm672, %v664, %v669
        %v674 = vrsqrt.pop %v621
        %v675 = vmul.f32 %v674, %v621
        %v676 = vmul.f32 %v675, %v674
        %v677 = vmul.f32 0.5, %v676
        %v678 = vsub.f32 1.5, %v677
        %v679 = vmul.f32 %v674, %v678
        %vm680 = vweird.f32 %v621
        %vm681 = vweird.f32 %v674
        %vm682 = vmor %vm680, %vm681
        %v683 = vsel %vm682, %v674, %v679
        %v684 = vrsqrt.pop %v622
        %v685 = vmul.f32 %v684, %v622
        %v686 = vmul.f32 %v685, %v684
        %v687 = vmul.f32 0.5, %v686
        %v688 = vsub.f32 1.5, %v687
        %v689 = vmul.f32 %v684, %v688
        %vm690 = vweird.f32 %v622
        %vm691 = vweird.f32 %v684
        %vm692 = vmor %vm690, %vm691
        %v693 = vsel %vm692, %v684, %v689
        %v694 = vrsqrt.pop %v623
        %v695 = vmul.f32 %v694, %v623
        %v696 = vmul.f32 %v695, %v694
        %v697 = vmul.f32 0.5, %v696
        %v698 = vsub.f32 1.5, %v697
        %v699 = vmul.f32 %v694, %v698
        %vm700 = vweird.f32 %v623
        %vm701 = vweird.f32 %v694
        %vm702 = vmor %vm700, %vm701
        %v703 = vsel %vm702, %v694, %v699
        %v704 = vmul.f32 %v576, %v633
        %v705 = vmul.f32 %v577, %v643
        %v706 = vmul.f32 %v578, %v653
        %v707 = vmul.f32 %v579, %v663
        %v708 = vmul.f32 %v580, %v673
        %v709 = vmul.f32 %v581, %v683
        %v710 = vmul.f32 %v582, %v693
        %v711 = vmul.f32 %v583, %v703
        %v712 = vperm.slane %v543, 0
        %v713 = vmul.f32 %v704, %v712
        %v714 = vmul.f32 %v705, %v712
        %v715 = vmul.f32 %v706, %v712
        %v716 = vmul.f32 %v707, %v712
        %v717 = vmul.f32 %v708, %v712
        %v718 = vmul.f32 %v709, %v712
        %v719 = vmul.f32 %v710, %v712
        %v720 = vmul.f32 %v711, %v712
        %v721 = vperm.slane %v544, 0
        %v722 = vadd.f32 %v713, %v721
        %v723 = vadd.f32 %v714, %v721
        %v724 = vadd.f32 %v715, %v721
        %v725 = vadd.f32 %v716, %v721
        %v726 = vadd.f32 %v717, %v721
        %v727 = vadd.f32 %v718, %v721
        %v728 = vadd.f32 %v719, %v721
        %v729 = vadd.f32 %v720, %v721
        %v730 = vld [vmem:[%s3 + $0x4] sm:$0x1]
        %v731 = vld [vmem:[%s3 + $0x5] sm:$0x1]
        %732 = vadd.xlane.f32.xlu0 %v542
        %v733 = vpop.xlane.xlu0 %732
        %v734 = vmul.f32 %v733, %v567
        %v735 = vsub.f32 %v542, %v734
        %v736 = vmul.f32 %v735, %v735
        %737 = vadd.xlane.f32.xlu0 %v736
        %v738 = vpop.xlane.xlu0 %737
        %v739 = vmul.f32 %v738, %v567
        %v740 = vadd.f32 %v739, 1e-05
        %v741 = vrsqrt.pop %v740
        %v742 = vmul.f32 %v741, %v740
        %v743 = vmul.f32 %v742, %v741
        %v744 = vmul.f32 0.5, %v743
        %v745 = vsub.f32 1.5, %v744
        %v746 = vmul.f32 %v741, %v745
        %vm747 = vweird.f32 %v740
        %vm748 = vweird.f32 %v741
        %vm749 = vmor %vm747, %vm748
        %v750 = vsel %vm749, %v741, %v746
        %v751 = vmul.f32 %v735, %v750
        %v752 = vperm.slane %v730, 0
        %v753 = vmul.f32 %v751, %v752
        %v754 = vperm.slane %v731, 0
        %v755 = vadd.f32 %v753, %v754
        %v756 = vld [vmem:[%s2] sm:$0xf]
        %v757 = vld [vmem:[%s2 + $0x4] sm:$0xf]
        %v758 = vld [vmem:[%s2 + $0x8] sm:$0xf]
        %v759 = vld [vmem:[%s2 + $0xc] sm:$0xf]
        %v760 = vld [vmem:[%s2 + $0x10] sm:$0xf]
        %v761 = vld [vmem:[%s2 + $0x14] sm:$0xf]
        %v762 = vld [vmem:[%s2 + $0x18] sm:$0xf]
        %v763 = vld [vmem:[%s2 + $0x1c] sm:$0xf]
        %v764 = vld [vmem:[%s2 + $0x20] sm:$0xf]
        %v765 = vld [vmem:[%s2 + $0x24] sm:$0xf]
        %v766 = vld [vmem:[%s2 + $0x28] sm:$0xf]
        %v767 = vld [vmem:[%s2 + $0x2c] sm:$0xf]
        %v768 = vld [vmem:[%s2 + $0x30] sm:$0xf]
        %v769 = vld [vmem:[%s2 + $0x34] sm:$0xf]
        %v770 = vld [vmem:[%s2 + $0x38] sm:$0xf]
        %v771 = vld [vmem:[%s2 + $0x3c] sm:$0xf]
        %v772 = vld [vmem:[%s3 + $0xc] sm:$0x1]
        %s773 = scalar_lea.vmem %s2, 64
        %v774 = vld [vmem:[%s773] sm:$0xf]
        %v775 = vld [vmem:[%s773 + $0x4] sm:$0xf]
        %v776 = vld [vmem:[%s773 + $0x8] sm:$0xf]
        %v777 = vld [vmem:[%s773 + $0xc] sm:$0xf]
        %v778 = vld [vmem:[%s773 + $0x10] sm:$0xf]
        %v779 = vld [vmem:[%s773 + $0x14] sm:$0xf]
        %v780 = vld [vmem:[%s773 + $0x18] sm:$0xf]
        %v781 = vld [vmem:[%s773 + $0x1c] sm:$0xf]
        %v782 = vld [vmem:[%s773 + $0x20] sm:$0xf]
        %v783 = vld [vmem:[%s773 + $0x24] sm:$0xf]
        %v784 = vld [vmem:[%s773 + $0x28] sm:$0xf]
        %v785 = vld [vmem:[%s773 + $0x2c] sm:$0xf]
        %v786 = vld [vmem:[%s773 + $0x30] sm:$0xf]
        %v787 = vld [vmem:[%s773 + $0x34] sm:$0xf]
        %v788 = vld [vmem:[%s773 + $0x38] sm:$0xf]
        %v789 = vld [vmem:[%s773 + $0x3c] sm:$0xf]
        %v790 = vld [vmem:[%s3 + $0xd] sm:$0x1]
        %s791 = scalar_lea.vmem %s2, 128
        %v792 = vld [vmem:[%s791] sm:$0xf]
        %v793 = vld [vmem:[%s791 + $0x4] sm:$0xf]
        %v794 = vld [vmem:[%s791 + $0x8] sm:$0xf]
        %v795 = vld [vmem:[%s791 + $0xc] sm:$0xf]
        %v796 = vld [vmem:[%s791 + $0x10] sm:$0xf]
        %v797 = vld [vmem:[%s791 + $0x14] sm:$0xf]
        %v798 = vld [vmem:[%s791 + $0x18] sm:$0xf]
        %v799 = vld [vmem:[%s791 + $0x1c] sm:$0xf]
        %v800 = vld [vmem:[%s791 + $0x20] sm:$0xf]
        %v801 = vld [vmem:[%s791 + $0x24] sm:$0xf]
        %v802 = vld [vmem:[%s791 + $0x28] sm:$0xf]
        %v803 = vld [vmem:[%s791 + $0x2c] sm:$0xf]
        %v804 = vld [vmem:[%s791 + $0x30] sm:$0xf]
        %v805 = vld [vmem:[%s791 + $0x34] sm:$0xf]
        %v806 = vld [vmem:[%s791 + $0x38] sm:$0xf]
        %v807 = vld [vmem:[%s791 + $0x3c] sm:$0xf]
        %v808 = vld [vmem:[%s3 + $0xe] sm:$0x1]
        %v809 = vpack.c.bf16 %v755, %v755
        %v810 = vperm.slane %v772, 0
        %v827 = vunpack.c.l.b16 %v756
        %v828 = vunpack.c.l.b16 %v757
        %v829 = vunpack.c.l.b16 %v758
        %v830 = vunpack.c.l.b16 %v759
        %v831 = vunpack.c.l.b16 %v760
        %v832 = vunpack.c.l.b16 %v761
        %v833 = vunpack.c.l.b16 %v762
        %v834 = vunpack.c.l.b16 %v763
        %v835 = vunpack.c.l.b16 %v764
        %v836 = vunpack.c.l.b16 %v765
        %v837 = vunpack.c.l.b16 %v766
        %v838 = vunpack.c.l.b16 %v767
        %v839 = vunpack.c.l.b16 %v768
        %v840 = vunpack.c.l.b16 %v769
        %v841 = vunpack.c.l.b16 %v770
        %v842 = vunpack.c.l.b16 %v771
        %v843 = vpack.c.b16 %v828, %v827
        %v844 = vpack.c.b16 %v830, %v829
        %v845 = vpack.c.b16 %v832, %v831
        %v846 = vpack.c.b16 %v834, %v833
        %v847 = vpack.c.b16 %v836, %v835
        %v848 = vpack.c.b16 %v838, %v837
        %v849 = vpack.c.b16 %v840, %v839
        %v850 = vpack.c.b16 %v842, %v841
        %859 = vmatpush.bf16.msra.mxu0 %v850
        %860 = vmatpush.bf16.msra.mxu0 %v849
        %861 = vmatpush.bf16.msra.mxu0 %v848
        %862 = vmatpush.bf16.msra.mxu0 %v847
        %863 = vmatpush.bf16.msra.mxu0 %v846
        %864 = vmatpush.bf16.msra.mxu0 %v845
        %865 = vmatpush.bf16.msra.mxu0 %v844
        %866 = vmatpush.bf16.msra.mxu0 %v843
        %867 = vmatmul.bf16.gmra.mxu0 %v809
        %v868 = vpop.f32.mrf.mxu0
        %v869 = vadd.f32 %v810, %v868
        %v870 = vpop.f32.mrf.mxu0
        %871 = vdwg.mxu0
        %v872 = vperm.slane %v790, 0
        %v889 = vunpack.c.l.b16 %v774
        %v890 = vunpack.c.l.b16 %v775
        %v891 = vunpack.c.l.b16 %v776
        %v892 = vunpack.c.l.b16 %v777
        %v893 = vunpack.c.l.b16 %v778
        %v894 = vunpack.c.l.b16 %v779
        %v895 = vunpack.c.l.b16 %v780
        %v896 = vunpack.c.l.b16 %v781
        %v897 = vunpack.c.l.b16 %v782
        %v898 = vunpack.c.l.b16 %v783
        %v899 = vunpack.c.l.b16 %v784
        %v900 = vunpack.c.l.b16 %v785
        %v901 = vunpack.c.l.b16 %v786
        %v902 = vunpack.c.l.b16 %v787
        %v903 = vunpack.c.l.b16 %v788
        %v904 = vunpack.c.l.b16 %v789
        %v905 = vpack.c.b16 %v890, %v889
        %v906 = vpack.c.b16 %v892, %v891
        %v907 = vpack.c.b16 %v894, %v893
        %v908 = vpack.c.b16 %v896, %v895
        %v909 = vpack.c.b16 %v898, %v897
        %v910 = vpack.c.b16 %v900, %v899
        %v911 = vpack.c.b16 %v902, %v901
        %v912 = vpack.c.b16 %v904, %v903
        %921 = vmatpush.bf16.msra.mxu0 %v912
        %922 = vmatpush.bf16.msra.mxu0 %v911
        %923 = vmatpush.bf16.msra.mxu0 %v910
        %924 = vmatpush.bf16.msra.mxu0 %v909
        %925 = vmatpush.bf16.msra.mxu0 %v908
        %926 = vmatpush.bf16.msra.mxu0 %v907
        %927 = vmatpush.bf16.msra.mxu0 %v906
        %928 = vmatpush.bf16.msra.mxu0 %v905
        %929 = vmatmul.bf16.gmra.mxu0 %v809
        %v930 = vpop.f32.mrf.mxu0
        %v931 = vadd.f32 %v872, %v930
        %v932 = vpop.f32.mrf.mxu0
        %933 = vdwg.mxu0
        %v934 = vperm.slane %v808, 0
        %v951 = vunpack.c.l.b16 %v792
        %v952 = vunpack.c.l.b16 %v793
        %v953 = vunpack.c.l.b16 %v794
        %v954 = vunpack.c.l.b16 %v795
        %v955 = vunpack.c.l.b16 %v796
        %v956 = vunpack.c.l.b16 %v797
        %v957 = vunpack.c.l.b16 %v798
        %v958 = vunpack.c.l.b16 %v799
        %v959 = vunpack.c.l.b16 %v800
        %v960 = vunpack.c.l.b16 %v801
        %v961 = vunpack.c.l.b16 %v802
        %v962 = vunpack.c.l.b16 %v803
        %v963 = vunpack.c.l.b16 %v804
        %v964 = vunpack.c.l.b16 %v805
        %v965 = vunpack.c.l.b16 %v806
        %v966 = vunpack.c.l.b16 %v807
        %v967 = vpack.c.b16 %v952, %v951
        %v968 = vpack.c.b16 %v954, %v953
        %v969 = vpack.c.b16 %v956, %v955
        %v970 = vpack.c.b16 %v958, %v957
        %v971 = vpack.c.b16 %v960, %v959
        %v972 = vpack.c.b16 %v962, %v961
        %v973 = vpack.c.b16 %v964, %v963
        %v974 = vpack.c.b16 %v966, %v965
        %983 = vmatpush.bf16.msra.mxu0 %v974
        %984 = vmatpush.bf16.msra.mxu0 %v973
        %985 = vmatpush.bf16.msra.mxu0 %v972
        %986 = vmatpush.bf16.msra.mxu0 %v971
        %987 = vmatpush.bf16.msra.mxu0 %v970
        %988 = vmatpush.bf16.msra.mxu0 %v969
        %989 = vmatpush.bf16.msra.mxu0 %v968
        %990 = vmatpush.bf16.msra.mxu0 %v967
        %991 = vmatmul.bf16.gmra.mxu0 %v809
        %v992 = vpop.f32.mrf.mxu0
        %v993 = vadd.f32 %v934, %v992
        %v994 = vpop.f32.mrf.mxu0
        %995 = vdwg.mxu0
        %v996 = vmul.f32 %v869, 0.17677669
        %v997 = vpack.c.bf16 %v996, %v996
        %v998 = vpack.c.bf16 %v931, %v931
        %v999 = vpack.c.bf16 %v993, %v993
        %vm1000 = vcmask 261120
        %v1002 = vsel %vm1000, %v997, 0
        %v1005 = vsel %vm1000, %v998, 0
        %1007 = vmatpush.bf16.xpose.msra.mxu0 0
        %1008 = vmatpush.bf16.xpose.msra.mxu0 0
        %1009 = vmatpush.bf16.xpose.msra.mxu0 0
        %1010 = vmatpush.bf16.xpose.msra.mxu0 0
        %1011 = vmatpush.bf16.xpose.msra.mxu0 0
        %1012 = vmatpush.bf16.xpose.msra.mxu0 0
        %1013 = vmatpush.bf16.xpose.msra.mxu0 0
        %1014 = vmatpush.bf16.xpose.msra.mxu0 %v1005
        %1015 = vmatmul.bf16.gmra.mxu0 %v1002
        %v1016 = vpop.f32.mrf.mxu0
        %v1017 = vadd.f32 0.0, %v1016
        %v1018 = vpop.f32.mrf.mxu0
        %1019 = vdwg.mxu0
        %vm1020 = vcmask 64512
        %v1021 = vsel %vm1020, %v1017, -inf
        %1022 = vmax.xlane.f32.xlu0 %v1021
        %v1023 = vpop.xlane.xlu0 %1022
        %v1024 = vsub.f32 %v1017, %v1023
        %v1025 = vmul.f32 %v1024, 1.442695
        %v1026 = vpow.pop %v1025
        %v1027 = vsel %vm1020, %v1026, 0.0
        %1028 = vadd.xlane.f32.xlu0 %v1027
        %v1029 = vpop.xlane.xlu0 %1028
        %v1030 = vrcp.pop %v1029
        %v1031 = vmul.f32 %v1026, %v1030
        %v1032 = vpack.c.bf16 %v1031, %v1031
        %v1034 = vsel %vm1020, %v1032, 0
        %vm1036 = vcmask 1043456
        %v1038 = vsel %vm1036, %v999, 0
        %1040 = vmatpush.bf16.msra.mxu0 0
        %1041 = vmatpush.bf16.msra.mxu0 0
        %1042 = vmatpush.bf16.msra.mxu0 0
        %1043 = vmatpush.bf16.msra.mxu0 0
        %1044 = vmatpush.bf16.msra.mxu0 0
        %1045 = vmatpush.bf16.msra.mxu0 0
        %1046 = vmatpush.bf16.msra.mxu0 0
        %1047 = vmatpush.bf16.msra.mxu0 %v1038
        %1048 = vmatmul.bf16.gmra.mxu0 %v1034
        %v1049 = vpop.f32.mrf.mxu0
        %v1050 = vadd.f32 0.0, %v1049
        %v1051 = vpop.f32.mrf.mxu0
        %1052 = vdwg.mxu0
        %1054 = vrot.lane.b32.xlu0 %v997, 96
        %v1055 = vpop.permute.xlu0 %1054
        %1057 = vrot.lane.b32.xlu0 %v998, 96
        %v1058 = vpop.permute.xlu0 %1057
        %v1060 = vsel %vm1000, %v1055, 0
        %v1063 = vsel %vm1000, %v1058, 0
        %1065 = vmatpush.bf16.xpose.msra.mxu0 0
        %1066 = vmatpush.bf16.xpose.msra.mxu0 0
        %1067 = vmatpush.bf16.xpose.msra.mxu0 0
        %1068 = vmatpush.bf16.xpose.msra.mxu0 0
        %1069 = vmatpush.bf16.xpose.msra.mxu0 0
        %1070 = vmatpush.bf16.xpose.msra.mxu0 0
        %1071 = vmatpush.bf16.xpose.msra.mxu0 0
        %1072 = vmatpush.bf16.xpose.msra.mxu0 %v1063
        %1073 = vmatmul.bf16.gmra.mxu0 %v1060
        %v1074 = vpop.f32.mrf.mxu0
        %v1075 = vadd.f32 0.0, %v1074
        %v1076 = vpop.f32.mrf.mxu0
        %1077 = vdwg.mxu0
        %v1078 = vsel %vm1020, %v1075, -inf
        %1079 = vmax.xlane.f32.xlu0 %v1078
        %v1080 = vpop.xlane.xlu0 %1079
        %v1081 = vsub.f32 %v1075, %v1080
        %v1082 = vmul.f32 %v1081, 1.442695
        %v1083 = vpow.pop %v1082
        %v1084 = vsel %vm1020, %v1083, 0.0
        %1085 = vadd.xlane.f32.xlu0 %v1084
        %v1086 = vpop.xlane.xlu0 %1085
        %v1087 = vrcp.pop %v1086
        %v1088 = vmul.f32 %v1083, %v1087
        %v1089 = vpack.c.bf16 %v1088, %v1088
        %1091 = vrot.lane.b32.xlu0 %v999, 96
        %v1092 = vpop.permute.xlu0 %1091
        %v1094 = vsel %vm1020, %v1089, 0
        %v1097 = vsel %vm1036, %v1092, 0
        %1099 = vmatpush.bf16.msra.mxu0 0
        %1100 = vmatpush.bf16.msra.mxu0 0
        %1101 = vmatpush.bf16.msra.mxu0 0
        %1102 = vmatpush.bf16.msra.mxu0 0
        %1103 = vmatpush.bf16.msra.mxu0 0
        %1104 = vmatpush.bf16.msra.mxu0 0
        %1105 = vmatpush.bf16.msra.mxu0 0
        %1106 = vmatpush.bf16.msra.mxu0 %v1097
        %1107 = vmatmul.bf16.gmra.mxu0 %v1094
        %v1108 = vpop.f32.mrf.mxu0
        %v1109 = vadd.f32 0.0, %v1108
        %v1110 = vpop.f32.mrf.mxu0
        %1111 = vdwg.mxu0
        %1112 = vrot.lane.b32.xlu0 %v997, 64
        %v1113 = vpop.permute.xlu0 %1112
        %1114 = vrot.lane.b32.xlu0 %v998, 64
        %v1115 = vpop.permute.xlu0 %1114
        %v1117 = vsel %vm1000, %v1113, 0
        %v1120 = vsel %vm1000, %v1115, 0
        %1122 = vmatpush.bf16.xpose.msra.mxu0 0
        %1123 = vmatpush.bf16.xpose.msra.mxu0 0
        %1124 = vmatpush.bf16.xpose.msra.mxu0 0
        %1125 = vmatpush.bf16.xpose.msra.mxu0 0
        %1126 = vmatpush.bf16.xpose.msra.mxu0 0
        %1127 = vmatpush.bf16.xpose.msra.mxu0 0
        %1128 = vmatpush.bf16.xpose.msra.mxu0 0
        %1129 = vmatpush.bf16.xpose.msra.mxu0 %v1120
        %1130 = vmatmul.bf16.gmra.mxu0 %v1117
        %v1131 = vpop.f32.mrf.mxu0
        %v1132 = vadd.f32 0.0, %v1131
        %v1133 = vpop.f32.mrf.mxu0
        %1134 = vdwg.mxu0
        %v1135 = vsel %vm1020, %v1132, -inf
        %1136 = vmax.xlane.f32.xlu0 %v1135
        %v1137 = vpop.xlane.xlu0 %1136
        %v1138 = vsub.f32 %v1132, %v1137
        %v1139 = vmul.f32 %v1138, 1.442695
        %v1140 = vpow.pop %v1139
        %v1141 = vsel %vm1020, %v1140, 0.0
        %1142 = vadd.xlane.f32.xlu0 %v1141
        %v1143 = vpop.xlane.xlu0 %1142
        %v1144 = vrcp.pop %v1143
        %v1145 = vmul.f32 %v1140, %v1144
        %v1146 = vpack.c.bf16 %v1145, %v1145
        %1147 = vrot.lane.b32.xlu0 %v999, 64
        %v1148 = vpop.permute.xlu0 %1147
        %v1150 = vsel %vm1020, %v1146, 0
        %v1153 = vsel %vm1036, %v1148, 0
        %1155 = vmatpush.bf16.msra.mxu0 0
        %1156 = vmatpush.bf16.msra.mxu0 0
        %1157 = vmatpush.bf16.msra.mxu0 0
        %1158 = vmatpush.bf16.msra.mxu0 0
        %1159 = vmatpush.bf16.msra.mxu0 0
        %1160 = vmatpush.bf16.msra.mxu0 0
        %1161 = vmatpush.bf16.msra.mxu0 0
        %1162 = vmatpush.bf16.msra.mxu0 %v1153
        %1163 = vmatmul.bf16.gmra.mxu0 %v1150
        %v1164 = vpop.f32.mrf.mxu0
        %v1165 = vadd.f32 0.0, %v1164
        %v1166 = vpop.f32.mrf.mxu0
        %1167 = vdwg.mxu0
        %1168 = vrot.lane.b32.xlu0 %v997, 32
        %v1169 = vpop.permute.xlu0 %1168
        %1170 = vrot.lane.b32.xlu0 %v998, 32
        %v1171 = vpop.permute.xlu0 %1170
        %v1173 = vsel %vm1000, %v1169, 0
        %v1176 = vsel %vm1000, %v1171, 0
        %1178 = vmatpush.bf16.xpose.msra.mxu0 0
        %1179 = vmatpush.bf16.xpose.msra.mxu0 0
        %1180 = vmatpush.bf16.xpose.msra.mxu0 0
        %1181 = vmatpush.bf16.xpose.msra.mxu0 0
        %1182 = vmatpush.bf16.xpose.msra.mxu0 0
        %1183 = vmatpush.bf16.xpose.msra.mxu0 0
        %1184 = vmatpush.bf16.xpose.msra.mxu0 0
        %1185 = vmatpush.bf16.xpose.msra.mxu0 %v1176
        %1186 = vmatmul.bf16.gmra.mxu0 %v1173
        %v1187 = vpop.f32.mrf.mxu0
        %v1188 = vadd.f32 0.0, %v1187
        %v1189 = vpop.f32.mrf.mxu0
        %1190 = vdwg.mxu0
        %v1191 = vsel %vm1020, %v1188, -inf
        %1192 = vmax.xlane.f32.xlu0 %v1191
        %v1193 = vpop.xlane.xlu0 %1192
        %v1194 = vsub.f32 %v1188, %v1193
        %v1195 = vmul.f32 %v1194, 1.442695
        %v1196 = vpow.pop %v1195
        %v1197 = vsel %vm1020, %v1196, 0.0
        %1198 = vadd.xlane.f32.xlu0 %v1197
        %v1199 = vpop.xlane.xlu0 %1198
        %v1200 = vrcp.pop %v1199
        %v1201 = vmul.f32 %v1196, %v1200
        %v1202 = vpack.c.bf16 %v1201, %v1201
        %1203 = vrot.lane.b32.xlu0 %v999, 32
        %v1204 = vpop.permute.xlu0 %1203
        %v1206 = vsel %vm1020, %v1202, 0
        %v1209 = vsel %vm1036, %v1204, 0
        %1211 = vmatpush.bf16.msra.mxu0 0
        %1212 = vmatpush.bf16.msra.mxu0 0
        %1213 = vmatpush.bf16.msra.mxu0 0
        %1214 = vmatpush.bf16.msra.mxu0 0
        %1215 = vmatpush.bf16.msra.mxu0 0
        %1216 = vmatpush.bf16.msra.mxu0 0
        %1217 = vmatpush.bf16.msra.mxu0 0
        %1218 = vmatpush.bf16.msra.mxu0 %v1209
        %1219 = vmatmul.bf16.gmra.mxu0 %v1206
        %v1220 = vpop.f32.mrf.mxu0
        %v1221 = vadd.f32 0.0, %v1220
        %v1222 = vpop.f32.mrf.mxu0
        %1223 = vdwg.mxu0
        %1225 = vrot.lane.b32.xlu0 %v1109, 32
        %v1226 = vpop.permute.xlu0 %1225
        %1229 = vrot.lane.b32.xlu0 %v1165, 64
        %v1230 = vpop.permute.xlu0 %1229
        %1233 = vrot.lane.b32.xlu0 %v1221, 96
        %v1234 = vpop.permute.xlu0 %1233
        %v1236 = vsel %vm1000, %v1050, %v1226
        %vm1237 = vcmask 523264
        %v1238 = vsel %vm1237, %v1236, %v1230
        %vm1239 = vcmask 785408
        %v1240 = vsel %vm1239, %v1238, %v1234
        %v1241 = vadd.f32 %v542, %v1240
        %v1242 = vld [vmem:[%s3 + $0x6] sm:$0x1]
        %v1243 = vld [vmem:[%s3 + $0x7] sm:$0x1]
        %1244 = vadd.xlane.f32.xlu0 %v1241
        %v1245 = vpop.xlane.xlu0 %1244
        %v1246 = vmul.f32 %v1245, %v567
        %v1247 = vsub.f32 %v1241, %v1246
        %v1248 = vmul.f32 %v1247, %v1247
        %1249 = vadd.xlane.f32.xlu0 %v1248
        %v1250 = vpop.xlane.xlu0 %1249
        %v1251 = vmul.f32 %v1250, %v567
        %v1252 = vadd.f32 %v1251, 1e-05
        %v1253 = vrsqrt.pop %v1252
        %v1254 = vmul.f32 %v1253, %v1252
        %v1255 = vmul.f32 %v1254, %v1253
        %v1256 = vmul.f32 0.5, %v1255
        %v1257 = vsub.f32 1.5, %v1256
        %v1258 = vmul.f32 %v1253, %v1257
        %vm1259 = vweird.f32 %v1252
        %vm1260 = vweird.f32 %v1253
        %vm1261 = vmor %vm1259, %vm1260
        %v1262 = vsel %vm1261, %v1253, %v1258
        %v1263 = vmul.f32 %v1247, %v1262
        %v1264 = vperm.slane %v1242, 0
        %v1265 = vmul.f32 %v1263, %v1264
        %v1266 = vperm.slane %v1243, 0
        %v1267 = vadd.f32 %v1265, %v1266
        %s1268 = scalar_lea.vmem %s2, 192
        %v1269 = vld [vmem:[%s1268] sm:$0xf]
        %v1270 = vld [vmem:[%s1268 + $0x4] sm:$0xf]
        %v1271 = vld [vmem:[%s1268 + $0x8] sm:$0xf]
        %v1272 = vld [vmem:[%s1268 + $0xc] sm:$0xf]
        %v1273 = vld [vmem:[%s1268 + $0x10] sm:$0xf]
        %v1274 = vld [vmem:[%s1268 + $0x14] sm:$0xf]
        %v1275 = vld [vmem:[%s1268 + $0x18] sm:$0xf]
        %v1276 = vld [vmem:[%s1268 + $0x1c] sm:$0xf]
        %v1277 = vld [vmem:[%s1268 + $0x20] sm:$0xf]
        %v1278 = vld [vmem:[%s1268 + $0x24] sm:$0xf]
        %v1279 = vld [vmem:[%s1268 + $0x28] sm:$0xf]
        %v1280 = vld [vmem:[%s1268 + $0x2c] sm:$0xf]
        %v1281 = vld [vmem:[%s1268 + $0x30] sm:$0xf]
        %v1282 = vld [vmem:[%s1268 + $0x34] sm:$0xf]
        %v1283 = vld [vmem:[%s1268 + $0x38] sm:$0xf]
        %v1284 = vld [vmem:[%s1268 + $0x3c] sm:$0xf]
        %v1285 = vld [vmem:[%s3 + $0xf] sm:$0x1]
        %s1286 = scalar_lea.vmem %s2, 256
        %v1287 = vld [vmem:[%s1286] sm:$0xf]
        %v1288 = vld [vmem:[%s1286 + $0x4] sm:$0xf]
        %v1289 = vld [vmem:[%s1286 + $0x8] sm:$0xf]
        %v1290 = vld [vmem:[%s1286 + $0xc] sm:$0xf]
        %v1291 = vld [vmem:[%s1286 + $0x10] sm:$0xf]
        %v1292 = vld [vmem:[%s1286 + $0x14] sm:$0xf]
        %v1293 = vld [vmem:[%s1286 + $0x18] sm:$0xf]
        %v1294 = vld [vmem:[%s1286 + $0x1c] sm:$0xf]
        %v1295 = vld [vmem:[%s1286 + $0x20] sm:$0xf]
        %v1296 = vld [vmem:[%s1286 + $0x24] sm:$0xf]
        %v1297 = vld [vmem:[%s1286 + $0x28] sm:$0xf]
        %v1298 = vld [vmem:[%s1286 + $0x2c] sm:$0xf]
        %v1299 = vld [vmem:[%s1286 + $0x30] sm:$0xf]
        %v1300 = vld [vmem:[%s1286 + $0x34] sm:$0xf]
        %v1301 = vld [vmem:[%s1286 + $0x38] sm:$0xf]
        %v1302 = vld [vmem:[%s1286 + $0x3c] sm:$0xf]
        %v1303 = vld [vmem:[%s3 + $0x10] sm:$0x1]
        %s1304 = scalar_lea.vmem %s2, 320
        %v1305 = vld [vmem:[%s1304] sm:$0xf]
        %v1306 = vld [vmem:[%s1304 + $0x4] sm:$0xf]
        %v1307 = vld [vmem:[%s1304 + $0x8] sm:$0xf]
        %v1308 = vld [vmem:[%s1304 + $0xc] sm:$0xf]
        %v1309 = vld [vmem:[%s1304 + $0x10] sm:$0xf]
        %v1310 = vld [vmem:[%s1304 + $0x14] sm:$0xf]
        %v1311 = vld [vmem:[%s1304 + $0x18] sm:$0xf]
        %v1312 = vld [vmem:[%s1304 + $0x1c] sm:$0xf]
        %v1313 = vld [vmem:[%s1304 + $0x20] sm:$0xf]
        %v1314 = vld [vmem:[%s1304 + $0x24] sm:$0xf]
        %v1315 = vld [vmem:[%s1304 + $0x28] sm:$0xf]
        %v1316 = vld [vmem:[%s1304 + $0x2c] sm:$0xf]
        %v1317 = vld [vmem:[%s1304 + $0x30] sm:$0xf]
        %v1318 = vld [vmem:[%s1304 + $0x34] sm:$0xf]
        %v1319 = vld [vmem:[%s1304 + $0x38] sm:$0xf]
        %v1320 = vld [vmem:[%s1304 + $0x3c] sm:$0xf]
        %v1321 = vld [vmem:[%s3 + $0x11] sm:$0x1]
        %v1322 = vpack.c.bf16 %v1267, %v1267
        %v1323 = vperm.slane %v1285, 0
        %v1340 = vunpack.c.l.b16 %v1269
        %v1341 = vunpack.c.l.b16 %v1270
        %v1342 = vunpack.c.l.b16 %v1271
        %v1343 = vunpack.c.l.b16 %v1272
        %v1344 = vunpack.c.l.b16 %v1273
        %v1345 = vunpack.c.l.b16 %v1274
        %v1346 = vunpack.c.l.b16 %v1275
        %v1347 = vunpack.c.l.b16 %v1276
        %v1348 = vunpack.c.l.b16 %v1277
        %v1349 = vunpack.c.l.b16 %v1278
        %v1350 = vunpack.c.l.b16 %v1279
        %v1351 = vunpack.c.l.b16 %v1280
        %v1352 = vunpack.c.l.b16 %v1281
        %v1353 = vunpack.c.l.b16 %v1282
        %v1354 = vunpack.c.l.b16 %v1283
        %v1355 = vunpack.c.l.b16 %v1284
        %v1356 = vpack.c.b16 %v1341, %v1340
        %v1357 = vpack.c.b16 %v1343, %v1342
        %v1358 = vpack.c.b16 %v1345, %v1344
        %v1359 = vpack.c.b16 %v1347, %v1346
        %v1360 = vpack.c.b16 %v1349, %v1348
        %v1361 = vpack.c.b16 %v1351, %v1350
        %v1362 = vpack.c.b16 %v1353, %v1352
        %v1363 = vpack.c.b16 %v1355, %v1354
        %1372 = vmatpush.bf16.msra.mxu0 %v1363
        %1373 = vmatpush.bf16.msra.mxu0 %v1362
        %1374 = vmatpush.bf16.msra.mxu0 %v1361
        %1375 = vmatpush.bf16.msra.mxu0 %v1360
        %1376 = vmatpush.bf16.msra.mxu0 %v1359
        %1377 = vmatpush.bf16.msra.mxu0 %v1358
        %1378 = vmatpush.bf16.msra.mxu0 %v1357
        %1379 = vmatpush.bf16.msra.mxu0 %v1356
        %1380 = vmatmul.bf16.gmra.mxu0 %v1322
        %v1381 = vpop.f32.mrf.mxu0
        %v1382 = vadd.f32 %v1323, %v1381
        %v1383 = vpop.f32.mrf.mxu0
        %1384 = vdwg.mxu0
        %v1385 = vpack.c.bf16 %v723, %v722
        %v1386 = vpack.c.bf16 %v725, %v724
        %v1387 = vpack.c.bf16 %v727, %v726
        %v1388 = vpack.c.bf16 %v729, %v728
        %v1389 = vperm.slane %v1303, 0
        %v1406 = vunpack.c.l.b16 %v1287
        %v1407 = vunpack.c.l.b16 %v1288
        %v1408 = vunpack.c.l.b16 %v1289
        %v1409 = vunpack.c.l.b16 %v1290
        %v1410 = vunpack.c.l.b16 %v1291
        %v1411 = vunpack.c.l.b16 %v1292
        %v1412 = vunpack.c.l.b16 %v1293
        %v1413 = vunpack.c.l.b16 %v1294
        %v1414 = vunpack.c.l.b16 %v1295
        %v1415 = vunpack.c.l.b16 %v1296
        %v1416 = vunpack.c.l.b16 %v1297
        %v1417 = vunpack.c.l.b16 %v1298
        %v1418 = vunpack.c.l.b16 %v1299
        %v1419 = vunpack.c.l.b16 %v1300
        %v1420 = vunpack.c.l.b16 %v1301
        %v1421 = vunpack.c.l.b16 %v1302
        %v1422 = vpack.c.b16 %v1407, %v1406
        %v1423 = vpack.c.b16 %v1409, %v1408
        %v1424 = vpack.c.b16 %v1411, %v1410
        %v1425 = vpack.c.b16 %v1413, %v1412
        %v1426 = vpack.c.b16 %v1415, %v1414
        %v1427 = vpack.c.b16 %v1417, %v1416
        %v1428 = vpack.c.b16 %v1419, %v1418
        %v1429 = vpack.c.b16 %v1421, %v1420
        %1438 = vmatpush.bf16.msra.mxu0 %v1429
        %1439 = vmatpush.bf16.msra.mxu0 %v1428
        %1440 = vmatpush.bf16.msra.mxu0 %v1427
        %1441 = vmatpush.bf16.msra.mxu0 %v1426
        %1442 = vmatpush.bf16.msra.mxu0 %v1425
        %1443 = vmatpush.bf16.msra.mxu0 %v1424
        %1444 = vmatpush.bf16.msra.mxu0 %v1423
        %1445 = vmatpush.bf16.msra.mxu0 %v1422
        %1446 = vmatmul.bf16.gmra.mxu0 %v1385
        %v1447 = vpop.f32.mrf.mxu0
        %v1448 = vadd.f32 %v1389, %v1447
        %v1449 = vpop.f32.mrf.mxu0
        %v1450 = vadd.f32 %v1389, %v1449
        %1451 = vmatmul.bf16.gmra.mxu0 %v1386
        %v1452 = vpop.f32.mrf.mxu0
        %v1453 = vadd.f32 %v1389, %v1452
        %v1454 = vpop.f32.mrf.mxu0
        %v1455 = vadd.f32 %v1389, %v1454
        %1456 = vmatmul.bf16.gmra.mxu0 %v1387
        %v1457 = vpop.f32.mrf.mxu0
        %v1458 = vadd.f32 %v1389, %v1457
        %v1459 = vpop.f32.mrf.mxu0
        %v1460 = vadd.f32 %v1389, %v1459
        %1461 = vmatmul.bf16.gmra.mxu0 %v1388
        %v1462 = vpop.f32.mrf.mxu0
        %v1463 = vadd.f32 %v1389, %v1462
        %v1464 = vpop.f32.mrf.mxu0
        %v1465 = vadd.f32 %v1389, %v1464
        %1466 = vdwg.mxu0
        %v1467 = vperm.slane %v1321, 0
        %v1484 = vunpack.c.l.b16 %v1305
        %v1485 = vunpack.c.l.b16 %v1306
        %v1486 = vunpack.c.l.b16 %v1307
        %v1487 = vunpack.c.l.b16 %v1308
        %v1488 = vunpack.c.l.b16 %v1309
        %v1489 = vunpack.c.l.b16 %v1310
        %v1490 = vunpack.c.l.b16 %v1311
        %v1491 = vunpack.c.l.b16 %v1312
        %v1492 = vunpack.c.l.b16 %v1313
        %v1493 = vunpack.c.l.b16 %v1314
        %v1494 = vunpack.c.l.b16 %v1315
        %v1495 = vunpack.c.l.b16 %v1316
        %v1496 = vunpack.c.l.b16 %v1317
        %v1497 = vunpack.c.l.b16 %v1318
        %v1498 = vunpack.c.l.b16 %v1319
        %v1499 = vunpack.c.l.b16 %v1320
        %v1500 = vpack.c.b16 %v1485, %v1484
        %v1501 = vpack.c.b16 %v1487, %v1486
        %v1502 = vpack.c.b16 %v1489, %v1488
        %v1503 = vpack.c.b16 %v1491, %v1490
        %v1504 = vpack.c.b16 %v1493, %v1492
        %v1505 = vpack.c.b16 %v1495, %v1494
        %v1506 = vpack.c.b16 %v1497, %v1496
        %v1507 = vpack.c.b16 %v1499, %v1498
        %1516 = vmatpush.bf16.msra.mxu0 %v1507
        %1517 = vmatpush.bf16.msra.mxu0 %v1506
        %1518 = vmatpush.bf16.msra.mxu0 %v1505
        %1519 = vmatpush.bf16.msra.mxu0 %v1504
        %1520 = vmatpush.bf16.msra.mxu0 %v1503
        %1521 = vmatpush.bf16.msra.mxu0 %v1502
        %1522 = vmatpush.bf16.msra.mxu0 %v1501
        %1523 = vmatpush.bf16.msra.mxu0 %v1500
        %1524 = vmatmul.bf16.gmra.mxu0 %v1385
        %v1525 = vpop.f32.mrf.mxu0
        %v1526 = vadd.f32 %v1467, %v1525
        %v1527 = vpop.f32.mrf.mxu0
        %v1528 = vadd.f32 %v1467, %v1527
        %1529 = vmatmul.bf16.gmra.mxu0 %v1386
        %v1530 = vpop.f32.mrf.mxu0
        %v1531 = vadd.f32 %v1467, %v1530
        %v1532 = vpop.f32.mrf.mxu0
        %v1533 = vadd.f32 %v1467, %v1532
        %1534 = vmatmul.bf16.gmra.mxu0 %v1387
        %v1535 = vpop.f32.mrf.mxu0
        %v1536 = vadd.f32 %v1467, %v1535
        %v1537 = vpop.f32.mrf.mxu0
        %v1538 = vadd.f32 %v1467, %v1537
        %1539 = vmatmul.bf16.gmra.mxu0 %v1388
        %v1540 = vpop.f32.mrf.mxu0
        %v1541 = vadd.f32 %v1467, %v1540
        %v1542 = vpop.f32.mrf.mxu0
        %v1543 = vadd.f32 %v1467, %v1542
        %1544 = vdwg.mxu0
        %v1545 = vmul.f32 %v1382, 0.17677669
        %v1546 = vpack.c.bf16 %v1545, %v1545
        %v1547 = vpack.c.bf16 %v1450, %v1448
        %v1548 = vpack.c.bf16 %v1455, %v1453
        %v1549 = vpack.c.bf16 %v1460, %v1458
        %v1550 = vpack.c.bf16 %v1465, %v1463
        %v1551 = vpack.c.bf16 %v1528, %v1526
        %v1552 = vpack.c.bf16 %v1533, %v1531
        %v1553 = vpack.c.bf16 %v1538, %v1536
        %v1554 = vpack.c.bf16 %v1543, %v1541
        %v1556 = vsel %vm1000, %v1546, 0
        %v1559 = vsel %vm1000, %v1547, 0
        %v1562 = vsel %vm1000, %v1548, 0
        %v1565 = vsel %vm1000, %v1549, 0
        %v1568 = vsel %vm1000, %v1550, 0
        %1570 = vmatpush.bf16.xpose.msra.mxu0 0
        %1571 = vmatpush.bf16.xpose.msra.mxu0 0
        %1572 = vmatpush.bf16.xpose.msra.mxu0 0
        %1573 = vmatpush.bf16.xpose.msra.mxu0 0
        %1574 = vmatpush.bf16.xpose.msra.mxu0 %v1568
        %1575 = vmatpush.bf16.xpose.msra.mxu0 %v1565
        %1576 = vmatpush.bf16.xpose.msra.mxu0 %v1562
        %1577 = vmatpush.bf16.xpose.msra.mxu0 %v1559
        %1578 = vmatmul.bf16.gmra.mxu0 %v1556
        %v1579 = vpop.f32.mrf.mxu0
        %v1580 = vadd.f32 0.0, %v1579
        %v1581 = vpop.f32.mrf.mxu0
        %1582 = vdwg.mxu0
        %v1583 = vsel %vm1237, %v1580, -inf
        %1584 = vmax.xlane.f32.xlu0 %v1583
        %v1585 = vpop.xlane.xlu0 %1584
        %v1586 = vsub.f32 %v1580, %v1585
        %v1587 = vmul.f32 %v1586, 1.442695
        %v1588 = vpow.pop %v1587
        %v1589 = vsel %vm1237, %v1588, 0.0
        %1590 = vadd.xlane.f32.xlu0 %v1589
        %v1591 = vpop.xlane.xlu0 %1590
        %v1592 = vrcp.pop %v1591
        %v1593 = vmul.f32 %v1588, %v1592
        %v1594 = vpack.c.bf16 %v1593, %v1593
        %v1596 = vsel %vm1237, %v1594, 0
        %1598 = vmatpush.bf16.msra.mxu0 0
        %1599 = vmatpush.bf16.msra.mxu0 0
        %1600 = vmatpush.bf16.msra.mxu0 0
        %1601 = vmatpush.bf16.msra.mxu0 0
        %1602 = vmatpush.bf16.msra.mxu0 %v1554
        %1603 = vmatpush.bf16.msra.mxu0 %v1553
        %1604 = vmatpush.bf16.msra.mxu0 %v1552
        %1605 = vmatpush.bf16.msra.mxu0 %v1551
        %1606 = vmatmul.bf16.gmra.mxu0 %v1596
        %v1607 = vpop.f32.mrf.mxu0
        %v1608 = vadd.f32 0.0, %v1607
        %v1609 = vpop.f32.mrf.mxu0
        %1610 = vdwg.mxu0
        %1612 = vrot.lane.b32.xlu0 %v1546, 96
        %v1613 = vpop.permute.xlu0 %1612
        %1618 = vrot.lane.b32.xlu0 %v1547, 96
        %v1619 = vpop.permute.xlu0 %1618
        %1620 = vrot.lane.b32.xlu0 %v1548, 96
        %v1621 = vpop.permute.xlu0 %1620
        %1622 = vrot.lane.b32.xlu0 %v1549, 96
        %v1623 = vpop.permute.xlu0 %1622
        %1624 = vrot.lane.b32.xlu0 %v1550, 96
        %v1625 = vpop.permute.xlu0 %1624
        %v1627 = vsel %vm1000, %v1613, 0
        %v1630 = vsel %vm1000, %v1619, 0
        %v1633 = vsel %vm1000, %v1621, 0
        %v1636 = vsel %vm1000, %v1623, 0
        %v1639 = vsel %vm1000, %v1625, 0
        %1641 = vmatpush.bf16.xpose.msra.mxu0 0
        %1642 = vmatpush.bf16.xpose.msra.mxu0 0
        %1643 = vmatpush.bf16.xpose.msra.mxu0 0
        %1644 = vmatpush.bf16.xpose.msra.mxu0 0
        %1645 = vmatpush.bf16.xpose.msra.mxu0 %v1639
        %1646 = vmatpush.bf16.xpose.msra.mxu0 %v1636
        %1647 = vmatpush.bf16.xpose.msra.mxu0 %v1633
        %1648 = vmatpush.bf16.xpose.msra.mxu0 %v1630
        %1649 = vmatmul.bf16.gmra.mxu0 %v1627
        %v1650 = vpop.f32.mrf.mxu0
        %v1651 = vadd.f32 0.0, %v1650
        %v1652 = vpop.f32.mrf.mxu0
        %1653 = vdwg.mxu0
        %v1654 = vsel %vm1237, %v1651, -inf
        %1655 = vmax.xlane.f32.xlu0 %v1654
        %v1656 = vpop.xlane.xlu0 %1655
        %v1657 = vsub.f32 %v1651, %v1656
        %v1658 = vmul.f32 %v1657, 1.442695
        %v1659 = vpow.pop %v1658
        %v1660 = vsel %vm1237, %v1659, 0.0
        %1661 = vadd.xlane.f32.xlu0 %v1660
        %v1662 = vpop.xlane.xlu0 %1661
        %v1663 = vrcp.pop %v1662
        %v1664 = vmul.f32 %v1659, %v1663
        %v1665 = vpack.c.bf16 %v1664, %v1664
        %1670 = vrot.lane.b32.xlu0 %v1551, 96
        %v1671 = vpop.permute.xlu0 %1670
        %1672 = vrot.lane.b32.xlu0 %v1552, 96
        %v1673 = vpop.permute.xlu0 %1672
        %1674 = vrot.lane.b32.xlu0 %v1553, 96
        %v1675 = vpop.permute.xlu0 %1674
        %1676 = vrot.lane.b32.xlu0 %v1554, 96
        %v1677 = vpop.permute.xlu0 %1676
        %v1683 = vsel %vm1237, %v1665, 0
        %1685 = vmatpush.bf16.msra.mxu0 0
        %1686 = vmatpush.bf16.msra.mxu0 0
        %1687 = vmatpush.bf16.msra.mxu0 0
        %1688 = vmatpush.bf16.msra.mxu0 0
        %1689 = vmatpush.bf16.msra.mxu0 %v1677
        %1690 = vmatpush.bf16.msra.mxu0 %v1675
        %1691 = vmatpush.bf16.msra.mxu0 %v1673
        %1692 = vmatpush.bf16.msra.mxu0 %v1671
        %1693 = vmatmul.bf16.gmra.mxu0 %v1683
        %v1694 = vpop.f32.mrf.mxu0
        %v1695 = vadd.f32 0.0, %v1694
        %v1696 = vpop.f32.mrf.mxu0
        %1697 = vdwg.mxu0
        %1698 = vrot.lane.b32.xlu0 %v1546, 64
        %v1699 = vpop.permute.xlu0 %1698
        %1700 = vrot.lane.b32.xlu0 %v1547, 64
        %v1701 = vpop.permute.xlu0 %1700
        %1702 = vrot.lane.b32.xlu0 %v1548, 64
        %v1703 = vpop.permute.xlu0 %1702
        %1704 = vrot.lane.b32.xlu0 %v1549, 64
        %v1705 = vpop.permute.xlu0 %1704
        %1706 = vrot.lane.b32.xlu0 %v1550, 64
        %v1707 = vpop.permute.xlu0 %1706
        %v1709 = vsel %vm1000, %v1699, 0
        %v1712 = vsel %vm1000, %v1701, 0
        %v1715 = vsel %vm1000, %v1703, 0
        %v1718 = vsel %vm1000, %v1705, 0
        %v1721 = vsel %vm1000, %v1707, 0
        %1723 = vmatpush.bf16.xpose.msra.mxu0 0
        %1724 = vmatpush.bf16.xpose.msra.mxu0 0
        %1725 = vmatpush.bf16.xpose.msra.mxu0 0
        %1726 = vmatpush.bf16.xpose.msra.mxu0 0
        %1727 = vmatpush.bf16.xpose.msra.mxu0 %v1721
        %1728 = vmatpush.bf16.xpose.msra.mxu0 %v1718
        %1729 = vmatpush.bf16.xpose.msra.mxu0 %v1715
        %1730 = vmatpush.bf16.xpose.msra.mxu0 %v1712
        %1731 = vmatmul.bf16.gmra.mxu0 %v1709
        %v1732 = vpop.f32.mrf.mxu0
        %v1733 = vadd.f32 0.0, %v1732
        %v1734 = vpop.f32.mrf.mxu0
        %1735 = vdwg.mxu0
        %v1736 = vsel %vm1237, %v1733, -inf
        %1737 = vmax.xlane.f32.xlu0 %v1736
        %v1738 = vpop.xlane.xlu0 %1737
        %v1739 = vsub.f32 %v1733, %v1738
        %v1740 = vmul.f32 %v1739, 1.442695
        %v1741 = vpow.pop %v1740
        %v1742 = vsel %vm1237, %v1741, 0.0
        %1743 = vadd.xlane.f32.xlu0 %v1742
        %v1744 = vpop.xlane.xlu0 %1743
        %v1745 = vrcp.pop %v1744
        %v1746 = vmul.f32 %v1741, %v1745
        %v1747 = vpack.c.bf16 %v1746, %v1746
        %1748 = vrot.lane.b32.xlu0 %v1551, 64
        %v1749 = vpop.permute.xlu0 %1748
        %1750 = vrot.lane.b32.xlu0 %v1552, 64
        %v1751 = vpop.permute.xlu0 %1750
        %1752 = vrot.lane.b32.xlu0 %v1553, 64
        %v1753 = vpop.permute.xlu0 %1752
        %1754 = vrot.lane.b32.xlu0 %v1554, 64
        %v1755 = vpop.permute.xlu0 %1754
        %v1761 = vsel %vm1237, %v1747, 0
        %1763 = vmatpush.bf16.msra.mxu0 0
        %1764 = vmatpush.bf16.msra.mxu0 0
        %1765 = vmatpush.bf16.msra.mxu0 0
        %1766 = vmatpush.bf16.msra.mxu0 0
        %1767 = vmatpush.bf16.msra.mxu0 %v1755
        %1768 = vmatpush.bf16.msra.mxu0 %v1753
        %1769 = vmatpush.bf16.msra.mxu0 %v1751
        %1770 = vmatpush.bf16.msra.mxu0 %v1749
        %1771 = vmatmul.bf16.gmra.mxu0 %v1761
        %v1772 = vpop.f32.mrf.mxu0
        %v1773 = vadd.f32 0.0, %v1772
        %v1774 = vpop.f32.mrf.mxu0
        %1775 = vdwg.mxu0
        %1776 = vrot.lane.b32.xlu0 %v1546, 32
        %v1777 = vpop.permute.xlu0 %1776
        %1778 = vrot.lane.b32.xlu0 %v1547, 32
        %v1779 = vpop.permute.xlu0 %1778
        %1780 = vrot.lane.b32.xlu0 %v1548, 32
        %v1781 = vpop.permute.xlu0 %1780
        %1782 = vrot.lane.b32.xlu0 %v1549, 32
        %v1783 = vpop.permute.xlu0 %1782
        %1784 = vrot.lane.b32.xlu0 %v1550, 32
        %v1785 = vpop.permute.xlu0 %1784
        %v1787 = vsel %vm1000, %v1777, 0
        %v1790 = vsel %vm1000, %v1779, 0
        %v1793 = vsel %vm1000, %v1781, 0
        %v1796 = vsel %vm1000, %v1783, 0
        %v1799 = vsel %vm1000, %v1785, 0
        %1801 = vmatpush.bf16.xpose.msra.mxu0 0
        %1802 = vmatpush.bf16.xpose.msra.mxu0 0
        %1803 = vmatpush.bf16.xpose.msra.mxu0 0
        %1804 = vmatpush.bf16.xpose.msra.mxu0 0
        %1805 = vmatpush.bf16.xpose.msra.mxu0 %v1799
        %1806 = vmatpush.bf16.xpose.msra.mxu0 %v1796
        %1807 = vmatpush.bf16.xpose.msra.mxu0 %v1793
        %1808 = vmatpush.bf16.xpose.msra.mxu0 %v1790
        %1809 = vmatmul.bf16.gmra.mxu0 %v1787
        %v1810 = vpop.f32.mrf.mxu0
        %v1811 = vadd.f32 0.0, %v1810
        %v1812 = vpop.f32.mrf.mxu0
        %1813 = vdwg.mxu0
        %v1814 = vsel %vm1237, %v1811, -inf
        %1815 = vmax.xlane.f32.xlu0 %v1814
        %v1816 = vpop.xlane.xlu0 %1815
        %v1817 = vsub.f32 %v1811, %v1816
        %v1818 = vmul.f32 %v1817, 1.442695
        %v1819 = vpow.pop %v1818
        %v1820 = vsel %vm1237, %v1819, 0.0
        %1821 = vadd.xlane.f32.xlu0 %v1820
        %v1822 = vpop.xlane.xlu0 %1821
        %v1823 = vrcp.pop %v1822
        %v1824 = vmul.f32 %v1819, %v1823
        %v1825 = vpack.c.bf16 %v1824, %v1824
        %1826 = vrot.lane.b32.xlu0 %v1551, 32
        %v1827 = vpop.permute.xlu0 %1826
        %1828 = vrot.lane.b32.xlu0 %v1552, 32
        %v1829 = vpop.permute.xlu0 %1828
        %1830 = vrot.lane.b32.xlu0 %v1553, 32
        %v1831 = vpop.permute.xlu0 %1830
        %1832 = vrot.lane.b32.xlu0 %v1554, 32
        %v1833 = vpop.permute.xlu0 %1832
        %v1839 = vsel %vm1237, %v1825, 0
        %1841 = vmatpush.bf16.msra.mxu0 0
        %1842 = vmatpush.bf16.msra.mxu0 0
        %1843 = vmatpush.bf16.msra.mxu0 0
        %1844 = vmatpush.bf16.msra.mxu0 0
        %1845 = vmatpush.bf16.msra.mxu0 %v1833
        %1846 = vmatpush.bf16.msra.mxu0 %v1831
        %1847 = vmatpush.bf16.msra.mxu0 %v1829
        %1848 = vmatpush.bf16.msra.mxu0 %v1827
        %1849 = vmatmul.bf16.gmra.mxu0 %v1839
        %v1850 = vpop.f32.mrf.mxu0
        %v1851 = vadd.f32 0.0, %v1850
        %v1852 = vpop.f32.mrf.mxu0
        %1853 = vdwg.mxu0
        %1855 = vrot.lane.b32.xlu0 %v1695, 32
        %v1856 = vpop.permute.xlu0 %1855
        %1859 = vrot.lane.b32.xlu0 %v1773, 64
        %v1860 = vpop.permute.xlu0 %1859
        %1863 = vrot.lane.b32.xlu0 %v1851, 96
        %v1864 = vpop.permute.xlu0 %1863
        %v1866 = vsel %vm1000, %v1608, %v1856
        %v1867 = vsel %vm1237, %v1866, %v1860
        %v1868 = vsel %vm1239, %v1867, %v1864
        %v1869 = vadd.f32 %v1241, %v1868
        %v1870 = vld [vmem:[%s3 + $0x8] sm:$0x1]
        %v1871 = vld [vmem:[%s3 + $0x9] sm:$0x1]
        %1872 = vadd.xlane.f32.xlu0 %v1869
        %v1873 = vpop.xlane.xlu0 %1872
        %v1874 = vmul.f32 %v1873, %v567
        %v1875 = vsub.f32 %v1869, %v1874
        %v1876 = vmul.f32 %v1875, %v1875
        %1877 = vadd.xlane.f32.xlu0 %v1876
        %v1878 = vpop.xlane.xlu0 %1877
        %v1879 = vmul.f32 %v1878, %v567
        %v1880 = vadd.f32 %v1879, 1e-05
        %v1881 = vrsqrt.pop %v1880
        %v1882 = vmul.f32 %v1881, %v1880
        %v1883 = vmul.f32 %v1882, %v1881
        %v1884 = vmul.f32 0.5, %v1883
        %v1885 = vsub.f32 1.5, %v1884
        %v1886 = vmul.f32 %v1881, %v1885
        %vm1887 = vweird.f32 %v1880
        %vm1888 = vweird.f32 %v1881
        %vm1889 = vmor %vm1887, %vm1888
        %v1890 = vsel %vm1889, %v1881, %v1886
        %v1891 = vmul.f32 %v1875, %v1890
        %v1892 = vperm.slane %v1870, 0
        %v1893 = vmul.f32 %v1891, %v1892
        %v1894 = vperm.slane %v1871, 0
        %v1895 = vadd.f32 %v1893, %v1894
        %v1896 = vpack.c.bf16 %v1895, %v1895
        %v1897 = vld [vmem:[#allocation7] sm:$0xff]
        %v1898 = vld [vmem:[#allocation7 + $0x8] sm:$0xff]
        %v1899 = vld [vmem:[#allocation7 + $0x10] sm:$0xff]
        %v1900 = vld [vmem:[#allocation7 + $0x18] sm:$0xff]
        %v1901 = vld [vmem:[#allocation7 + $0x20] sm:$0xff]
        %v1902 = vld [vmem:[#allocation7 + $0x28] sm:$0xff]
        %v1903 = vld [vmem:[#allocation7 + $0x30] sm:$0xff]
        %v1904 = vld [vmem:[#allocation7 + $0x38] sm:$0xff]
        %v1905 = vld [vmem:[#allocation7 + $0x40] sm:$0xff]
        %v1906 = vld [vmem:[#allocation7 + $0x48] sm:$0xff]
        %v1907 = vld [vmem:[#allocation7 + $0x50] sm:$0xff]
        %v1908 = vld [vmem:[#allocation7 + $0x58] sm:$0xff]
        %v1909 = vld [vmem:[#allocation7 + $0x60] sm:$0xff]
        %v1910 = vld [vmem:[#allocation7 + $0x68] sm:$0xff]
        %v1911 = vld [vmem:[#allocation7 + $0x70] sm:$0xff]
        %v1912 = vld [vmem:[#allocation7 + $0x78] sm:$0xff]
        %v1913 = vld [vmem:[#allocation7 + $0x80] sm:$0xff]
        %v1914 = vld [vmem:[#allocation7 + $0x88] sm:$0xff]
        %v1915 = vld [vmem:[#allocation7 + $0x90] sm:$0xff]
        %v1916 = vld [vmem:[#allocation7 + $0x98] sm:$0xff]
        %v1917 = vld [vmem:[#allocation7 + $0xa0] sm:$0xff]
        %v1918 = vld [vmem:[#allocation7 + $0xa8] sm:$0xff]
        %v1919 = vld [vmem:[#allocation7 + $0xb0] sm:$0xff]
        %v1920 = vld [vmem:[#allocation7 + $0xb8] sm:$0xff]
        %v1921 = vld [vmem:[#allocation7 + $0xc0] sm:$0xff]
        %v1922 = vld [vmem:[#allocation7 + $0xc8] sm:$0xff]
        %v1923 = vld [vmem:[#allocation7 + $0xd0] sm:$0xff]
        %v1924 = vld [vmem:[#allocation7 + $0xd8] sm:$0xff]
        %v1925 = vld [vmem:[#allocation7 + $0xe0] sm:$0xff]
        %v1926 = vld [vmem:[#allocation7 + $0xe8] sm:$0xff]
        %v1927 = vld [vmem:[#allocation7 + $0xf0] sm:$0xff]
        %v1928 = vld [vmem:[#allocation7 + $0xf8] sm:$0xff]
        %v1929 = vld [vmem:[%s5] sm:$0xf]
        %v1931 = vperm.slane %v1929, 0
        %v1932 = vperm.slane %v1929, 1
        %v1933 = vperm.slane %v1929, 2
        %v1934 = vperm.slane %v1929, 3
        %v1971 = vunpack.c.l.b16 %v1897
        %v1972 = vunpack.c.h.b16 %v1897
        %v1973 = vunpack.c.l.b16 %v1898
        %v1974 = vunpack.c.h.b16 %v1898
        %v1975 = vunpack.c.l.b16 %v1899
        %v1976 = vunpack.c.h.b16 %v1899
        %v1977 = vunpack.c.l.b16 %v1900
        %v1978 = vunpack.c.h.b16 %v1900
        %v1979 = vunpack.c.l.b16 %v1901
        %v1980 = vunpack.c.h.b16 %v1901
        %v1981 = vunpack.c.l.b16 %v1902
        %v1982 = vunpack.c.h.b16 %v1902
        %v1983 = vunpack.c.l.b16 %v1903
        %v1984 = vunpack.c.h.b16 %v1903
        %v1985 = vunpack.c.l.b16 %v1904
        %v1986 = vunpack.c.h.b16 %v1904
        %v1987 = vunpack.c.l.b16 %v1905
        %v1988 = vunpack.c.h.b16 %v1905
        %v1989 = vunpack.c.l.b16 %v1906
        %v1990 = vunpack.c.h.b16 %v1906
        %v1991 = vunpack.c.l.b16 %v1907
        %v1992 = vunpack.c.h.b16 %v1907
        %v1993 = vunpack.c.l.b16 %v1908
        %v1994 = vunpack.c.h.b16 %v1908
        %v1995 = vunpack.c.l.b16 %v1909
        %v1996 = vunpack.c.h.b16 %v1909
        %v1997 = vunpack.c.l.b16 %v1910
        %v1998 = vunpack.c.h.b16 %v1910
        %v1999 = vunpack.c.l.b16 %v1911
        %v2000 = vunpack.c.h.b16 %v1911
        %v2001 = vunpack.c.l.b16 %v1912
        %v2002 = vunpack.c.h.b16 %v1912
        %v2003 = vunpack.c.l.b16 %v1913
        %v2004 = vunpack.c.h.b16 %v1913
        %v2005 = vunpack.c.l.b16 %v1914
        %v2006 = vunpack.c.h.b16 %v1914
        %v2007 = vunpack.c.l.b16 %v1915
        %v2008 = vunpack.c.h.b16 %v1915
        %v2009 = vunpack.c.l.b16 %v1916
        %v2010 = vunpack.c.h.b16 %v1916
        %v2011 = vunpack.c.l.b16 %v1917
        %v2012 = vunpack.c.h.b16 %v1917
        %v2013 = vunpack.c.l.b16 %v1918
        %v2014 = vunpack.c.h.b16 %v1918
        %v2015 = vunpack.c.l.b16 %v1919
        %v2016 = vunpack.c.h.b16 %v1919
        %v2017 = vunpack.c.l.b16 %v1920
        %v2018 = vunpack.c.h.b16 %v1920
        %v2019 = vunpack.c.l.b16 %v1921
        %v2020 = vunpack.c.h.b16 %v1921
        %v2021 = vunpack.c.l.b16 %v1922
        %v2022 = vunpack.c.h.b16 %v1922
        %v2023 = vunpack.c.l.b16 %v1923
        %v2024 = vunpack.c.h.b16 %v1923
        %v2025 = vunpack.c.l.b16 %v1924
        %v2026 = vunpack.c.h.b16 %v1924
        %v2027 = vunpack.c.l.b16 %v1925
        %v2028 = vunpack.c.h.b16 %v1925
        %v2029 = vunpack.c.l.b16 %v1926
        %v2030 = vunpack.c.h.b16 %v1926
        %v2031 = vunpack.c.l.b16 %v1927
        %v2032 = vunpack.c.h.b16 %v1927
        %v2033 = vunpack.c.l.b16 %v1928
        %v2034 = vunpack.c.h.b16 %v1928
        %v2035 = vpack.c.b16 %v1975, %v1971
        %v2036 = vpack.c.b16 %v1976, %v1972
        %v2037 = vpack.c.b16 %v1977, %v1973
        %v2038 = vpack.c.b16 %v1978, %v1974
        %v2039 = vpack.c.b16 %v1983, %v1979
        %v2040 = vpack.c.b16 %v1984, %v1980
        %v2041 = vpack.c.b16 %v1985, %v1981
        %v2042 = vpack.c.b16 %v1986, %v1982
        %v2043 = vpack.c.b16 %v1991, %v1987
        %v2044 = vpack.c.b16 %v1992, %v1988
        %v2045 = vpack.c.b16 %v1993, %v1989
        %v2046 = vpack.c.b16 %v1994, %v1990
        %v2047 = vpack.c.b16 %v1999, %v1995
        %v2048 = vpack.c.b16 %v2000, %v1996
        %v2049 = vpack.c.b16 %v2001, %v1997
        %v2050 = vpack.c.b16 %v2002, %v1998
        %v2051 = vpack.c.b16 %v2007, %v2003
        %v2052 = vpack.c.b16 %v2008, %v2004
        %v2053 = vpack.c.b16 %v2009, %v2005
        %v2054 = vpack.c.b16 %v2010, %v2006
        %v2055 = vpack.c.b16 %v2015, %v2011
        %v2056 = vpack.c.b16 %v2016, %v2012
        %v2057 = vpack.c.b16 %v2017, %v2013
        %v2058 = vpack.c.b16 %v2018, %v2014
        %v2059 = vpack.c.b16 %v2023, %v2019
        %v2060 = vpack.c.b16 %v2024, %v2020
        %v2061 = vpack.c.b16 %v2025, %v2021
        %v2062 = vpack.c.b16 %v2026, %v2022
        %v2063 = vpack.c.b16 %v2031, %v2027
        %v2064 = vpack.c.b16 %v2032, %v2028
        %v2065 = vpack.c.b16 %v2033, %v2029
        %v2066 = vpack.c.b16 %v2034, %v2030
        %2099 = vmatpush.bf16.msra.mxu0 %v2063
        %2100 = vmatpush.bf16.msra.mxu0 %v2059
        %2101 = vmatpush.bf16.msra.mxu0 %v2055
        %2102 = vmatpush.bf16.msra.mxu0 %v2051
        %2103 = vmatpush.bf16.msra.mxu0 %v2047
        %2104 = vmatpush.bf16.msra.mxu0 %v2043
        %2105 = vmatpush.bf16.msra.mxu0 %v2039
        %2106 = vmatpush.bf16.msra.mxu0 %v2035
        %2107 = vmatmul.bf16.gmra.mxu0 %v1896
        %v2108 = vpop.f32.mrf.mxu0
        %v2109 = vadd.f32 %v1931, %v2108
        %v2110 = vpop.f32.mrf.mxu0
        %2111 = vdwg.mxu0
        %2112 = vmatpush.bf16.msra.mxu0 %v2064
        %2113 = vmatpush.bf16.msra.mxu0 %v2060
        %2114 = vmatpush.bf16.msra.mxu0 %v2056
        %2115 = vmatpush.bf16.msra.mxu0 %v2052
        %2116 = vmatpush.bf16.msra.mxu0 %v2048
        %2117 = vmatpush.bf16.msra.mxu0 %v2044
        %2118 = vmatpush.bf16.msra.mxu0 %v2040
        %2119 = vmatpush.bf16.msra.mxu0 %v2036
        %2120 = vmatmul.bf16.gmra.mxu0 %v1896
        %v2121 = vpop.f32.mrf.mxu0
        %v2122 = vadd.f32 %v1932, %v2121
        %v2123 = vpop.f32.mrf.mxu0
        %2124 = vdwg.mxu0
        %2125 = vmatpush.bf16.msra.mxu0 %v2065
        %2126 = vmatpush.bf16.msra.mxu0 %v2061
        %2127 = vmatpush.bf16.msra.mxu0 %v2057
        %2128 = vmatpush.bf16.msra.mxu0 %v2053
        %2129 = vmatpush.bf16.msra.mxu0 %v2049
        %2130 = vmatpush.bf16.msra.mxu0 %v2045
        %2131 = vmatpush.bf16.msra.mxu0 %v2041
        %2132 = vmatpush.bf16.msra.mxu0 %v2037
        %2133 = vmatmul.bf16.gmra.mxu0 %v1896
        %v2134 = vpop.f32.mrf.mxu0
        %v2135 = vadd.f32 %v1933, %v2134
        %v2136 = vpop.f32.mrf.mxu0
        %2137 = vdwg.mxu0
        %2138 = vmatpush.bf16.msra.mxu0 %v2066
        %2139 = vmatpush.bf16.msra.mxu0 %v2062
        %2140 = vmatpush.bf16.msra.mxu0 %v2058
        %2141 = vmatpush.bf16.msra.mxu0 %v2054
        %2142 = vmatpush.bf16.msra.mxu0 %v2050
        %2143 = vmatpush.bf16.msra.mxu0 %v2046
        %2144 = vmatpush.bf16.msra.mxu0 %v2042
        %2145 = vmatpush.bf16.msra.mxu0 %v2038
        %2146 = vmatmul.bf16.gmra.mxu0 %v1896
        %v2147 = vpop.f32.mrf.mxu0
        %v2148 = vadd.f32 %v1934, %v2147
        %v2149 = vpop.f32.mrf.mxu0
        %2150 = vdwg.mxu0
        %v2151 = vmax.f32 %v2109, 0.0
        %v2152 = vmax.f32 %v2122, 0.0
        %v2153 = vmax.f32 %v2135, 0.0
        %v2154 = vmax.f32 %v2148, 0.0
        %v2155 = vpack.c.bf16 %v2151, %v2151
        %v2156 = vpack.c.bf16 %v2152, %v2152
        %v2157 = vpack.c.bf16 %v2153, %v2153
        %v2158 = vpack.c.bf16 %v2154, %v2154
        %v2159 = vld [vmem:[#allocation8] sm:$0xf]
        %v2160 = vld [vmem:[#allocation8 + $0x4] sm:$0xf]
        %v2161 = vld [vmem:[#allocation8 + $0x8] sm:$0xf]
        %v2162 = vld [vmem:[#allocation8 + $0xc] sm:$0xf]
        %v2163 = vld [vmem:[#allocation8 + $0x10] sm:$0xf]
        %v2164 = vld [vmem:[#allocation8 + $0x14] sm:$0xf]
        %v2165 = vld [vmem:[#allocation8 + $0x18] sm:$0xf]
        %v2166 = vld [vmem:[#allocation8 + $0x1c] sm:$0xf]
        %v2167 = vld [vmem:[#allocation8 + $0x20] sm:$0xf]
        %v2168 = vld [vmem:[#allocation8 + $0x24] sm:$0xf]
        %v2169 = vld [vmem:[#allocation8 + $0x28] sm:$0xf]
        %v2170 = vld [vmem:[#allocation8 + $0x2c] sm:$0xf]
        %v2171 = vld [vmem:[#allocation8 + $0x30] sm:$0xf]
        %v2172 = vld [vmem:[#allocation8 + $0x34] sm:$0xf]
        %v2173 = vld [vmem:[#allocation8 + $0x38] sm:$0xf]
        %v2174 = vld [vmem:[#allocation8 + $0x3c] sm:$0xf]
        %v2175 = vld [vmem:[#allocation8 + $0x40] sm:$0xf]
        %v2176 = vld [vmem:[#allocation8 + $0x44] sm:$0xf]
        %v2177 = vld [vmem:[#allocation8 + $0x48] sm:$0xf]
        %v2178 = vld [vmem:[#allocation8 + $0x4c] sm:$0xf]
        %v2179 = vld [vmem:[#allocation8 + $0x50] sm:$0xf]
        %v2180 = vld [vmem:[#allocation8 + $0x54] sm:$0xf]
        %v2181 = vld [vmem:[#allocation8 + $0x58] sm:$0xf]
        %v2182 = vld [vmem:[#allocation8 + $0x5c] sm:$0xf]
        %v2183 = vld [vmem:[#allocation8 + $0x60] sm:$0xf]
        %v2184 = vld [vmem:[#allocation8 + $0x64] sm:$0xf]
        %v2185 = vld [vmem:[#allocation8 + $0x68] sm:$0xf]
        %v2186 = vld [vmem:[#allocation8 + $0x6c] sm:$0xf]
        %v2187 = vld [vmem:[#allocation8 + $0x70] sm:$0xf]
        %v2188 = vld [vmem:[#allocation8 + $0x74] sm:$0xf]
        %v2189 = vld [vmem:[#allocation8 + $0x78] sm:$0xf]
        %v2190 = vld [vmem:[#allocation8 + $0x7c] sm:$0xf]
        %v2191 = vld [vmem:[#allocation8 + $0x80] sm:$0xf]
        %v2192 = vld [vmem:[#allocation8 + $0x84] sm:$0xf]
        %v2193 = vld [vmem:[#allocation8 + $0x88] sm:$0xf]
        %v2194 = vld [vmem:[#allocation8 + $0x8c] sm:$0xf]
        %v2195 = vld [vmem:[#allocation8 + $0x90] sm:$0xf]
        %v2196 = vld [vmem:[#allocation8 + $0x94] sm:$0xf]
        %v2197 = vld [vmem:[#allocation8 + $0x98] sm:$0xf]
        %v2198 = vld [vmem:[#allocation8 + $0x9c] sm:$0xf]
        %v2199 = vld [vmem:[#allocation8 + $0xa0] sm:$0xf]
        %v2200 = vld [vmem:[#allocation8 + $0xa4] sm:$0xf]
        %v2201 = vld [vmem:[#allocation8 + $0xa8] sm:$0xf]
        %v2202 = vld [vmem:[#allocation8 + $0xac] sm:$0xf]
        %v2203 = vld [vmem:[#allocation8 + $0xb0] sm:$0xf]
        %v2204 = vld [vmem:[#allocation8 + $0xb4] sm:$0xf]
        %v2205 = vld [vmem:[#allocation8 + $0xb8] sm:$0xf]
        %v2206 = vld [vmem:[#allocation8 + $0xbc] sm:$0xf]
        %v2207 = vld [vmem:[#allocation8 + $0xc0] sm:$0xf]
        %v2208 = vld [vmem:[#allocation8 + $0xc4] sm:$0xf]
        %v2209 = vld [vmem:[#allocation8 + $0xc8] sm:$0xf]
        %v2210 = vld [vmem:[#allocation8 + $0xcc] sm:$0xf]
        %v2211 = vld [vmem:[#allocation8 + $0xd0] sm:$0xf]
        %v2212 = vld [vmem:[#allocation8 + $0xd4] sm:$0xf]
        %v2213 = vld [vmem:[#allocation8 + $0xd8] sm:$0xf]
        %v2214 = vld [vmem:[#allocation8 + $0xdc] sm:$0xf]
        %v2215 = vld [vmem:[#allocation8 + $0xe0] sm:$0xf]
        %v2216 = vld [vmem:[#allocation8 + $0xe4] sm:$0xf]
        %v2217 = vld [vmem:[#allocation8 + $0xe8] sm:$0xf]
        %v2218 = vld [vmem:[#allocation8 + $0xec] sm:$0xf]
        %v2219 = vld [vmem:[#allocation8 + $0xf0] sm:$0xf]
        %v2220 = vld [vmem:[#allocation8 + $0xf4] sm:$0xf]
        %v2221 = vld [vmem:[#allocation8 + $0xf8] sm:$0xf]
        %v2222 = vld [vmem:[#allocation8 + $0xfc] sm:$0xf]
        %v2223 = vld [vmem:[%s3 + $0x16] sm:$0x1]
        %v2224 = vperm.slane %v2223, 0
        %v2289 = vunpack.c.l.b16 %v2159
        %v2290 = vunpack.c.l.b16 %v2160
        %v2291 = vunpack.c.l.b16 %v2161
        %v2292 = vunpack.c.l.b16 %v2162
        %v2293 = vunpack.c.l.b16 %v2163
        %v2294 = vunpack.c.l.b16 %v2164
        %v2295 = vunpack.c.l.b16 %v2165
        %v2296 = vunpack.c.l.b16 %v2166
        %v2297 = vunpack.c.l.b16 %v2167
        %v2298 = vunpack.c.l.b16 %v2168
        %v2299 = vunpack.c.l.b16 %v2169
        %v2300 = vunpack.c.l.b16 %v2170
        %v2301 = vunpack.c.l.b16 %v2171
        %v2302 = vunpack.c.l.b16 %v2172
        %v2303 = vunpack.c.l.b16 %v2173
        %v2304 = vunpack.c.l.b16 %v2174
        %v2305 = vunpack.c.l.b16 %v2175
        %v2306 = vunpack.c.l.b16 %v2176
        %v2307 = vunpack.c.l.b16 %v2177
        %v2308 = vunpack.c.l.b16 %v2178
        %v2309 = vunpack.c.l.b16 %v2179
        %v2310 = vunpack.c.l.b16 %v2180
        %v2311 = vunpack.c.l.b16 %v2181
        %v2312 = vunpack.c.l.b16 %v2182
        %v2313 = vunpack.c.l.b16 %v2183
        %v2314 = vunpack.c.l.b16 %v2184
        %v2315 = vunpack.c.l.b16 %v2185
        %v2316 = vunpack.c.l.b16 %v2186
        %v2317 = vunpack.c.l.b16 %v2187
        %v2318 = vunpack.c.l.b16 %v2188
        %v2319 = vunpack.c.l.b16 %v2189
        %v2320 = vunpack.c.l.b16 %v2190
        %v2321 = vunpack.c.l.b16 %v2191
        %v2322 = vunpack.c.l.b16 %v2192
        %v2323 = vunpack.c.l.b16 %v2193
        %v2324 = vunpack.c.l.b16 %v2194
        %v2325 = vunpack.c.l.b16 %v2195
        %v2326 = vunpack.c.l.b16 %v2196
        %v2327 = vunpack.c.l.b16 %v2197
        %v2328 = vunpack.c.l.b16 %v2198
        %v2329 = vunpack.c.l.b16 %v2199
        %v2330 = vunpack.c.l.b16 %v2200
        %v2331 = vunpack.c.l.b16 %v2201
        %v2332 = vunpack.c.l.b16 %v2202
        %v2333 = vunpack.c.l.b16 %v2203
        %v2334 = vunpack.c.l.b16 %v2204
        %v2335 = vunpack.c.l.b16 %v2205
        %v2336 = vunpack.c.l.b16 %v2206
        %v2337 = vunpack.c.l.b16 %v2207
        %v2338 = vunpack.c.l.b16 %v2208
        %v2339 = vunpack.c.l.b16 %v2209
        %v2340 = vunpack.c.l.b16 %v2210
        %v2341 = vunpack.c.l.b16 %v2211
        %v2342 = vunpack.c.l.b16 %v2212
        %v2343 = vunpack.c.l.b16 %v2213
        %v2344 = vunpack.c.l.b16 %v2214
        %v2345 = vunpack.c.l.b16 %v2215
        %v2346 = vunpack.c.l.b16 %v2216
        %v2347 = vunpack.c.l.b16 %v2217
        %v2348 = vunpack.c.l.b16 %v2218
        %v2349 = vunpack.c.l.b16 %v2219
        %v2350 = vunpack.c.l.b16 %v2220
        %v2351 = vunpack.c.l.b16 %v2221
        %v2352 = vunpack.c.l.b16 %v2222
        %v2353 = vpack.c.b16 %v2290, %v2289
        %v2354 = vpack.c.b16 %v2292, %v2291
        %v2355 = vpack.c.b16 %v2294, %v2293
        %v2356 = vpack.c.b16 %v2296, %v2295
        %v2357 = vpack.c.b16 %v2298, %v2297
        %v2358 = vpack.c.b16 %v2300, %v2299
        %v2359 = vpack.c.b16 %v2302, %v2301
        %v2360 = vpack.c.b16 %v2304, %v2303
        %v2361 = vpack.c.b16 %v2306, %v2305
        %v2362 = vpack.c.b16 %v2308, %v2307
        %v2363 = vpack.c.b16 %v2310, %v2309
        %v2364 = vpack.c.b16 %v2312, %v2311
        %v2365 = vpack.c.b16 %v2314, %v2313
        %v2366 = vpack.c.b16 %v2316, %v2315
        %v2367 = vpack.c.b16 %v2318, %v2317
        %v2368 = vpack.c.b16 %v2320, %v2319
        %v2369 = vpack.c.b16 %v2322, %v2321
        %v2370 = vpack.c.b16 %v2324, %v2323
        %v2371 = vpack.c.b16 %v2326, %v2325
        %v2372 = vpack.c.b16 %v2328, %v2327
        %v2373 = vpack.c.b16 %v2330, %v2329
        %v2374 = vpack.c.b16 %v2332, %v2331
        %v2375 = vpack.c.b16 %v2334, %v2333
        %v2376 = vpack.c.b16 %v2336, %v2335
        %v2377 = vpack.c.b16 %v2338, %v2337
        %v2378 = vpack.c.b16 %v2340, %v2339
        %v2379 = vpack.c.b16 %v2342, %v2341
        %v2380 = vpack.c.b16 %v2344, %v2343
        %v2381 = vpack.c.b16 %v2346, %v2345
        %v2382 = vpack.c.b16 %v2348, %v2347
        %v2383 = vpack.c.b16 %v2350, %v2349
        %v2384 = vpack.c.b16 %v2352, %v2351
        %2417 = vmatpush.bf16.msra.mxu0 %v2360
        %2418 = vmatpush.bf16.msra.mxu0 %v2359
        %2419 = vmatpush.bf16.msra.mxu0 %v2358
        %2420 = vmatpush.bf16.msra.mxu0 %v2357
        %2421 = vmatpush.bf16.msra.mxu0 %v2356
        %2422 = vmatpush.bf16.msra.mxu0 %v2355
        %2423 = vmatpush.bf16.msra.mxu0 %v2354
        %2424 = vmatpush.bf16.msra.mxu0 %v2353
        %2425 = vmatmul.bf16.gmra.mxu0 %v2155
        %v2426 = vpop.f32.mrf.mxu0
        %v2427 = vadd.f32 %v2224, %v2426
        %v2428 = vpop.f32.mrf.mxu0
        %2429 = vdwg.mxu0
        %2430 = vmatpush.bf16.msra.mxu0 %v2368
        %2431 = vmatpush.bf16.msra.mxu0 %v2367
        %2432 = vmatpush.bf16.msra.mxu0 %v2366
        %2433 = vmatpush.bf16.msra.mxu0 %v2365
        %2434 = vmatpush.bf16.msra.mxu0 %v2364
        %2435 = vmatpush.bf16.msra.mxu0 %v2363
        %2436 = vmatpush.bf16.msra.mxu0 %v2362
        %2437 = vmatpush.bf16.msra.mxu0 %v2361
        %2438 = vmatmul.bf16.gmra.mxu0 %v2156
        %v2439 = vpop.f32.mrf.mxu0
        %v2440 = vadd.f32 %v2427, %v2439
        %v2441 = vpop.f32.mrf.mxu0
        %2442 = vdwg.mxu0
        %2443 = vmatpush.bf16.msra.mxu0 %v2376
        %2444 = vmatpush.bf16.msra.mxu0 %v2375
        %2445 = vmatpush.bf16.msra.mxu0 %v2374
        %2446 = vmatpush.bf16.msra.mxu0 %v2373
        %2447 = vmatpush.bf16.msra.mxu0 %v2372
        %2448 = vmatpush.bf16.msra.mxu0 %v2371
        %2449 = vmatpush.bf16.msra.mxu0 %v2370
        %2450 = vmatpush.bf16.msra.mxu0 %v2369
        %2451 = vmatmul.bf16.gmra.mxu0 %v2157
        %v2452 = vpop.f32.mrf.mxu0
        %v2453 = vadd.f32 %v2440, %v2452
        %v2454 = vpop.f32.mrf.mxu0
        %2455 = vdwg.mxu0
        %2456 = vmatpush.bf16.msra.mxu0 %v2384
        %2457 = vmatpush.bf16.msra.mxu0 %v2383
        %2458 = vmatpush.bf16.msra.mxu0 %v2382
        %2459 = vmatpush.bf16.msra.mxu0 %v2381
        %2460 = vmatpush.bf16.msra.mxu0 %v2380
        %2461 = vmatpush.bf16.msra.mxu0 %v2379
        %2462 = vmatpush.bf16.msra.mxu0 %v2378
        %2463 = vmatpush.bf16.msra.mxu0 %v2377
        %2464 = vmatmul.bf16.gmra.mxu0 %v2158
        %v2465 = vpop.f32.mrf.mxu0
        %v2466 = vadd.f32 %v2453, %v2465
        %v2467 = vpop.f32.mrf.mxu0
        %2468 = vdwg.mxu0
        %v2469 = vadd.f32 %v1869, %v2466
        %2470 = vst [vmem:[%s532] sm:$0xff] %v2469
        %v2471 = vld [vmem:[%s3 + $0xa] sm:$0x1]
        %v2472 = vld [vmem:[%s3 + $0xb] sm:$0x1]
        %2473 = vadd.xlane.f32.xlu0 %v2469
        %v2474 = vpop.xlane.xlu0 %2473
        %v2475 = vmul.f32 %v2474, %v567
        %v2476 = vsub.f32 %v2469, %v2475
        %v2477 = vmul.f32 %v2476, %v2476
        %2478 = vadd.xlane.f32.xlu0 %v2477
        %v2479 = vpop.xlane.xlu0 %2478
        %v2480 = vmul.f32 %v2479, %v567
        %v2481 = vadd.f32 %v2480, 1e-05
        %v2482 = vrsqrt.pop %v2481
        %v2483 = vmul.f32 %v2482, %v2481
        %v2484 = vmul.f32 %v2483, %v2482
        %v2485 = vmul.f32 0.5, %v2484
        %v2486 = vsub.f32 1.5, %v2485
        %v2487 = vmul.f32 %v2482, %v2486
        %vm2488 = vweird.f32 %v2481
        %vm2489 = vweird.f32 %v2482
        %vm2490 = vmor %vm2488, %vm2489
        %v2491 = vsel %vm2490, %v2482, %v2487
        %v2492 = vmul.f32 %v2476, %v2491
        %v2493 = vperm.slane %v2471, 0
        %v2494 = vmul.f32 %v2492, %v2493
        %v2495 = vperm.slane %v2472, 0
        %v2496 = vadd.f32 %v2494, %v2495
        %s2497 = scalar_lea.vmem %s2, 384
        %v2498 = vld [vmem:[%s2497] sm:$0xf]
        %v2499 = vld [vmem:[%s2497 + $0x4] sm:$0xf]
        %v2500 = vld [vmem:[%s2497 + $0x8] sm:$0xf]
        %v2501 = vld [vmem:[%s2497 + $0xc] sm:$0xf]
        %v2502 = vld [vmem:[%s2497 + $0x10] sm:$0xf]
        %v2503 = vld [vmem:[%s2497 + $0x14] sm:$0xf]
        %v2504 = vld [vmem:[%s2497 + $0x18] sm:$0xf]
        %v2505 = vld [vmem:[%s2497 + $0x1c] sm:$0xf]
        %v2506 = vld [vmem:[%s2497 + $0x20] sm:$0xf]
        %v2507 = vld [vmem:[%s2497 + $0x24] sm:$0xf]
        %v2508 = vld [vmem:[%s2497 + $0x28] sm:$0xf]
        %v2509 = vld [vmem:[%s2497 + $0x2c] sm:$0xf]
        %v2510 = vld [vmem:[%s2497 + $0x30] sm:$0xf]
        %v2511 = vld [vmem:[%s2497 + $0x34] sm:$0xf]
        %v2512 = vld [vmem:[%s2497 + $0x38] sm:$0xf]
        %v2513 = vld [vmem:[%s2497 + $0x3c] sm:$0xf]
        %v2514 = vld [vmem:[%s3 + $0x12] sm:$0x1]
        %s2515 = scalar_lea.vmem %s2, 448
        %v2516 = vld [vmem:[%s2515] sm:$0xf]
        %v2517 = vld [vmem:[%s2515 + $0x4] sm:$0xf]
        %v2518 = vld [vmem:[%s2515 + $0x8] sm:$0xf]
        %v2519 = vld [vmem:[%s2515 + $0xc] sm:$0xf]
        %v2520 = vld [vmem:[%s2515 + $0x10] sm:$0xf]
        %v2521 = vld [vmem:[%s2515 + $0x14] sm:$0xf]
        %v2522 = vld [vmem:[%s2515 + $0x18] sm:$0xf]
        %v2523 = vld [vmem:[%s2515 + $0x1c] sm:$0xf]
        %v2524 = vld [vmem:[%s2515 + $0x20] sm:$0xf]
        %v2525 = vld [vmem:[%s2515 + $0x24] sm:$0xf]
        %v2526 = vld [vmem:[%s2515 + $0x28] sm:$0xf]
        %v2527 = vld [vmem:[%s2515 + $0x2c] sm:$0xf]
        %v2528 = vld [vmem:[%s2515 + $0x30] sm:$0xf]
        %v2529 = vld [vmem:[%s2515 + $0x34] sm:$0xf]
        %v2530 = vld [vmem:[%s2515 + $0x38] sm:$0xf]
        %v2531 = vld [vmem:[%s2515 + $0x3c] sm:$0xf]
        %v2532 = vld [vmem:[%s3 + $0x13] sm:$0x1]
        %s2533 = scalar_lea.vmem %s2, 512
        %v2534 = vld [vmem:[%s2533] sm:$0xf]
        %v2535 = vld [vmem:[%s2533 + $0x4] sm:$0xf]
        %v2536 = vld [vmem:[%s2533 + $0x8] sm:$0xf]
        %v2537 = vld [vmem:[%s2533 + $0xc] sm:$0xf]
        %v2538 = vld [vmem:[%s2533 + $0x10] sm:$0xf]
        %v2539 = vld [vmem:[%s2533 + $0x14] sm:$0xf]
        %v2540 = vld [vmem:[%s2533 + $0x18] sm:$0xf]
        %v2541 = vld [vmem:[%s2533 + $0x1c] sm:$0xf]
        %v2542 = vld [vmem:[%s2533 + $0x20] sm:$0xf]
        %v2543 = vld [vmem:[%s2533 + $0x24] sm:$0xf]
        %v2544 = vld [vmem:[%s2533 + $0x28] sm:$0xf]
        %v2545 = vld [vmem:[%s2533 + $0x2c] sm:$0xf]
        %v2546 = vld [vmem:[%s2533 + $0x30] sm:$0xf]
        %v2547 = vld [vmem:[%s2533 + $0x34] sm:$0xf]
        %v2548 = vld [vmem:[%s2533 + $0x38] sm:$0xf]
        %v2549 = vld [vmem:[%s2533 + $0x3c] sm:$0xf]
        %v2550 = vld [vmem:[%s3 + $0x14] sm:$0x1]
        %v2551 = vperm.slane %v2514, 0
        %v2568 = vunpack.c.l.b16 %v2498
        %v2569 = vunpack.c.l.b16 %v2499
        %v2570 = vunpack.c.l.b16 %v2500
        %v2571 = vunpack.c.l.b16 %v2501
        %v2572 = vunpack.c.l.b16 %v2502
        %v2573 = vunpack.c.l.b16 %v2503
        %v2574 = vunpack.c.l.b16 %v2504
        %v2575 = vunpack.c.l.b16 %v2505
        %v2576 = vunpack.c.l.b16 %v2506
        %v2577 = vunpack.c.l.b16 %v2507
        %v2578 = vunpack.c.l.b16 %v2508
        %v2579 = vunpack.c.l.b16 %v2509
        %v2580 = vunpack.c.l.b16 %v2510
        %v2581 = vunpack.c.l.b16 %v2511
        %v2582 = vunpack.c.l.b16 %v2512
        %v2583 = vunpack.c.l.b16 %v2513
        %v2584 = vpack.c.b16 %v2569, %v2568
        %v2585 = vpack.c.b16 %v2571, %v2570
        %v2586 = vpack.c.b16 %v2573, %v2572
        %v2587 = vpack.c.b16 %v2575, %v2574
        %v2588 = vpack.c.b16 %v2577, %v2576
        %v2589 = vpack.c.b16 %v2579, %v2578
        %v2590 = vpack.c.b16 %v2581, %v2580
        %v2591 = vpack.c.b16 %v2583, %v2582
        %2600 = vmatpush.bf16.msra.mxu0 %v2591
        %2601 = vmatpush.bf16.msra.mxu0 %v2590
        %2602 = vmatpush.bf16.msra.mxu0 %v2589
        %2603 = vmatpush.bf16.msra.mxu0 %v2588
        %2604 = vmatpush.bf16.msra.mxu0 %v2587
        %2605 = vmatpush.bf16.msra.mxu0 %v2586
        %2606 = vmatpush.bf16.msra.mxu0 %v2585
        %2607 = vmatpush.bf16.msra.mxu0 %v2584
        %2608 = vmatmul.bf16.gmra.mxu0 %v1385
        %v2609 = vpop.f32.mrf.mxu0
        %v2610 = vadd.f32 %v2551, %v2609
        %v2611 = vpop.f32.mrf.mxu0
        %v2612 = vadd.f32 %v2551, %v2611
        %2613 = vmatmul.bf16.gmra.mxu0 %v1386
        %v2614 = vpop.f32.mrf.mxu0
        %v2615 = vadd.f32 %v2551, %v2614
        %v2616 = vpop.f32.mrf.mxu0
        %v2617 = vadd.f32 %v2551, %v2616
        %2618 = vmatmul.bf16.gmra.mxu0 %v1387
        %v2619 = vpop.f32.mrf.mxu0
        %v2620 = vadd.f32 %v2551, %v2619
        %v2621 = vpop.f32.mrf.mxu0
        %v2622 = vadd.f32 %v2551, %v2621
        %2623 = vmatmul.bf16.gmra.mxu0 %v1388
        %v2624 = vpop.f32.mrf.mxu0
        %v2625 = vadd.f32 %v2551, %v2624
        %v2626 = vpop.f32.mrf.mxu0
        %v2627 = vadd.f32 %v2551, %v2626
        %2628 = vdwg.mxu0
        %v2629 = vpack.c.bf16 %v2496, %v2496
        %v2630 = vperm.slane %v2532, 0
        %v2647 = vunpack.c.l.b16 %v2516
        %v2648 = vunpack.c.l.b16 %v2517
        %v2649 = vunpack.c.l.b16 %v2518
        %v2650 = vunpack.c.l.b16 %v2519
        %v2651 = vunpack.c.l.b16 %v2520
        %v2652 = vunpack.c.l.b16 %v2521
        %v2653 = vunpack.c.l.b16 %v2522
        %v2654 = vunpack.c.l.b16 %v2523
        %v2655 = vunpack.c.l.b16 %v2524
        %v2656 = vunpack.c.l.b16 %v2525
        %v2657 = vunpack.c.l.b16 %v2526
        %v2658 = vunpack.c.l.b16 %v2527
        %v2659 = vunpack.c.l.b16 %v2528
        %v2660 = vunpack.c.l.b16 %v2529
        %v2661 = vunpack.c.l.b16 %v2530
        %v2662 = vunpack.c.l.b16 %v2531
        %v2663 = vpack.c.b16 %v2648, %v2647
        %v2664 = vpack.c.b16 %v2650, %v2649
        %v2665 = vpack.c.b16 %v2652, %v2651
        %v2666 = vpack.c.b16 %v2654, %v2653
        %v2667 = vpack.c.b16 %v2656, %v2655
        %v2668 = vpack.c.b16 %v2658, %v2657
        %v2669 = vpack.c.b16 %v2660, %v2659
        %v2670 = vpack.c.b16 %v2662, %v2661
        %2679 = vmatpush.bf16.msra.mxu0 %v2670
        %2680 = vmatpush.bf16.msra.mxu0 %v2669
        %2681 = vmatpush.bf16.msra.mxu0 %v2668
        %2682 = vmatpush.bf16.msra.mxu0 %v2667
        %2683 = vmatpush.bf16.msra.mxu0 %v2666
        %2684 = vmatpush.bf16.msra.mxu0 %v2665
        %2685 = vmatpush.bf16.msra.mxu0 %v2664
        %2686 = vmatpush.bf16.msra.mxu0 %v2663
        %2687 = vmatmul.bf16.gmra.mxu0 %v2629
        %v2688 = vpop.f32.mrf.mxu0
        %v2689 = vadd.f32 %v2630, %v2688
        %v2690 = vpop.f32.mrf.mxu0
        %2691 = vdwg.mxu0
        %v2692 = vperm.slane %v2550, 0
        %v2709 = vunpack.c.l.b16 %v2534
        %v2710 = vunpack.c.l.b16 %v2535
        %v2711 = vunpack.c.l.b16 %v2536
        %v2712 = vunpack.c.l.b16 %v2537
        %v2713 = vunpack.c.l.b16 %v2538
        %v2714 = vunpack.c.l.b16 %v2539
        %v2715 = vunpack.c.l.b16 %v2540
        %v2716 = vunpack.c.l.b16 %v2541
        %v2717 = vunpack.c.l.b16 %v2542
        %v2718 = vunpack.c.l.b16 %v2543
        %v2719 = vunpack.c.l.b16 %v2544
        %v2720 = vunpack.c.l.b16 %v2545
        %v2721 = vunpack.c.l.b16 %v2546
        %v2722 = vunpack.c.l.b16 %v2547
        %v2723 = vunpack.c.l.b16 %v2548
        %v2724 = vunpack.c.l.b16 %v2549
        %v2725 = vpack.c.b16 %v2710, %v2709
        %v2726 = vpack.c.b16 %v2712, %v2711
        %v2727 = vpack.c.b16 %v2714, %v2713
        %v2728 = vpack.c.b16 %v2716, %v2715
        %v2729 = vpack.c.b16 %v2718, %v2717
        %v2730 = vpack.c.b16 %v2720, %v2719
        %v2731 = vpack.c.b16 %v2722, %v2721
        %v2732 = vpack.c.b16 %v2724, %v2723
        %2741 = vmatpush.bf16.msra.mxu0 %v2732
        %2742 = vmatpush.bf16.msra.mxu0 %v2731
        %2743 = vmatpush.bf16.msra.mxu0 %v2730
        %2744 = vmatpush.bf16.msra.mxu0 %v2729
        %2745 = vmatpush.bf16.msra.mxu0 %v2728
        %2746 = vmatpush.bf16.msra.mxu0 %v2727
        %2747 = vmatpush.bf16.msra.mxu0 %v2726
        %2748 = vmatpush.bf16.msra.mxu0 %v2725
        %2749 = vmatmul.bf16.gmra.mxu0 %v2629
        %v2750 = vpop.f32.mrf.mxu0
        %v2751 = vadd.f32 %v2692, %v2750
        %v2752 = vpop.f32.mrf.mxu0
        %2753 = vdwg.mxu0
        %v2754 = vmul.f32 %v2610, 0.17677669
        %v2755 = vmul.f32 %v2612, 0.17677669
        %v2756 = vmul.f32 %v2615, 0.17677669
        %v2757 = vmul.f32 %v2617, 0.17677669
        %v2758 = vmul.f32 %v2620, 0.17677669
        %v2759 = vmul.f32 %v2622, 0.17677669
        %v2760 = vmul.f32 %v2625, 0.17677669
        %v2761 = vmul.f32 %v2627, 0.17677669
        %v2762 = vpack.c.bf16 %v2755, %v2754
        %v2763 = vpack.c.bf16 %v2757, %v2756
        %v2764 = vpack.c.bf16 %v2759, %v2758
        %v2765 = vpack.c.bf16 %v2761, %v2760
        %v2766 = vpack.c.bf16 %v2689, %v2689
        %v2767 = vpack.c.bf16 %v2751, %v2751
        %v2769 = vsel %vm1000, %v2762, 0
        %v2772 = vsel %vm1000, %v2763, 0
        %v2775 = vsel %vm1000, %v2764, 0
        %v2778 = vsel %vm1000, %v2765, 0
        %v2781 = vsel %vm1000, %v2766, 0
        %2783 = vmatpush.bf16.xpose.msra.mxu0 0
        %2784 = vmatpush.bf16.xpose.msra.mxu0 0
        %2785 = vmatpush.bf16.xpose.msra.mxu0 0
        %2786 = vmatpush.bf16.xpose.msra.mxu0 0
        %2787 = vmatpush.bf16.xpose.msra.mxu0 0
        %2788 = vmatpush.bf16.xpose.msra.mxu0 0
        %2789 = vmatpush.bf16.xpose.msra.mxu0 0
        %2790 = vmatpush.bf16.xpose.msra.mxu0 %v2781
        %2791 = vmatmul.bf16.gmra.mxu0 %v2769
        %v2792 = vpop.f32.mrf.mxu0
        %v2793 = vadd.f32 0.0, %v2792
        %v2794 = vpop.f32.mrf.mxu0
        %v2795 = vadd.f32 0.0, %v2794
        %2796 = vmatmul.bf16.gmra.mxu0 %v2772
        %v2797 = vpop.f32.mrf.mxu0
        %v2798 = vadd.f32 0.0, %v2797
        %v2799 = vpop.f32.mrf.mxu0
        %v2800 = vadd.f32 0.0, %v2799
        %2801 = vmatmul.bf16.gmra.mxu0 %v2775
        %v2802 = vpop.f32.mrf.mxu0
        %v2803 = vadd.f32 0.0, %v2802
        %v2804 = vpop.f32.mrf.mxu0
        %v2805 = vadd.f32 0.0, %v2804
        %2806 = vmatmul.bf16.gmra.mxu0 %v2778
        %v2807 = vpop.f32.mrf.mxu0
        %v2808 = vadd.f32 0.0, %v2807
        %v2809 = vpop.f32.mrf.mxu0
        %v2810 = vadd.f32 0.0, %v2809
        %2811 = vdwg.mxu0
        %v2812 = vsel %vm1020, %v2793, -inf
        %2813 = vmax.xlane.f32.xlu0 %v2812
        %v2814 = vpop.xlane.xlu0 %2813
        %v2815 = vsel %vm1020, %v2795, -inf
        %2816 = vmax.xlane.f32.xlu0 %v2815
        %v2817 = vpop.xlane.xlu0 %2816
        %v2818 = vsel %vm1020, %v2798, -inf
        %2819 = vmax.xlane.f32.xlu0 %v2818
        %v2820 = vpop.xlane.xlu0 %2819
        %v2821 = vsel %vm1020, %v2800, -inf
        %2822 = vmax.xlane.f32.xlu0 %v2821
        %v2823 = vpop.xlane.xlu0 %2822
        %v2824 = vsel %vm1020, %v2803, -inf
        %2825 = vmax.xlane.f32.xlu0 %v2824
        %v2826 = vpop.xlane.xlu0 %2825
        %v2827 = vsel %vm1020, %v2805, -inf
        %2828 = vmax.xlane.f32.xlu0 %v2827
        %v2829 = vpop.xlane.xlu0 %2828
        %v2830 = vsel %vm1020, %v2808, -inf
        %2831 = vmax.xlane.f32.xlu0 %v2830
        %v2832 = vpop.xlane.xlu0 %2831
        %v2833 = vsel %vm1020, %v2810, -inf
        %2834 = vmax.xlane.f32.xlu0 %v2833
        %v2835 = vpop.xlane.xlu0 %2834
        %v2836 = vsub.f32 %v2793, %v2814
        %v2837 = vsub.f32 %v2795, %v2817
        %v2838 = vsub.f32 %v2798, %v2820
        %v2839 = vsub.f32 %v2800, %v2823
        %v2840 = vsub.f32 %v2803, %v2826
        %v2841 = vsub.f32 %v2805, %v2829
        %v2842 = vsub.f32 %v2808, %v2832
        %v2843 = vsub.f32 %v2810, %v2835
        %v2844 = vmul.f32 %v2836, 1.442695
        %v2845 = vpow.pop %v2844
        %v2846 = vmul.f32 %v2837, 1.442695
        %v2847 = vpow.pop %v2846
        %v2848 = vmul.f32 %v2838, 1.442695
        %v2849 = vpow.pop %v2848
        %v2850 = vmul.f32 %v2839, 1.442695
        %v2851 = vpow.pop %v2850
        %v2852 = vmul.f32 %v2840, 1.442695
        %v2853 = vpow.pop %v2852
        %v2854 = vmul.f32 %v2841, 1.442695
        %v2855 = vpow.pop %v2854
        %v2856 = vmul.f32 %v2842, 1.442695
        %v2857 = vpow.pop %v2856
        %v2858 = vmul.f32 %v2843, 1.442695
        %v2859 = vpow.pop %v2858
        %v2860 = vsel %vm1020, %v2845, 0.0
        %2861 = vadd.xlane.f32.xlu0 %v2860
        %v2862 = vpop.xlane.xlu0 %2861
        %v2863 = vsel %vm1020, %v2847, 0.0
        %2864 = vadd.xlane.f32.xlu0 %v2863
        %v2865 = vpop.xlane.xlu0 %2864
        %v2866 = vsel %vm1020, %v2849, 0.0
        %2867 = vadd.xlane.f32.xlu0 %v2866
        %v2868 = vpop.xlane.xlu0 %2867
        %v2869 = vsel %vm1020, %v2851, 0.0
        %2870 = vadd.xlane.f32.xlu0 %v2869
        %v2871 = vpop.xlane.xlu0 %2870
        %v2872 = vsel %vm1020, %v2853, 0.0
        %2873 = vadd.xlane.f32.xlu0 %v2872
        %v2874 = vpop.xlane.xlu0 %2873
        %v2875 = vsel %vm1020, %v2855, 0.0
        %2876 = vadd.xlane.f32.xlu0 %v2875
        %v2877 = vpop.xlane.xlu0 %2876
        %v2878 = vsel %vm1020, %v2857, 0.0
        %2879 = vadd.xlane.f32.xlu0 %v2878
        %v2880 = vpop.xlane.xlu0 %2879
        %v2881 = vsel %vm1020, %v2859, 0.0
        %2882 = vadd.xlane.f32.xlu0 %v2881
        %v2883 = vpop.xlane.xlu0 %2882
        %v2884 = vrcp.pop %v2862
        %v2885 = vrcp.pop %v2865
        %v2886 = vrcp.pop %v2868
        %v2887 = vrcp.pop %v2871
        %v2888 = vrcp.pop %v2874
        %v2889 = vrcp.pop %v2877
        %v2890 = vrcp.pop %v2880
        %v2891 = vrcp.pop %v2883
        %v2892 = vmul.f32 %v2845, %v2884
        %v2893 = vmul.f32 %v2847, %v2885
        %v2894 = vmul.f32 %v2849, %v2886
        %v2895 = vmul.f32 %v2851, %v2887
        %v2896 = vmul.f32 %v2853, %v2888
        %v2897 = vmul.f32 %v2855, %v2889
        %v2898 = vmul.f32 %v2857, %v2890
        %v2899 = vmul.f32 %v2859, %v2891
        %v2900 = vpack.c.bf16 %v2893, %v2892
        %v2901 = vpack.c.bf16 %v2895, %v2894
        %v2902 = vpack.c.bf16 %v2897, %v2896
        %v2903 = vpack.c.bf16 %v2899, %v2898
        %v2905 = vsel %vm1020, %v2900, 0
        %v2908 = vsel %vm1020, %v2901, 0
        %v2911 = vsel %vm1020, %v2902, 0
        %v2914 = vsel %vm1020, %v2903, 0
        %v2917 = vsel %vm1036, %v2767, 0
        %2919 = vmatpush.bf16.msra.mxu0 0
        %2920 = vmatpush.bf16.msra.mxu0 0
        %2921 = vmatpush.bf16.msra.mxu0 0
        %2922 = vmatpush.bf16.msra.mxu0 0
        %2923 = vmatpush.bf16.msra.mxu0 0
        %2924 = vmatpush.bf16.msra.mxu0 0
        %2925 = vmatpush.bf16.msra.mxu0 0
        %2926 = vmatpush.bf16.msra.mxu0 %v2917
        %2927 = vmatmul.bf16.gmra.mxu0 %v2905
        %v2928 = vpop.f32.mrf.mxu0
        %v2929 = vadd.f32 0.0, %v2928
        %v2930 = vpop.f32.mrf.mxu0
        %v2931 = vadd.f32 0.0, %v2930
        %2932 = vmatmul.bf16.gmra.mxu0 %v2908
        %v2933 = vpop.f32.mrf.mxu0
        %v2934 = vadd.f32 0.0, %v2933
        %v2935 = vpop.f32.mrf.mxu0
        %v2936 = vadd.f32 0.0, %v2935
        %2937 = vmatmul.bf16.gmra.mxu0 %v2911
        %v2938 = vpop.f32.mrf.mxu0
        %v2939 = vadd.f32 0.0, %v2938
        %v2940 = vpop.f32.mrf.mxu0
        %v2941 = vadd.f32 0.0, %v2940
        %2942 = vmatmul.bf16.gmra.mxu0 %v2914
        %v2943 = vpop.f32.mrf.mxu0
        %v2944 = vadd.f32 0.0, %v2943
        %v2945 = vpop.f32.mrf.mxu0
        %v2946 = vadd.f32 0.0, %v2945
        %2947 = vdwg.mxu0
        %2952 = vrot.lane.b32.xlu0 %v2762, 96
        %v2953 = vpop.permute.xlu0 %2952
        %2954 = vrot.lane.b32.xlu0 %v2763, 96
        %v2955 = vpop.permute.xlu0 %2954
        %2956 = vrot.lane.b32.xlu0 %v2764, 96
        %v2957 = vpop.permute.xlu0 %2956
        %2958 = vrot.lane.b32.xlu0 %v2765, 96
        %v2959 = vpop.permute.xlu0 %2958
        %2961 = vrot.lane.b32.xlu0 %v2766, 96
        %v2962 = vpop.permute.xlu0 %2961
        %v2964 = vsel %vm1000, %v2953, 0
        %v2967 = vsel %vm1000, %v2955, 0
        %v2970 = vsel %vm1000, %v2957, 0
        %v2973 = vsel %vm1000, %v2959, 0
        %v2976 = vsel %vm1000, %v2962, 0
        %2978 = vmatpush.bf16.xpose.msra.mxu0 0
        %2979 = vmatpush.bf16.xpose.msra.mxu0 0
        %2980 = vmatpush.bf16.xpose.msra.mxu0 0
        %2981 = vmatpush.bf16.xpose.msra.mxu0 0
        %2982 = vmatpush.bf16.xpose.msra.mxu0 0
        %2983 = vmatpush.bf16.xpose.msra.mxu0 0
        %2984 = vmatpush.bf16.xpose.msra.mxu0 0
        %2985 = vmatpush.bf16.xpose.msra.mxu0 %v2976
        %2986 = vmatmul.bf16.gmra.mxu0 %v2964
        %v2987 = vpop.f32.mrf.mxu0
        %v2988 = vadd.f32 0.0, %v2987
        %v2989 = vpop.f32.mrf.mxu0
        %v2990 = vadd.f32 0.0, %v2989
        %2991 = vmatmul.bf16.gmra.mxu0 %v2967
        %v2992 = vpop.f32.mrf.mxu0
        %v2993 = vadd.f32 0.0, %v2992
        %v2994 = vpop.f32.mrf.mxu0
        %v2995 = vadd.f32 0.0, %v2994
        %2996 = vmatmul.bf16.gmra.mxu0 %v2970
        %v2997 = vpop.f32.mrf.mxu0
        %v2998 = vadd.f32 0.0, %v2997
        %v2999 = vpop.f32.mrf.mxu0
        %v3000 = vadd.f32 0.0, %v2999
        %3001 = vmatmul.bf16.gmra.mxu0 %v2973
        %v3002 = vpop.f32.mrf.mxu0
        %v3003 = vadd.f32 0.0, %v3002
        %v3004 = vpop.f32.mrf.mxu0
        %v3005 = vadd.f32 0.0, %v3004
        %3006 = vdwg.mxu0
        %v3007 = vsel %vm1020, %v2988, -inf
        %3008 = vmax.xlane.f32.xlu0 %v3007
        %v3009 = vpop.xlane.xlu0 %3008
        %v3010 = vsel %vm1020, %v2990, -inf
        %3011 = vmax.xlane.f32.xlu0 %v3010
        %v3012 = vpop.xlane.xlu0 %3011
        %v3013 = vsel %vm1020, %v2993, -inf
        %3014 = vmax.xlane.f32.xlu0 %v3013
        %v3015 = vpop.xlane.xlu0 %3014
        %v3016 = vsel %vm1020, %v2995, -inf
        %3017 = vmax.xlane.f32.xlu0 %v3016
        %v3018 = vpop.xlane.xlu0 %3017
        %v3019 = vsel %vm1020, %v2998, -inf
        %3020 = vmax.xlane.f32.xlu0 %v3019
        %v3021 = vpop.xlane.xlu0 %3020
        %v3022 = vsel %vm1020, %v3000, -inf
        %3023 = vmax.xlane.f32.xlu0 %v3022
        %v3024 = vpop.xlane.xlu0 %3023
        %v3025 = vsel %vm1020, %v3003, -inf
        %3026 = vmax.xlane.f32.xlu0 %v3025
        %v3027 = vpop.xlane.xlu0 %3026
        %v3028 = vsel %vm1020, %v3005, -inf
        %3029 = vmax.xlane.f32.xlu0 %v3028
        %v3030 = vpop.xlane.xlu0 %3029
        %v3031 = vsub.f32 %v2988, %v3009
        %v3032 = vsub.f32 %v2990, %v3012
        %v3033 = vsub.f32 %v2993, %v3015
        %v3034 = vsub.f32 %v2995, %v3018
        %v3035 = vsub.f32 %v2998, %v3021
        %v3036 = vsub.f32 %v3000, %v3024
        %v3037 = vsub.f32 %v3003, %v3027
        %v3038 = vsub.f32 %v3005, %v3030
        %v3039 = vmul.f32 %v3031, 1.442695
        %v3040 = vpow.pop %v3039
        %v3041 = vmul.f32 %v3032, 1.442695
        %v3042 = vpow.pop %v3041
        %v3043 = vmul.f32 %v3033, 1.442695
        %v3044 = vpow.pop %v3043
        %v3045 = vmul.f32 %v3034, 1.442695
        %v3046 = vpow.pop %v3045
        %v3047 = vmul.f32 %v3035, 1.442695
        %v3048 = vpow.pop %v3047
        %v3049 = vmul.f32 %v3036, 1.442695
        %v3050 = vpow.pop %v3049
        %v3051 = vmul.f32 %v3037, 1.442695
        %v3052 = vpow.pop %v3051
        %v3053 = vmul.f32 %v3038, 1.442695
        %v3054 = vpow.pop %v3053
        %v3055 = vsel %vm1020, %v3040, 0.0
        %3056 = vadd.xlane.f32.xlu0 %v3055
        %v3057 = vpop.xlane.xlu0 %3056
        %v3058 = vsel %vm1020, %v3042, 0.0
        %3059 = vadd.xlane.f32.xlu0 %v3058
        %v3060 = vpop.xlane.xlu0 %3059
        %v3061 = vsel %vm1020, %v3044, 0.0
        %3062 = vadd.xlane.f32.xlu0 %v3061
        %v3063 = vpop.xlane.xlu0 %3062
        %v3064 = vsel %vm1020, %v3046, 0.0
        %3065 = vadd.xlane.f32.xlu0 %v3064
        %v3066 = vpop.xlane.xlu0 %3065
        %v3067 = vsel %vm1020, %v3048, 0.0
        %3068 = vadd.xlane.f32.xlu0 %v3067
        %v3069 = vpop.xlane.xlu0 %3068
        %v3070 = vsel %vm1020, %v3050, 0.0
        %3071 = vadd.xlane.f32.xlu0 %v3070
        %v3072 = vpop.xlane.xlu0 %3071
        %v3073 = vsel %vm1020, %v3052, 0.0
        %3074 = vadd.xlane.f32.xlu0 %v3073
        %v3075 = vpop.xlane.xlu0 %3074
        %v3076 = vsel %vm1020, %v3054, 0.0
        %3077 = vadd.xlane.f32.xlu0 %v3076
        %v3078 = vpop.xlane.xlu0 %3077
        %v3079 = vrcp.pop %v3057
        %v3080 = vrcp.pop %v3060
        %v3081 = vrcp.pop %v3063
        %v3082 = vrcp.pop %v3066
        %v3083 = vrcp.pop %v3069
        %v3084 = vrcp.pop %v3072
        %v3085 = vrcp.pop %v3075
        %v3086 = vrcp.pop %v3078
        %v3087 = vmul.f32 %v3040, %v3079
        %v3088 = vmul.f32 %v3042, %v3080
        %v3089 = vmul.f32 %v3044, %v3081
        %v3090 = vmul.f32 %v3046, %v3082
        %v3091 = vmul.f32 %v3048, %v3083
        %v3092 = vmul.f32 %v3050, %v3084
        %v3093 = vmul.f32 %v3052, %v3085
        %v3094 = vmul.f32 %v3054, %v3086
        %v3095 = vpack.c.bf16 %v3088, %v3087
        %v3096 = vpack.c.bf16 %v3090, %v3089
        %v3097 = vpack.c.bf16 %v3092, %v3091
        %v3098 = vpack.c.bf16 %v3094, %v3093
        %3100 = vrot.lane.b32.xlu0 %v2767, 96
        %v3101 = vpop.permute.xlu0 %3100
        %v3103 = vsel %vm1020, %v3095, 0
        %v3106 = vsel %vm1020, %v3096, 0
        %v3109 = vsel %vm1020, %v3097, 0
        %v3112 = vsel %vm1020, %v3098, 0
        %v3115 = vsel %vm1036, %v3101, 0
        %3117 = vmatpush.bf16.msra.mxu0 0
        %3118 = vmatpush.bf16.msra.mxu0 0
        %3119 = vmatpush.bf16.msra.mxu0 0
        %3120 = vmatpush.bf16.msra.mxu0 0
        %3121 = vmatpush.bf16.msra.mxu0 0
        %3122 = vmatpush.bf16.msra.mxu0 0
        %3123 = vmatpush.bf16.msra.mxu0 0
        %3124 = vmatpush.bf16.msra.mxu0 %v3115
        %3125 = vmatmul.bf16.gmra.mxu0 %v3103
        %v3126 = vpop.f32.mrf.mxu0
        %v3127 = vadd.f32 0.0, %v3126
        %v3128 = vpop.f32.mrf.mxu0
        %v3129 = vadd.f32 0.0, %v3128
        %3130 = vmatmul.bf16.gmra.mxu0 %v3106
        %v3131 = vpop.f32.mrf.mxu0
        %v3132 = vadd.f32 0.0, %v3131
        %v3133 = vpop.f32.mrf.mxu0
        %v3134 = vadd.f32 0.0, %v3133
        %3135 = vmatmul.bf16.gmra.mxu0 %v3109
        %v3136 = vpop.f32.mrf.mxu0
        %v3137 = vadd.f32 0.0, %v3136
        %v3138 = vpop.f32.mrf.mxu0
        %v3139 = vadd.f32 0.0, %v3138
        %3140 = vmatmul.bf16.gmra.mxu0 %v3112
        %v3141 = vpop.f32.mrf.mxu0
        %v3142 = vadd.f32 0.0, %v3141
        %v3143 = vpop.f32.mrf.mxu0
        %v3144 = vadd.f32 0.0, %v3143
        %3145 = vdwg.mxu0
        %3146 = vrot.lane.b32.xlu0 %v2762, 64
        %v3147 = vpop.permute.xlu0 %3146
        %3148 = vrot.lane.b32.xlu0 %v2763, 64
        %v3149 = vpop.permute.xlu0 %3148
        %3150 = vrot.lane.b32.xlu0 %v2764, 64
        %v3151 = vpop.permute.xlu0 %3150
        %3152 = vrot.lane.b32.xlu0 %v2765, 64
        %v3153 = vpop.permute.xlu0 %3152
        %3154 = vrot.lane.b32.xlu0 %v2766, 64
        %v3155 = vpop.permute.xlu0 %3154
        %v3157 = vsel %vm1000, %v3147, 0
        %v3160 = vsel %vm1000, %v3149, 0
        %v3163 = vsel %vm1000, %v3151, 0
        %v3166 = vsel %vm1000, %v3153, 0
        %v3169 = vsel %vm1000, %v3155, 0
        %3171 = vmatpush.bf16.xpose.msra.mxu0 0
        %3172 = vmatpush.bf16.xpose.msra.mxu0 0
        %3173 = vmatpush.bf16.xpose.msra.mxu0 0
        %3174 = vmatpush.bf16.xpose.msra.mxu0 0
        %3175 = vmatpush.bf16.xpose.msra.mxu0 0
        %3176 = vmatpush.bf16.xpose.msra.mxu0 0
        %3177 = vmatpush.bf16.xpose.msra.mxu0 0
        %3178 = vmatpush.bf16.xpose.msra.mxu0 %v3169
        %3179 = vmatmul.bf16.gmra.mxu0 %v3157
        %v3180 = vpop.f32.mrf.mxu0
        %v3181 = vadd.f32 0.0, %v3180
        %v3182 = vpop.f32.mrf.mxu0
        %v3183 = vadd.f32 0.0, %v3182
        %3184 = vmatmul.bf16.gmra.mxu0 %v3160
        %v3185 = vpop.f32.mrf.mxu0
        %v3186 = vadd.f32 0.0, %v3185
        %v3187 = vpop.f32.mrf.mxu0
        %v3188 = vadd.f32 0.0, %v3187
        %3189 = vmatmul.bf16.gmra.mxu0 %v3163
        %v3190 = vpop.f32.mrf.mxu0
        %v3191 = vadd.f32 0.0, %v3190
        %v3192 = vpop.f32.mrf.mxu0
        %v3193 = vadd.f32 0.0, %v3192
        %3194 = vmatmul.bf16.gmra.mxu0 %v3166
        %v3195 = vpop.f32.mrf.mxu0
        %v3196 = vadd.f32 0.0, %v3195
        %v3197 = vpop.f32.mrf.mxu0
        %v3198 = vadd.f32 0.0, %v3197
        %3199 = vdwg.mxu0
        %v3200 = vsel %vm1020, %v3181, -inf
        %3201 = vmax.xlane.f32.xlu0 %v3200
        %v3202 = vpop.xlane.xlu0 %3201
        %v3203 = vsel %vm1020, %v3183, -inf
        %3204 = vmax.xlane.f32.xlu0 %v3203
        %v3205 = vpop.xlane.xlu0 %3204
        %v3206 = vsel %vm1020, %v3186, -inf
        %3207 = vmax.xlane.f32.xlu0 %v3206
        %v3208 = vpop.xlane.xlu0 %3207
        %v3209 = vsel %vm1020, %v3188, -inf
        %3210 = vmax.xlane.f32.xlu0 %v3209
        %v3211 = vpop.xlane.xlu0 %3210
        %v3212 = vsel %vm1020, %v3191, -inf
        %3213 = vmax.xlane.f32.xlu0 %v3212
        %v3214 = vpop.xlane.xlu0 %3213
        %v3215 = vsel %vm1020, %v3193, -inf
        %3216 = vmax.xlane.f32.xlu0 %v3215
        %v3217 = vpop.xlane.xlu0 %3216
        %v3218 = vsel %vm1020, %v3196, -inf
        %3219 = vmax.xlane.f32.xlu0 %v3218
        %v3220 = vpop.xlane.xlu0 %3219
        %v3221 = vsel %vm1020, %v3198, -inf
        %3222 = vmax.xlane.f32.xlu0 %v3221
        %v3223 = vpop.xlane.xlu0 %3222
        %v3224 = vsub.f32 %v3181, %v3202
        %v3225 = vsub.f32 %v3183, %v3205
        %v3226 = vsub.f32 %v3186, %v3208
        %v3227 = vsub.f32 %v3188, %v3211
        %v3228 = vsub.f32 %v3191, %v3214
        %v3229 = vsub.f32 %v3193, %v3217
        %v3230 = vsub.f32 %v3196, %v3220
        %v3231 = vsub.f32 %v3198, %v3223
        %v3232 = vmul.f32 %v3224, 1.442695
        %v3233 = vpow.pop %v3232
        %v3234 = vmul.f32 %v3225, 1.442695
        %v3235 = vpow.pop %v3234
        %v3236 = vmul.f32 %v3226, 1.442695
        %v3237 = vpow.pop %v3236
        %v3238 = vmul.f32 %v3227, 1.442695
        %v3239 = vpow.pop %v3238
        %v3240 = vmul.f32 %v3228, 1.442695
        %v3241 = vpow.pop %v3240
        %v3242 = vmul.f32 %v3229, 1.442695
        %v3243 = vpow.pop %v3242
        %v3244 = vmul.f32 %v3230, 1.442695
        %v3245 = vpow.pop %v3244
        %v3246 = vmul.f32 %v3231, 1.442695
        %v3247 = vpow.pop %v3246
        %v3248 = vsel %vm1020, %v3233, 0.0
        %3249 = vadd.xlane.f32.xlu0 %v3248
        %v3250 = vpop.xlane.xlu0 %3249
        %v3251 = vsel %vm1020, %v3235, 0.0
        %3252 = vadd.xlane.f32.xlu0 %v3251
        %v3253 = vpop.xlane.xlu0 %3252
        %v3254 = vsel %vm1020, %v3237, 0.0
        %3255 = vadd.xlane.f32.xlu0 %v3254
        %v3256 = vpop.xlane.xlu0 %3255
        %v3257 = vsel %vm1020, %v3239, 0.0
        %3258 = vadd.xlane.f32.xlu0 %v3257
        %v3259 = vpop.xlane.xlu0 %3258
        %v3260 = vsel %vm1020, %v3241, 0.0
        %3261 = vadd.xlane.f32.xlu0 %v3260
        %v3262 = vpop.xlane.xlu0 %3261
        %v3263 = vsel %vm1020, %v3243, 0.0
        %3264 = vadd.xlane.f32.xlu0 %v3263
        %v3265 = vpop.xlane.xlu0 %3264
        %v3266 = vsel %vm1020, %v3245, 0.0
        %3267 = vadd.xlane.f32.xlu0 %v3266
        %v3268 = vpop.xlane.xlu0 %3267
        %v3269 = vsel %vm1020, %v3247, 0.0
        %3270 = vadd.xlane.f32.xlu0 %v3269
        %v3271 = vpop.xlane.xlu0 %3270
        %v3272 = vrcp.pop %v3250
        %v3273 = vrcp.pop %v3253
        %v3274 = vrcp.pop %v3256
        %v3275 = vrcp.pop %v3259
        %v3276 = vrcp.pop %v3262
        %v3277 = vrcp.pop %v3265
        %v3278 = vrcp.pop %v3268
        %v3279 = vrcp.pop %v3271
        %v3280 = vmul.f32 %v3233, %v3272
        %v3281 = vmul.f32 %v3235, %v3273
        %v3282 = vmul.f32 %v3237, %v3274
        %v3283 = vmul.f32 %v3239, %v3275
        %v3284 = vmul.f32 %v3241, %v3276
        %v3285 = vmul.f32 %v3243, %v3277
        %v3286 = vmul.f32 %v3245, %v3278
        %v3287 = vmul.f32 %v3247, %v3279
        %v3288 = vpack.c.bf16 %v3281, %v3280
        %v3289 = vpack.c.bf16 %v3283, %v3282
        %v3290 = vpack.c.bf16 %v3285, %v3284
        %v3291 = vpack.c.bf16 %v3287, %v3286
        %3292 = vrot.lane.b32.xlu0 %v2767, 64
        %v3293 = vpop.permute.xlu0 %3292
        %v3295 = vsel %vm1020, %v3288, 0
        %v3298 = vsel %vm1020, %v3289, 0
        %v3301 = vsel %vm1020, %v3290, 0
        %v3304 = vsel %vm1020, %v3291, 0
        %v3307 = vsel %vm1036, %v3293, 0
        %3309 = vmatpush.bf16.msra.mxu0 0
        %3310 = vmatpush.bf16.msra.mxu0 0
        %3311 = vmatpush.bf16.msra.mxu0 0
        %3312 = vmatpush.bf16.msra.mxu0 0
        %3313 = vmatpush.bf16.msra.mxu0 0
        %3314 = vmatpush.bf16.msra.mxu0 0
        %3315 = vmatpush.bf16.msra.mxu0 0
        %3316 = vmatpush.bf16.msra.mxu0 %v3307
        %3317 = vmatmul.bf16.gmra.mxu0 %v3295
        %v3318 = vpop.f32.mrf.mxu0
        %v3319 = vadd.f32 0.0, %v3318
        %v3320 = vpop.f32.mrf.mxu0
        %v3321 = vadd.f32 0.0, %v3320
        %3322 = vmatmul.bf16.gmra.mxu0 %v3298
        %v3323 = vpop.f32.mrf.mxu0
        %v3324 = vadd.f32 0.0, %v3323
        %v3325 = vpop.f32.mrf.mxu0
        %v3326 = vadd.f32 0.0, %v3325
        %3327 = vmatmul.bf16.gmra.mxu0 %v3301
        %v3328 = vpop.f32.mrf.mxu0
        %v3329 = vadd.f32 0.0, %v3328
        %v3330 = vpop.f32.mrf.mxu0
        %v3331 = vadd.f32 0.0, %v3330
        %3332 = vmatmul.bf16.gmra.mxu0 %v3304
        %v3333 = vpop.f32.mrf.mxu0
        %v3334 = vadd.f32 0.0, %v3333
        %v3335 = vpop.f32.mrf.mxu0
        %v3336 = vadd.f32 0.0, %v3335
        %3337 = vdwg.mxu0
        %3338 = vrot.lane.b32.xlu0 %v2762, 32
        %v3339 = vpop.permute.xlu0 %3338
        %3340 = vrot.lane.b32.xlu0 %v2763, 32
        %v3341 = vpop.permute.xlu0 %3340
        %3342 = vrot.lane.b32.xlu0 %v2764, 32
        %v3343 = vpop.permute.xlu0 %3342
        %3344 = vrot.lane.b32.xlu0 %v2765, 32
        %v3345 = vpop.permute.xlu0 %3344
        %3346 = vrot.lane.b32.xlu0 %v2766, 32
        %v3347 = vpop.permute.xlu0 %3346
        %v3349 = vsel %vm1000, %v3339, 0
        %v3352 = vsel %vm1000, %v3341, 0
        %v3355 = vsel %vm1000, %v3343, 0
        %v3358 = vsel %vm1000, %v3345, 0
        %v3361 = vsel %vm1000, %v3347, 0
        %3363 = vmatpush.bf16.xpose.msra.mxu0 0
        %3364 = vmatpush.bf16.xpose.msra.mxu0 0
        %3365 = vmatpush.bf16.xpose.msra.mxu0 0
        %3366 = vmatpush.bf16.xpose.msra.mxu0 0
        %3367 = vmatpush.bf16.xpose.msra.mxu0 0
        %3368 = vmatpush.bf16.xpose.msra.mxu0 0
        %3369 = vmatpush.bf16.xpose.msra.mxu0 0
        %3370 = vmatpush.bf16.xpose.msra.mxu0 %v3361
        %3371 = vmatmul.bf16.gmra.mxu0 %v3349
        %v3372 = vpop.f32.mrf.mxu0
        %v3373 = vadd.f32 0.0, %v3372
        %v3374 = vpop.f32.mrf.mxu0
        %v3375 = vadd.f32 0.0, %v3374
        %3376 = vmatmul.bf16.gmra.mxu0 %v3352
        %v3377 = vpop.f32.mrf.mxu0
        %v3378 = vadd.f32 0.0, %v3377
        %v3379 = vpop.f32.mrf.mxu0
        %v3380 = vadd.f32 0.0, %v3379
        %3381 = vmatmul.bf16.gmra.mxu0 %v3355
        %v3382 = vpop.f32.mrf.mxu0
        %v3383 = vadd.f32 0.0, %v3382
        %v3384 = vpop.f32.mrf.mxu0
        %v3385 = vadd.f32 0.0, %v3384
        %3386 = vmatmul.bf16.gmra.mxu0 %v3358
        %v3387 = vpop.f32.mrf.mxu0
        %v3388 = vadd.f32 0.0, %v3387
        %v3389 = vpop.f32.mrf.mxu0
        %v3390 = vadd.f32 0.0, %v3389
        %3391 = vdwg.mxu0
        %v3392 = vsel %vm1020, %v3373, -inf
        %3393 = vmax.xlane.f32.xlu0 %v3392
        %v3394 = vpop.xlane.xlu0 %3393
        %v3395 = vsel %vm1020, %v3375, -inf
        %3396 = vmax.xlane.f32.xlu0 %v3395
        %v3397 = vpop.xlane.xlu0 %3396
        %v3398 = vsel %vm1020, %v3378, -inf
        %3399 = vmax.xlane.f32.xlu0 %v3398
        %v3400 = vpop.xlane.xlu0 %3399
        %v3401 = vsel %vm1020, %v3380, -inf
        %3402 = vmax.xlane.f32.xlu0 %v3401
        %v3403 = vpop.xlane.xlu0 %3402
        %v3404 = vsel %vm1020, %v3383, -inf
        %3405 = vmax.xlane.f32.xlu0 %v3404
        %v3406 = vpop.xlane.xlu0 %3405
        %v3407 = vsel %vm1020, %v3385, -inf
        %3408 = vmax.xlane.f32.xlu0 %v3407
        %v3409 = vpop.xlane.xlu0 %3408
        %v3410 = vsel %vm1020, %v3388, -inf
        %3411 = vmax.xlane.f32.xlu0 %v3410
        %v3412 = vpop.xlane.xlu0 %3411
        %v3413 = vsel %vm1020, %v3390, -inf
        %3414 = vmax.xlane.f32.xlu0 %v3413
        %v3415 = vpop.xlane.xlu0 %3414
        %v3416 = vsub.f32 %v3373, %v3394
        %v3417 = vsub.f32 %v3375, %v3397
        %v3418 = vsub.f32 %v3378, %v3400
        %v3419 = vsub.f32 %v3380, %v3403
        %v3420 = vsub.f32 %v3383, %v3406
        %v3421 = vsub.f32 %v3385, %v3409
        %v3422 = vsub.f32 %v3388, %v3412
        %v3423 = vsub.f32 %v3390, %v3415
        %v3424 = vmul.f32 %v3416, 1.442695
        %v3425 = vpow.pop %v3424
        %v3426 = vmul.f32 %v3417, 1.442695
        %v3427 = vpow.pop %v3426
        %v3428 = vmul.f32 %v3418, 1.442695
        %v3429 = vpow.pop %v3428
        %v3430 = vmul.f32 %v3419, 1.442695
        %v3431 = vpow.pop %v3430
        %v3432 = vmul.f32 %v3420, 1.442695
        %v3433 = vpow.pop %v3432
        %v3434 = vmul.f32 %v3421, 1.442695
        %v3435 = vpow.pop %v3434
        %v3436 = vmul.f32 %v3422, 1.442695
        %v3437 = vpow.pop %v3436
        %v3438 = vmul.f32 %v3423, 1.442695
        %v3439 = vpow.pop %v3438
        %v3440 = vsel %vm1020, %v3425, 0.0
        %3441 = vadd.xlane.f32.xlu0 %v3440
        %v3442 = vpop.xlane.xlu0 %3441
        %v3443 = vsel %vm1020, %v3427, 0.0
        %3444 = vadd.xlane.f32.xlu0 %v3443
        %v3445 = vpop.xlane.xlu0 %3444
        %v3446 = vsel %vm1020, %v3429, 0.0
        %3447 = vadd.xlane.f32.xlu0 %v3446
        %v3448 = vpop.xlane.xlu0 %3447
        %v3449 = vsel %vm1020, %v3431, 0.0
        %3450 = vadd.xlane.f32.xlu0 %v3449
        %v3451 = vpop.xlane.xlu0 %3450
        %v3452 = vsel %vm1020, %v3433, 0.0
        %3453 = vadd.xlane.f32.xlu0 %v3452
        %v3454 = vpop.xlane.xlu0 %3453
        %v3455 = vsel %vm1020, %v3435, 0.0
        %3456 = vadd.xlane.f32.xlu0 %v3455
        %v3457 = vpop.xlane.xlu0 %3456
        %v3458 = vsel %vm1020, %v3437, 0.0
        %3459 = vadd.xlane.f32.xlu0 %v3458
        %v3460 = vpop.xlane.xlu0 %3459
        %v3461 = vsel %vm1020, %v3439, 0.0
        %3462 = vadd.xlane.f32.xlu0 %v3461
        %v3463 = vpop.xlane.xlu0 %3462
        %v3464 = vrcp.pop %v3442
        %v3465 = vrcp.pop %v3445
        %v3466 = vrcp.pop %v3448
        %v3467 = vrcp.pop %v3451
        %v3468 = vrcp.pop %v3454
        %v3469 = vrcp.pop %v3457
        %v3470 = vrcp.pop %v3460
        %v3471 = vrcp.pop %v3463
        %v3472 = vmul.f32 %v3425, %v3464
        %v3473 = vmul.f32 %v3427, %v3465
        %v3474 = vmul.f32 %v3429, %v3466
        %v3475 = vmul.f32 %v3431, %v3467
        %v3476 = vmul.f32 %v3433, %v3468
        %v3477 = vmul.f32 %v3435, %v3469
        %v3478 = vmul.f32 %v3437, %v3470
        %v3479 = vmul.f32 %v3439, %v3471
        %v3480 = vpack.c.bf16 %v3473, %v3472
        %v3481 = vpack.c.bf16 %v3475, %v3474
        %v3482 = vpack.c.bf16 %v3477, %v3476
        %v3483 = vpack.c.bf16 %v3479, %v3478
        %3484 = vrot.lane.b32.xlu0 %v2767, 32
        %v3485 = vpop.permute.xlu0 %3484
        %v3487 = vsel %vm1020, %v3480, 0
        %v3490 = vsel %vm1020, %v3481, 0
        %v3493 = vsel %vm1020, %v3482, 0
        %v3496 = vsel %vm1020, %v3483, 0
        %v3499 = vsel %vm1036, %v3485, 0
        %3501 = vmatpush.bf16.msra.mxu0 0
        %3502 = vmatpush.bf16.msra.mxu0 0
        %3503 = vmatpush.bf16.msra.mxu0 0
        %3504 = vmatpush.bf16.msra.mxu0 0
        %3505 = vmatpush.bf16.msra.mxu0 0
        %3506 = vmatpush.bf16.msra.mxu0 0
        %3507 = vmatpush.bf16.msra.mxu0 0
        %3508 = vmatpush.bf16.msra.mxu0 %v3499
        %3509 = vmatmul.bf16.gmra.mxu0 %v3487
        %v3510 = vpop.f32.mrf.mxu0
        %v3511 = vadd.f32 0.0, %v3510
        %v3512 = vpop.f32.mrf.mxu0
        %v3513 = vadd.f32 0.0, %v3512
        %3514 = vmatmul.bf16.gmra.mxu0 %v3490
        %v3515 = vpop.f32.mrf.mxu0
        %v3516 = vadd.f32 0.0, %v3515
        %v3517 = vpop.f32.mrf.mxu0
        %v3518 = vadd.f32 0.0, %v3517
        %3519 = vmatmul.bf16.gmra.mxu0 %v3493
        %v3520 = vpop.f32.mrf.mxu0
        %v3521 = vadd.f32 0.0, %v3520
        %v3522 = vpop.f32.mrf.mxu0
        %v3523 = vadd.f32 0.0, %v3522
        %3524 = vmatmul.bf16.gmra.mxu0 %v3496
        %v3525 = vpop.f32.mrf.mxu0
        %v3526 = vadd.f32 0.0, %v3525
        %v3527 = vpop.f32.mrf.mxu0
        %v3528 = vadd.f32 0.0, %v3527
        %3529 = vdwg.mxu0
        %3538 = vrot.lane.b32.xlu0 %v3127, 32
        %v3539 = vpop.permute.xlu0 %3538
        %3540 = vrot.lane.b32.xlu0 %v3129, 32
        %v3541 = vpop.permute.xlu0 %3540
        %3542 = vrot.lane.b32.xlu0 %v3132, 32
        %v3543 = vpop.permute.xlu0 %3542
        %3544 = vrot.lane.b32.xlu0 %v3134, 32
        %v3545 = vpop.permute.xlu0 %3544
        %3546 = vrot.lane.b32.xlu0 %v3137, 32
        %v3547 = vpop.permute.xlu0 %3546
        %3548 = vrot.lane.b32.xlu0 %v3139, 32
        %v3549 = vpop.permute.xlu0 %3548
        %3550 = vrot.lane.b32.xlu0 %v3142, 32
        %v3551 = vpop.permute.xlu0 %3550
        %3552 = vrot.lane.b32.xlu0 %v3144, 32
        %v3553 = vpop.permute.xlu0 %3552
        %3570 = vrot.lane.b32.xlu0 %v3319, 64
        %v3571 = vpop.permute.xlu0 %3570
        %3572 = vrot.lane.b32.xlu0 %v3321, 64
        %v3573 = vpop.permute.xlu0 %3572
        %3574 = vrot.lane.b32.xlu0 %v3324, 64
        %v3575 = vpop.permute.xlu0 %3574
        %3576 = vrot.lane.b32.xlu0 %v3326, 64
        %v3577 = vpop.permute.xlu0 %3576
        %3578 = vrot.lane.b32.xlu0 %v3329, 64
        %v3579 = vpop.permute.xlu0 %3578
        %3580 = vrot.lane.b32.xlu0 %v3331, 64
        %v3581 = vpop.permute.xlu0 %3580
        %3582 = vrot.lane.b32.xlu0 %v3334, 64
        %v3583 = vpop.permute.xlu0 %3582
        %3584 = vrot.lane.b32.xlu0 %v3336, 64
        %v3585 = vpop.permute.xlu0 %3584
        %3602 = vrot.lane.b32.xlu0 %v3511, 96
        %v3603 = vpop.permute.xlu0 %3602
        %3604 = vrot.lane.b32.xlu0 %v3513, 96
        %v3605 = vpop.permute.xlu0 %3604
        %3606 = vrot.lane.b32.xlu0 %v3516, 96
        %v3607 = vpop.permute.xlu0 %3606
        %3608 = vrot.lane.b32.xlu0 %v3518, 96
        %v3609 = vpop.permute.xlu0 %3608
        %3610 = vrot.lane.b32.xlu0 %v3521, 96
        %v3611 = vpop.permute.xlu0 %3610
        %3612 = vrot.lane.b32.xlu0 %v3523, 96
        %v3613 = vpop.permute.xlu0 %3612
        %3614 = vrot.lane.b32.xlu0 %v3526, 96
        %v3615 = vpop.permute.xlu0 %3614
        %3616 = vrot.lane.b32.xlu0 %v3528, 96
        %v3617 = vpop.permute.xlu0 %3616
        %v3626 = vsel %vm1000, %v2929, %v3539
        %v3627 = vsel %vm1000, %v2931, %v3541
        %v3628 = vsel %vm1000, %v2934, %v3543
        %v3629 = vsel %vm1000, %v2936, %v3545
        %v3630 = vsel %vm1000, %v2939, %v3547
        %v3631 = vsel %vm1000, %v2941, %v3549
        %v3632 = vsel %vm1000, %v2944, %v3551
        %v3633 = vsel %vm1000, %v2946, %v3553
        %v3634 = vsel %vm1237, %v3626, %v3571
        %v3635 = vsel %vm1237, %v3627, %v3573
        %v3636 = vsel %vm1237, %v3628, %v3575
        %v3637 = vsel %vm1237, %v3629, %v3577
        %v3638 = vsel %vm1237, %v3630, %v3579
        %v3639 = vsel %vm1237, %v3631, %v3581
        %v3640 = vsel %vm1237, %v3632, %v3583
        %v3641 = vsel %vm1237, %v3633, %v3585
        %v3642 = vsel %vm1239, %v3634, %v3603
        %v3643 = vsel %vm1239, %v3635, %v3605
        %v3644 = vsel %vm1239, %v3636, %v3607
        %v3645 = vsel %vm1239, %v3637, %v3609
        %v3646 = vsel %vm1239, %v3638, %v3611
        %v3647 = vsel %vm1239, %v3639, %v3613
        %v3648 = vsel %vm1239, %v3640, %v3615
        %v3649 = vsel %vm1239, %v3641, %v3617
        %v3650 = vpack.c.bf16 %v3643, %v3642
        %v3651 = vpack.c.bf16 %v3645, %v3644
        %v3652 = vpack.c.bf16 %v3647, %v3646
        %v3653 = vpack.c.bf16 %v3649, %v3648
        %s3654 = scalar_lea.vmem %s2, 576
        %v3655 = vld [vmem:[%s3654] sm:$0xf]
        %v3656 = vld [vmem:[%s3654 + $0x4] sm:$0xf]
        %v3657 = vld [vmem:[%s3654 + $0x8] sm:$0xf]
        %v3658 = vld [vmem:[%s3654 + $0xc] sm:$0xf]
        %v3659 = vld [vmem:[%s3654 + $0x10] sm:$0xf]
        %v3660 = vld [vmem:[%s3654 + $0x14] sm:$0xf]
        %v3661 = vld [vmem:[%s3654 + $0x18] sm:$0xf]
        %v3662 = vld [vmem:[%s3654 + $0x1c] sm:$0xf]
        %v3663 = vld [vmem:[%s3654 + $0x20] sm:$0xf]
        %v3664 = vld [vmem:[%s3654 + $0x24] sm:$0xf]
        %v3665 = vld [vmem:[%s3654 + $0x28] sm:$0xf]
        %v3666 = vld [vmem:[%s3654 + $0x2c] sm:$0xf]
        %v3667 = vld [vmem:[%s3654 + $0x30] sm:$0xf]
        %v3668 = vld [vmem:[%s3654 + $0x34] sm:$0xf]
        %v3669 = vld [vmem:[%s3654 + $0x38] sm:$0xf]
        %v3670 = vld [vmem:[%s3654 + $0x3c] sm:$0xf]
        %v3671 = vld [vmem:[%s3 + $0x15] sm:$0x1]
        %v3672 = vperm.slane %v3671, 0
        %v3689 = vunpack.c.l.b16 %v3655
        %v3690 = vunpack.c.l.b16 %v3656
        %v3691 = vunpack.c.l.b16 %v3657
        %v3692 = vunpack.c.l.b16 %v3658
        %v3693 = vunpack.c.l.b16 %v3659
        %v3694 = vunpack.c.l.b16 %v3660
        %v3695 = vunpack.c.l.b16 %v3661
        %v3696 = vunpack.c.l.b16 %v3662
        %v3697 = vunpack.c.l.b16 %v3663
        %v3698 = vunpack.c.l.b16 %v3664
        %v3699 = vunpack.c.l.b16 %v3665
        %v3700 = vunpack.c.l.b16 %v3666
        %v3701 = vunpack.c.l.b16 %v3667
        %v3702 = vunpack.c.l.b16 %v3668
        %v3703 = vunpack.c.l.b16 %v3669
        %v3704 = vunpack.c.l.b16 %v3670
        %v3705 = vpack.c.b16 %v3690, %v3689
        %v3706 = vpack.c.b16 %v3692, %v3691
        %v3707 = vpack.c.b16 %v3694, %v3693
        %v3708 = vpack.c.b16 %v3696, %v3695
        %v3709 = vpack.c.b16 %v3698, %v3697
        %v3710 = vpack.c.b16 %v3700, %v3699
        %v3711 = vpack.c.b16 %v3702, %v3701
        %v3712 = vpack.c.b16 %v3704, %v3703
        %3721 = vmatpush.bf16.msra.mxu0 %v3712
        %3722 = vmatpush.bf16.msra.mxu0 %v3711
        %3723 = vmatpush.bf16.msra.mxu0 %v3710
        %3724 = vmatpush.bf16.msra.mxu0 %v3709
        %3725 = vmatpush.bf16.msra.mxu0 %v3708
        %3726 = vmatpush.bf16.msra.mxu0 %v3707
        %3727 = vmatpush.bf16.msra.mxu0 %v3706
        %3728 = vmatpush.bf16.msra.mxu0 %v3705
        %3729 = vmatmul.bf16.gmra.mxu0 %v3650
        %v3730 = vpop.f32.mrf.mxu0
        %v3731 = vadd.f32 %v3672, %v3730
        %v3732 = vpop.f32.mrf.mxu0
        %v3733 = vadd.f32 %v3672, %v3732
        %3734 = vmatmul.bf16.gmra.mxu0 %v3651
        %v3735 = vpop.f32.mrf.mxu0
        %v3736 = vadd.f32 %v3672, %v3735
        %v3737 = vpop.f32.mrf.mxu0
        %v3738 = vadd.f32 %v3672, %v3737
        %3739 = vmatmul.bf16.gmra.mxu0 %v3652
        %v3740 = vpop.f32.mrf.mxu0
        %v3741 = vadd.f32 %v3672, %v3740
        %v3742 = vpop.f32.mrf.mxu0
        %v3743 = vadd.f32 %v3672, %v3742
        %3744 = vmatmul.bf16.gmra.mxu0 %v3653
        %v3745 = vpop.f32.mrf.mxu0
        %v3746 = vadd.f32 %v3672, %v3745
        %v3747 = vpop.f32.mrf.mxu0
        %v3748 = vadd.f32 %v3672, %v3747
        %3749 = vdwg.mxu0
        %v3750 = vadd.f32 %v534, %v3731
        %v3751 = vadd.f32 %v535, %v3733
        %v3752 = vadd.f32 %v536, %v3736
        %v3753 = vadd.f32 %v537, %v3738
        %v3754 = vadd.f32 %v538, %v3741
        %v3755 = vadd.f32 %v539, %v3743
        %v3756 = vadd.f32 %v540, %v3746
        %v3757 = vadd.f32 %v541, %v3748
        %v3758 = vld [vmem:[%s3 + $0x2] sm:$0x1]
        %v3759 = vld [vmem:[%s3 + $0x3] sm:$0x1]
        %3760 = vadd.xlane.f32.xlu0 %v3750
        %v3761 = vpop.xlane.xlu0 %3760
        %3762 = vadd.xlane.f32.xlu0 %v3751
        %v3763 = vpop.xlane.xlu0 %3762
        %3764 = vadd.xlane.f32.xlu0 %v3752
        %v3765 = vpop.xlane.xlu0 %3764
        %3766 = vadd.xlane.f32.xlu0 %v3753
        %v3767 = vpop.xlane.xlu0 %3766
        %3768 = vadd.xlane.f32.xlu0 %v3754
        %v3769 = vpop.xlane.xlu0 %3768
        %3770 = vadd.xlane.f32.xlu0 %v3755
        %v3771 = vpop.xlane.xlu0 %3770
        %3772 = vadd.xlane.f32.xlu0 %v3756
        %v3773 = vpop.xlane.xlu0 %3772
        %3774 = vadd.xlane.f32.xlu0 %v3757
        %v3775 = vpop.xlane.xlu0 %3774
        %v3776 = vmul.f32 %v3761, %v567
        %v3777 = vmul.f32 %v3763, %v567
        %v3778 = vmul.f32 %v3765, %v567
        %v3779 = vmul.f32 %v3767, %v567
        %v3780 = vmul.f32 %v3769, %v567
        %v3781 = vmul.f32 %v3771, %v567
        %v3782 = vmul.f32 %v3773, %v567
        %v3783 = vmul.f32 %v3775, %v567
        %v3784 = vsub.f32 %v3750, %v3776
        %v3785 = vsub.f32 %v3751, %v3777
        %v3786 = vsub.f32 %v3752, %v3778
        %v3787 = vsub.f32 %v3753, %v3779
        %v3788 = vsub.f32 %v3754, %v3780
        %v3789 = vsub.f32 %v3755, %v3781
        %v3790 = vsub.f32 %v3756, %v3782
        %v3791 = vsub.f32 %v3757, %v3783
        %v3792 = vmul.f32 %v3784, %v3784
        %v3793 = vmul.f32 %v3785, %v3785
        %v3794 = vmul.f32 %v3786, %v3786
        %v3795 = vmul.f32 %v3787, %v3787
        %v3796 = vmul.f32 %v3788, %v3788
        %v3797 = vmul.f32 %v3789, %v3789
        %v3798 = vmul.f32 %v3790, %v3790
        %v3799 = vmul.f32 %v3791, %v3791
        %3800 = vadd.xlane.f32.xlu0 %v3792
        %v3801 = vpop.xlane.xlu0 %3800
        %3802 = vadd.xlane.f32.xlu0 %v3793
        %v3803 = vpop.xlane.xlu0 %3802
        %3804 = vadd.xlane.f32.xlu0 %v3794
        %v3805 = vpop.xlane.xlu0 %3804
        %3806 = vadd.xlane.f32.xlu0 %v3795
        %v3807 = vpop.xlane.xlu0 %3806
        %3808 = vadd.xlane.f32.xlu0 %v3796
        %v3809 = vpop.xlane.xlu0 %3808
        %3810 = vadd.xlane.f32.xlu0 %v3797
        %v3811 = vpop.xlane.xlu0 %3810
        %3812 = vadd.xlane.f32.xlu0 %v3798
        %v3813 = vpop.xlane.xlu0 %3812
        %3814 = vadd.xlane.f32.xlu0 %v3799
        %v3815 = vpop.xlane.xlu0 %3814
        %v3816 = vmul.f32 %v3801, %v567
        %v3817 = vmul.f32 %v3803, %v567
        %v3818 = vmul.f32 %v3805, %v567
        %v3819 = vmul.f32 %v3807, %v567
        %v3820 = vmul.f32 %v3809, %v567
        %v3821 = vmul.f32 %v3811, %v567
        %v3822 = vmul.f32 %v3813, %v567
        %v3823 = vmul.f32 %v3815, %v567
        %v3824 = vadd.f32 %v3816, 1e-05
        %v3825 = vadd.f32 %v3817, 1e-05
        %v3826 = vadd.f32 %v3818, 1e-05
        %v3827 = vadd.f32 %v3819, 1e-05
        %v3828 = vadd.f32 %v3820, 1e-05
        %v3829 = vadd.f32 %v3821, 1e-05
        %v3830 = vadd.f32 %v3822, 1e-05
        %v3831 = vadd.f32 %v3823, 1e-05
        %v3832 = vrsqrt.pop %v3824
        %v3833 = vmul.f32 %v3832, %v3824
        %v3834 = vmul.f32 %v3833, %v3832
        %v3835 = vmul.f32 0.5, %v3834
        %v3836 = vsub.f32 1.5, %v3835
        %v3837 = vmul.f32 %v3832, %v3836
        %vm3838 = vweird.f32 %v3824
        %vm3839 = vweird.f32 %v3832
        %vm3840 = vmor %vm3838, %vm3839
        %v3841 = vsel %vm3840, %v3832, %v3837
        %v3842 = vrsqrt.pop %v3825
        %v3843 = vmul.f32 %v3842, %v3825
        %v3844 = vmul.f32 %v3843, %v3842
        %v3845 = vmul.f32 0.5, %v3844
        %v3846 = vsub.f32 1.5, %v3845
        %v3847 = vmul.f32 %v3842, %v3846
        %vm3848 = vweird.f32 %v3825
        %vm3849 = vweird.f32 %v3842
        %vm3850 = vmor %vm3848, %vm3849
        %v3851 = vsel %vm3850, %v3842, %v3847
        %v3852 = vrsqrt.pop %v3826
        %v3853 = vmul.f32 %v3852, %v3826
        %v3854 = vmul.f32 %v3853, %v3852
        %v3855 = vmul.f32 0.5, %v3854
        %v3856 = vsub.f32 1.5, %v3855
        %v3857 = vmul.f32 %v3852, %v3856
        %vm3858 = vweird.f32 %v3826
        %vm3859 = vweird.f32 %v3852
        %vm3860 = vmor %vm3858, %vm3859
        %v3861 = vsel %vm3860, %v3852, %v3857
        %v3862 = vrsqrt.pop %v3827
        %v3863 = vmul.f32 %v3862, %v3827
        %v3864 = vmul.f32 %v3863, %v3862
        %v3865 = vmul.f32 0.5, %v3864
        %v3866 = vsub.f32 1.5, %v3865
        %v3867 = vmul.f32 %v3862, %v3866
        %vm3868 = vweird.f32 %v3827
        %vm3869 = vweird.f32 %v3862
        %vm3870 = vmor %vm3868, %vm3869
        %v3871 = vsel %vm3870, %v3862, %v3867
        %v3872 = vrsqrt.pop %v3828
        %v3873 = vmul.f32 %v3872, %v3828
        %v3874 = vmul.f32 %v3873, %v3872
        %v3875 = vmul.f32 0.5, %v3874
        %v3876 = vsub.f32 1.5, %v3875
        %v3877 = vmul.f32 %v3872, %v3876
        %vm3878 = vweird.f32 %v3828
        %vm3879 = vweird.f32 %v3872
        %vm3880 = vmor %vm3878, %vm3879
        %v3881 = vsel %vm3880, %v3872, %v3877
        %v3882 = vrsqrt.pop %v3829
        %v3883 = vmul.f32 %v3882, %v3829
        %v3884 = vmul.f32 %v3883, %v3882
        %v3885 = vmul.f32 0.5, %v3884
        %v3886 = vsub.f32 1.5, %v3885
        %v3887 = vmul.f32 %v3882, %v3886
        %vm3888 = vweird.f32 %v3829
        %vm3889 = vweird.f32 %v3882
        %vm3890 = vmor %vm3888, %vm3889
        %v3891 = vsel %vm3890, %v3882, %v3887
        %v3892 = vrsqrt.pop %v3830
        %v3893 = vmul.f32 %v3892, %v3830
        %v3894 = vmul.f32 %v3893, %v3892
        %v3895 = vmul.f32 0.5, %v3894
        %v3896 = vsub.f32 1.5, %v3895
        %v3897 = vmul.f32 %v3892, %v3896
        %vm3898 = vweird.f32 %v3830
        %vm3899 = vweird.f32 %v3892
        %vm3900 = vmor %vm3898, %vm3899
        %v3901 = vsel %vm3900, %v3892, %v3897
        %v3902 = vrsqrt.pop %v3831
        %v3903 = vmul.f32 %v3902, %v3831
        %v3904 = vmul.f32 %v3903, %v3902
        %v3905 = vmul.f32 0.5, %v3904
        %v3906 = vsub.f32 1.5, %v3905
        %v3907 = vmul.f32 %v3902, %v3906
        %vm3908 = vweird.f32 %v3831
        %vm3909 = vweird.f32 %v3902
        %vm3910 = vmor %vm3908, %vm3909
        %v3911 = vsel %vm3910, %v3902, %v3907
        %v3912 = vmul.f32 %v3784, %v3841
        %v3913 = vmul.f32 %v3785, %v3851
        %v3914 = vmul.f32 %v3786, %v3861
        %v3915 = vmul.f32 %v3787, %v3871
        %v3916 = vmul.f32 %v3788, %v3881
        %v3917 = vmul.f32 %v3789, %v3891
        %v3918 = vmul.f32 %v3790, %v3901
        %v3919 = vmul.f32 %v3791, %v3911
        %v3920 = vperm.slane %v3758, 0
        %v3921 = vmul.f32 %v3912, %v3920
        %v3922 = vmul.f32 %v3913, %v3920
        %v3923 = vmul.f32 %v3914, %v3920
        %v3924 = vmul.f32 %v3915, %v3920
        %v3925 = vmul.f32 %v3916, %v3920
        %v3926 = vmul.f32 %v3917, %v3920
        %v3927 = vmul.f32 %v3918, %v3920
        %v3928 = vmul.f32 %v3919, %v3920
        %v3929 = vperm.slane %v3759, 0
        %v3930 = vadd.f32 %v3921, %v3929
        %v3931 = vadd.f32 %v3922, %v3929
        %v3932 = vadd.f32 %v3923, %v3929
        %v3933 = vadd.f32 %v3924, %v3929
        %v3934 = vadd.f32 %v3925, %v3929
        %v3935 = vadd.f32 %v3926, %v3929
        %v3936 = vadd.f32 %v3927, %v3929
        %v3937 = vadd.f32 %v3928, %v3929
        %v3938 = vpack.c.bf16 %v3931, %v3930
        %v3939 = vpack.c.bf16 %v3933, %v3932
        %v3940 = vpack.c.bf16 %v3935, %v3934
        %v3941 = vpack.c.bf16 %v3937, %v3936
        %v3942 = vld [vmem:[%s9] sm:$0xff]
        %v3943 = vld [vmem:[%s9 + $0x8] sm:$0xff]
        %v3944 = vld [vmem:[%s9 + $0x10] sm:$0xff]
        %v3945 = vld [vmem:[%s9 + $0x18] sm:$0xff]
        %v3946 = vld [vmem:[%s9 + $0x20] sm:$0xff]
        %v3947 = vld [vmem:[%s9 + $0x28] sm:$0xff]
        %v3948 = vld [vmem:[%s9 + $0x30] sm:$0xff]
        %v3949 = vld [vmem:[%s9 + $0x38] sm:$0xff]
        %v3950 = vld [vmem:[%s9 + $0x40] sm:$0xff]
        %v3951 = vld [vmem:[%s9 + $0x48] sm:$0xff]
        %v3952 = vld [vmem:[%s9 + $0x50] sm:$0xff]
        %v3953 = vld [vmem:[%s9 + $0x58] sm:$0xff]
        %v3954 = vld [vmem:[%s9 + $0x60] sm:$0xff]
        %v3955 = vld [vmem:[%s9 + $0x68] sm:$0xff]
        %v3956 = vld [vmem:[%s9 + $0x70] sm:$0xff]
        %v3957 = vld [vmem:[%s9 + $0x78] sm:$0xff]
        %v3958 = vld [vmem:[%s4] ss:$8 sm:$0x3]
        %v3960 = vperm.slane %v3958, 0
        %v3961 = vperm.slane %v3958, 1
        %v3980 = vunpack.c.l.b16 %v3942
        %v3981 = vunpack.c.h.b16 %v3942
        %v3982 = vunpack.c.l.b16 %v3943
        %v3983 = vunpack.c.h.b16 %v3943
        %v3984 = vunpack.c.l.b16 %v3944
        %v3985 = vunpack.c.h.b16 %v3944
        %v3986 = vunpack.c.l.b16 %v3945
        %v3987 = vunpack.c.h.b16 %v3945
        %v3988 = vunpack.c.l.b16 %v3946
        %v3989 = vunpack.c.h.b16 %v3946
        %v3990 = vunpack.c.l.b16 %v3947
        %v3991 = vunpack.c.h.b16 %v3947
        %v3992 = vunpack.c.l.b16 %v3948
        %v3993 = vunpack.c.h.b16 %v3948
        %v3994 = vunpack.c.l.b16 %v3949
        %v3995 = vunpack.c.h.b16 %v3949
        %v3996 = vunpack.c.l.b16 %v3950
        %v3997 = vunpack.c.h.b16 %v3950
        %v3998 = vunpack.c.l.b16 %v3951
        %v3999 = vunpack.c.h.b16 %v3951
        %v4000 = vunpack.c.l.b16 %v3952
        %v4001 = vunpack.c.h.b16 %v3952
        %v4002 = vunpack.c.l.b16 %v3953
        %v4003 = vunpack.c.h.b16 %v3953
        %v4004 = vunpack.c.l.b16 %v3954
        %v4005 = vunpack.c.h.b16 %v3954
        %v4006 = vunpack.c.l.b16 %v3955
        %v4007 = vunpack.c.h.b16 %v3955
        %v4008 = vunpack.c.l.b16 %v3956
        %v4009 = vunpack.c.h.b16 %v3956
        %v4010 = vunpack.c.l.b16 %v3957
        %v4011 = vunpack.c.h.b16 %v3957
        %v4012 = vpack.c.b16 %v3982, %v3980
        %v4013 = vpack.c.b16 %v3983, %v3981
        %v4014 = vpack.c.b16 %v3986, %v3984
        %v4015 = vpack.c.b16 %v3987, %v3985
        %v4016 = vpack.c.b16 %v3990, %v3988
        %v4017 = vpack.c.b16 %v3991, %v3989
        %v4018 = vpack.c.b16 %v3994, %v3992
        %v4019 = vpack.c.b16 %v3995, %v3993
        %v4020 = vpack.c.b16 %v3998, %v3996
        %v4021 = vpack.c.b16 %v3999, %v3997
        %v4022 = vpack.c.b16 %v4002, %v4000
        %v4023 = vpack.c.b16 %v4003, %v4001
        %v4024 = vpack.c.b16 %v4006, %v4004
        %v4025 = vpack.c.b16 %v4007, %v4005
        %v4026 = vpack.c.b16 %v4010, %v4008
        %v4027 = vpack.c.b16 %v4011, %v4009
        %4044 = vmatpush.bf16.msra.mxu0 %v4026
        %4045 = vmatpush.bf16.msra.mxu0 %v4024
        %4046 = vmatpush.bf16.msra.mxu0 %v4022
        %4047 = vmatpush.bf16.msra.mxu0 %v4020
        %4048 = vmatpush.bf16.msra.mxu0 %v4018
        %4049 = vmatpush.bf16.msra.mxu0 %v4016
        %4050 = vmatpush.bf16.msra.mxu0 %v4014
        %4051 = vmatpush.bf16.msra.mxu0 %v4012
        %4052 = vmatmul.bf16.gmra.mxu0 %v3938
        %v4053 = vpop.f32.mrf.mxu0
        %v4054 = vadd.f32 %v3960, %v4053
        %v4055 = vpop.f32.mrf.mxu0
        %v4056 = vadd.f32 %v3960, %v4055
        %4057 = vmatmul.bf16.gmra.mxu0 %v3939
        %v4058 = vpop.f32.mrf.mxu0
        %v4059 = vadd.f32 %v3960, %v4058
        %v4060 = vpop.f32.mrf.mxu0
        %v4061 = vadd.f32 %v3960, %v4060
        %4062 = vmatmul.bf16.gmra.mxu0 %v3940
        %v4063 = vpop.f32.mrf.mxu0
        %v4064 = vadd.f32 %v3960, %v4063
        %v4065 = vpop.f32.mrf.mxu0
        %v4066 = vadd.f32 %v3960, %v4065
        %4067 = vmatmul.bf16.gmra.mxu0 %v3941
        %v4068 = vpop.f32.mrf.mxu0
        %v4069 = vadd.f32 %v3960, %v4068
        %v4070 = vpop.f32.mrf.mxu0
        %v4071 = vadd.f32 %v3960, %v4070
        %4072 = vdwg.mxu0
        %4073 = vmatpush.bf16.msra.mxu0 %v4027
        %4074 = vmatpush.bf16.msra.mxu0 %v4025
        %4075 = vmatpush.bf16.msra.mxu0 %v4023
        %4076 = vmatpush.bf16.msra.mxu0 %v4021
        %4077 = vmatpush.bf16.msra.mxu0 %v4019
        %4078 = vmatpush.bf16.msra.mxu0 %v4017
        %4079 = vmatpush.bf16.msra.mxu0 %v4015
        %4080 = vmatpush.bf16.msra.mxu0 %v4013
        %4081 = vmatmul.bf16.gmra.mxu0 %v3938
        %v4082 = vpop.f32.mrf.mxu0
        %v4083 = vadd.f32 %v3961, %v4082
        %v4084 = vpop.f32.mrf.mxu0
        %v4085 = vadd.f32 %v3961, %v4084
        %4086 = vmatmul.bf16.gmra.mxu0 %v3939
        %v4087 = vpop.f32.mrf.mxu0
        %v4088 = vadd.f32 %v3961, %v4087
        %v4089 = vpop.f32.mrf.mxu0
        %v4090 = vadd.f32 %v3961, %v4089
        %4091 = vmatmul.bf16.gmra.mxu0 %v3940
        %v4092 = vpop.f32.mrf.mxu0
        %v4093 = vadd.f32 %v3961, %v4092
        %v4094 = vpop.f32.mrf.mxu0
        %v4095 = vadd.f32 %v3961, %v4094
        %4096 = vmatmul.bf16.gmra.mxu0 %v3941
        %v4097 = vpop.f32.mrf.mxu0
        %v4098 = vadd.f32 %v3961, %v4097
        %v4099 = vpop.f32.mrf.mxu0
        %v4100 = vadd.f32 %v3961, %v4099
        %4101 = vdwg.mxu0
        %v4102 = vrot.slane %v4054, 7
        %v4103 = vrot.slane %v4083, 7
        %v4104 = vrot.slane %v4056, 7
        %v4105 = vrot.slane %v4085, 7
        %v4106 = vrot.slane %v4059, 7
        %v4107 = vrot.slane %v4088, 7
        %v4108 = vrot.slane %v4061, 7
        %v4109 = vrot.slane %v4090, 7
        %v4110 = vrot.slane %v4064, 7
        %v4111 = vrot.slane %v4093, 7
        %v4112 = vrot.slane %v4066, 7
        %v4113 = vrot.slane %v4095, 7
        %v4114 = vrot.slane %v4069, 7
        %v4115 = vrot.slane %v4098, 7
        %v4116 = vrot.slane %v4071, 7
        %v4117 = vrot.slane %v4100, 7
        %v4118 = vlaneseq
        %v4119 = vshrl.u32 %v4118, 7
        %vm4120 = vcmp.lt.s32.totalorder %v4119, 1
        %v4121 = vsel %vm4120, %v4114, %v4116
        %v4122 = vsel %vm4120, %v4115, %v4117
        %v4123 = vsel %vm4120, %v4112, %v4114
        %v4124 = vsel %vm4120, %v4113, %v4115
        %v4125 = vsel %vm4120, %v4110, %v4112
        %v4126 = vsel %vm4120, %v4111, %v4113
        %v4127 = vsel %vm4120, %v4108, %v4110
        %v4128 = vsel %vm4120, %v4109, %v4111
        %v4129 = vsel %vm4120, %v4106, %v4108
        %v4130 = vsel %vm4120, %v4107, %v4109
        %v4131 = vsel %vm4120, %v4104, %v4106
        %v4132 = vsel %vm4120, %v4105, %v4107
        %v4133 = vsel %vm4120, %v4102, %v4104
        %v4134 = vsel %vm4120, %v4103, %v4105
        %v4135 = vsel %vm4120, %v4116, %v4102
        %v4136 = vsel %vm4120, %v4117, %v4103
        %v4137 = vld [vmem:[%s6] sm:$0xff]
        %v4138 = vld [vmem:[%s6 + $0x8] sm:$0xff]
        %v4139 = vld [vmem:[%s6 + $0x10] sm:$0xff]
        %v4140 = vld [vmem:[%s6 + $0x18] sm:$0xff]
        %v4141 = vld [vmem:[%s6 + $0x20] sm:$0xff]
        %v4142 = vld [vmem:[%s6 + $0x28] sm:$0xff]
        %v4143 = vld [vmem:[%s6 + $0x30] sm:$0xff]
        %v4144 = vld [vmem:[%s6 + $0x38] sm:$0xff]
        %4146 = vset.pattern.permute.xlu0 0
        %4147 = vperm.xlu0 %4146, %v4137
        %v4148 = vpop.permute.xlu0 %4147
        %4151 = vset.pattern.permute.xlu0 0
        %4152 = vperm.xlu0 %4151, %v4138
        %v4153 = vpop.permute.xlu0 %4152
        %4156 = vset.pattern.permute.xlu0 0
        %4157 = vperm.xlu0 %4156, %v4139
        %v4158 = vpop.permute.xlu0 %4157
        %4161 = vset.pattern.permute.xlu0 0
        %4162 = vperm.xlu0 %4161, %v4140
        %v4163 = vpop.permute.xlu0 %4162
        %4166 = vset.pattern.permute.xlu0 0
        %4167 = vperm.xlu0 %4166, %v4141
        %v4168 = vpop.permute.xlu0 %4167
        %4171 = vset.pattern.permute.xlu0 0
        %4172 = vperm.xlu0 %4171, %v4142
        %v4173 = vpop.permute.xlu0 %4172
        %4176 = vset.pattern.permute.xlu0 0
        %4177 = vperm.xlu0 %4176, %v4143
        %v4178 = vpop.permute.xlu0 %4177
        %4181 = vset.pattern.permute.xlu0 0
        %4182 = vperm.xlu0 %4181, %v4144
        %v4183 = vpop.permute.xlu0 %4182
        %v4185 = vmul.f32 %v4121, %v4148
        %v4186 = vmul.f32 %v4122, %v4148
        %v4187 = vmul.f32 %v4135, %v4153
        %v4188 = vmul.f32 %v4136, %v4153
        %v4189 = vmul.f32 %v4133, %v4158
        %v4190 = vmul.f32 %v4134, %v4158
        %v4191 = vmul.f32 %v4131, %v4163
        %v4192 = vmul.f32 %v4132, %v4163
        %v4193 = vmul.f32 %v4129, %v4168
        %v4194 = vmul.f32 %v4130, %v4168
        %v4195 = vmul.f32 %v4127, %v4173
        %v4196 = vmul.f32 %v4128, %v4173
        %v4197 = vmul.f32 %v4125, %v4178
        %v4198 = vmul.f32 %v4126, %v4178
        %v4199 = vmul.f32 %v4123, %v4183
        %v4200 = vmul.f32 %v4124, %v4183
        %s4201 = scalar_lea.vmem %s4, 2
        %v4202 = vld [vmem:[%s4201] ss:$8 sm:$0x3]
        %v4204 = vperm.slane %v4202, 0
        %v4205 = vperm.slane %v4202, 1
        %v4208 = vmul.f32 %v4185, %v4204
        %v4209 = vmul.f32 %v4186, %v4205
        %v4210 = vmul.f32 %v4187, %v4204
        %v4211 = vmul.f32 %v4188, %v4205
        %v4212 = vmul.f32 %v4189, %v4204
        %v4213 = vmul.f32 %v4190, %v4205
        %v4214 = vmul.f32 %v4191, %v4204
        %v4215 = vmul.f32 %v4192, %v4205
        %v4216 = vmul.f32 %v4193, %v4204
        %v4217 = vmul.f32 %v4194, %v4205
        %v4218 = vmul.f32 %v4195, %v4204
        %v4219 = vmul.f32 %v4196, %v4205
        %v4220 = vmul.f32 %v4197, %v4204
        %v4221 = vmul.f32 %v4198, %v4205
        %v4222 = vmul.f32 %v4199, %v4204
        %v4223 = vmul.f32 %v4200, %v4205
        %v4224 = vadd.f32 %v4208, 0.0
        %v4225 = vadd.f32 %v4209, 0.0
        %v4226 = vadd.f32 %v4210, 0.0
        %v4227 = vadd.f32 %v4211, 0.0
        %v4228 = vadd.f32 %v4212, 0.0
        %v4229 = vadd.f32 %v4213, 0.0
        %v4230 = vadd.f32 %v4214, 0.0
        %v4231 = vadd.f32 %v4215, 0.0
        %v4232 = vadd.f32 %v4216, 0.0
        %v4233 = vadd.f32 %v4217, 0.0
        %v4234 = vadd.f32 %v4218, 0.0
        %v4235 = vadd.f32 %v4219, 0.0
        %v4236 = vadd.f32 %v4220, 0.0
        %v4237 = vadd.f32 %v4221, 0.0
        %v4238 = vadd.f32 %v4222, 0.0
        %v4239 = vadd.f32 %v4223, 0.0
        %s4240 = scalar_lea.vmem %s6, 64
        %v4241 = vld [vmem:[%s4240] sm:$0xff]
        %v4242 = vld [vmem:[%s4240 + $0x8] sm:$0xff]
        %v4243 = vld [vmem:[%s4240 + $0x10] sm:$0xff]
        %v4244 = vld [vmem:[%s4240 + $0x18] sm:$0xff]
        %v4245 = vld [vmem:[%s4240 + $0x20] sm:$0xff]
        %v4246 = vld [vmem:[%s4240 + $0x28] sm:$0xff]
        %v4247 = vld [vmem:[%s4240 + $0x30] sm:$0xff]
        %v4248 = vld [vmem:[%s4240 + $0x38] sm:$0xff]
        %4250 = vset.pattern.permute.xlu0 0
        %4251 = vperm.xlu0 %4250, %v4241
        %v4252 = vpop.permute.xlu0 %4251
        %4255 = vset.pattern.permute.xlu0 0
        %4256 = vperm.xlu0 %4255, %v4242
        %v4257 = vpop.permute.xlu0 %4256
        %4260 = vset.pattern.permute.xlu0 0
        %4261 = vperm.xlu0 %4260, %v4243
        %v4262 = vpop.permute.xlu0 %4261
        %4265 = vset.pattern.permute.xlu0 0
        %4266 = vperm.xlu0 %4265, %v4244
        %v4267 = vpop.permute.xlu0 %4266
        %4270 = vset.pattern.permute.xlu0 0
        %4271 = vperm.xlu0 %4270, %v4245
        %v4272 = vpop.permute.xlu0 %4271
        %4275 = vset.pattern.permute.xlu0 0
        %4276 = vperm.xlu0 %4275, %v4246
        %v4277 = vpop.permute.xlu0 %4276
        %4280 = vset.pattern.permute.xlu0 0
        %4281 = vperm.xlu0 %4280, %v4247
        %v4282 = vpop.permute.xlu0 %4281
        %4285 = vset.pattern.permute.xlu0 0
        %4286 = vperm.xlu0 %4285, %v4248
        %v4287 = vpop.permute.xlu0 %4286
        %v4289 = vmul.f32 %v4071, %v4252
        %v4290 = vmul.f32 %v4100, %v4252
        %v4291 = vmul.f32 %v4054, %v4257
        %v4292 = vmul.f32 %v4083, %v4257
        %v4293 = vmul.f32 %v4056, %v4262
        %v4294 = vmul.f32 %v4085, %v4262
        %v4295 = vmul.f32 %v4059, %v4267
        %v4296 = vmul.f32 %v4088, %v4267
        %v4297 = vmul.f32 %v4061, %v4272
        %v4298 = vmul.f32 %v4090, %v4272
        %v4299 = vmul.f32 %v4064, %v4277
        %v4300 = vmul.f32 %v4093, %v4277
        %v4301 = vmul.f32 %v4066, %v4282
        %v4302 = vmul.f32 %v4095, %v4282
        %v4303 = vmul.f32 %v4069, %v4287
        %v4304 = vmul.f32 %v4098, %v4287
        %s4305 = scalar_lea.vmem %s4, 3
        %v4306 = vld [vmem:[%s4305] ss:$8 sm:$0x3]
        %v4308 = vperm.slane %v4306, 0
        %v4309 = vperm.slane %v4306, 1
        %v4312 = vmul.f32 %v4289, %v4308
        %v4313 = vmul.f32 %v4290, %v4309
        %v4314 = vmul.f32 %v4291, %v4308
        %v4315 = vmul.f32 %v4292, %v4309
        %v4316 = vmul.f32 %v4293, %v4308
        %v4317 = vmul.f32 %v4294, %v4309
        %v4318 = vmul.f32 %v4295, %v4308
        %v4319 = vmul.f32 %v4296, %v4309
        %v4320 = vmul.f32 %v4297, %v4308
        %v4321 = vmul.f32 %v4298, %v4309
        %v4322 = vmul.f32 %v4299, %v4308
        %v4323 = vmul.f32 %v4300, %v4309
        %v4324 = vmul.f32 %v4301, %v4308
        %v4325 = vmul.f32 %v4302, %v4309
        %v4326 = vmul.f32 %v4303, %v4308
        %v4327 = vmul.f32 %v4304, %v4309
        %v4328 = vadd.f32 %v4224, %v4312
        %v4329 = vadd.f32 %v4225, %v4313
        %v4330 = vadd.f32 %v4226, %v4314
        %v4331 = vadd.f32 %v4227, %v4315
        %v4332 = vadd.f32 %v4228, %v4316
        %v4333 = vadd.f32 %v4229, %v4317
        %v4334 = vadd.f32 %v4230, %v4318
        %v4335 = vadd.f32 %v4231, %v4319
        %v4336 = vadd.f32 %v4232, %v4320
        %v4337 = vadd.f32 %v4233, %v4321
        %v4338 = vadd.f32 %v4234, %v4322
        %v4339 = vadd.f32 %v4235, %v4323
        %v4340 = vadd.f32 %v4236, %v4324
        %v4341 = vadd.f32 %v4237, %v4325
        %v4342 = vadd.f32 %v4238, %v4326
        %v4343 = vadd.f32 %v4239, %v4327
        %v4344 = vrot.slane %v4054, 1
        %v4345 = vrot.slane %v4083, 1
        %v4346 = vrot.slane %v4056, 1
        %v4347 = vrot.slane %v4085, 1
        %v4348 = vrot.slane %v4059, 1
        %v4349 = vrot.slane %v4088, 1
        %v4350 = vrot.slane %v4061, 1
        %v4351 = vrot.slane %v4090, 1
        %v4352 = vrot.slane %v4064, 1
        %v4353 = vrot.slane %v4093, 1
        %v4354 = vrot.slane %v4066, 1
        %v4355 = vrot.slane %v4095, 1
        %v4356 = vrot.slane %v4069, 1
        %v4357 = vrot.slane %v4098, 1
        %v4358 = vrot.slane %v4071, 1
        %v4359 = vrot.slane %v4100, 1
        %vm4360 = vcmp.lt.s32.totalorder %v4119, 7
        %v4361 = vsel %vm4360, %v4356, %v4358
        %v4362 = vsel %vm4360, %v4357, %v4359
        %v4363 = vsel %vm4360, %v4354, %v4356
        %v4364 = vsel %vm4360, %v4355, %v4357
        %v4365 = vsel %vm4360, %v4352, %v4354
        %v4366 = vsel %vm4360, %v4353, %v4355
        %v4367 = vsel %vm4360, %v4350, %v4352
        %v4368 = vsel %vm4360, %v4351, %v4353
        %v4369 = vsel %vm4360, %v4348, %v4350
        %v4370 = vsel %vm4360, %v4349, %v4351
        %v4371 = vsel %vm4360, %v4346, %v4348
        %v4372 = vsel %vm4360, %v4347, %v4349
        %v4373 = vsel %vm4360, %v4344, %v4346
        %v4374 = vsel %vm4360, %v4345, %v4347
        %v4375 = vsel %vm4360, %v4358, %v4344
        %v4376 = vsel %vm4360, %v4359, %v4345
        %s4377 = scalar_lea.vmem %s6, 128
        %v4378 = vld [vmem:[%s4377] sm:$0xff]
        %v4379 = vld [vmem:[%s4377 + $0x8] sm:$0xff]
        %v4380 = vld [vmem:[%s4377 + $0x10] sm:$0xff]
        %v4381 = vld [vmem:[%s4377 + $0x18] sm:$0xff]
        %v4382 = vld [vmem:[%s4377 + $0x20] sm:$0xff]
        %v4383 = vld [vmem:[%s4377 + $0x28] sm:$0xff]
        %v4384 = vld [vmem:[%s4377 + $0x30] sm:$0xff]
        %v4385 = vld [vmem:[%s4377 + $0x38] sm:$0xff]
        %4387 = vset.pattern.permute.xlu0 0
        %4388 = vperm.xlu0 %4387, %v4378
        %v4389 = vpop.permute.xlu0 %4388
        %4392 = vset.pattern.permute.xlu0 0
        %4393 = vperm.xlu0 %4392, %v4379
        %v4394 = vpop.permute.xlu0 %4393
        %4397 = vset.pattern.permute.xlu0 0
        %4398 = vperm.xlu0 %4397, %v4380
        %v4399 = vpop.permute.xlu0 %4398
        %4402 = vset.pattern.permute.xlu0 0
        %4403 = vperm.xlu0 %4402, %v4381
        %v4404 = vpop.permute.xlu0 %4403
        %4407 = vset.pattern.permute.xlu0 0
        %4408 = vperm.xlu0 %4407, %v4382
        %v4409 = vpop.permute.xlu0 %4408
        %4412 = vset.pattern.permute.xlu0 0
        %4413 = vperm.xlu0 %4412, %v4383
        %v4414 = vpop.permute.xlu0 %4413
        %4417 = vset.pattern.permute.xlu0 0
        %4418 = vperm.xlu0 %4417, %v4384
        %v4419 = vpop.permute.xlu0 %4418
        %4422 = vset.pattern.permute.xlu0 0
        %4423 = vperm.xlu0 %4422, %v4385
        %v4424 = vpop.permute.xlu0 %4423
        %v4426 = vmul.f32 %v4375, %v4389
        %v4427 = vmul.f32 %v4376, %v4389
        %v4428 = vmul.f32 %v4373, %v4394
        %v4429 = vmul.f32 %v4374, %v4394
        %v4430 = vmul.f32 %v4371, %v4399
        %v4431 = vmul.f32 %v4372, %v4399
        %v4432 = vmul.f32 %v4369, %v4404
        %v4433 = vmul.f32 %v4370, %v4404
        %v4434 = vmul.f32 %v4367, %v4409
        %v4435 = vmul.f32 %v4368, %v4409
        %v4436 = vmul.f32 %v4365, %v4414
        %v4437 = vmul.f32 %v4366, %v4414
        %v4438 = vmul.f32 %v4363, %v4419
        %v4439 = vmul.f32 %v4364, %v4419
        %v4440 = vmul.f32 %v4361, %v4424
        %v4441 = vmul.f32 %v4362, %v4424
        %s4442 = scalar_lea.vmem %s4, 4
        %v4443 = vld [vmem:[%s4442] ss:$8 sm:$0x3]
        %v4445 = vperm.slane %v4443, 0
        %v4446 = vperm.slane %v4443, 1
        %v4449 = vmul.f32 %v4426, %v4445
        %v4450 = vmul.f32 %v4427, %v4446
        %v4451 = vmul.f32 %v4428, %v4445
        %v4452 = vmul.f32 %v4429, %v4446
        %v4453 = vmul.f32 %v4430, %v4445
        %v4454 = vmul.f32 %v4431, %v4446
        %v4455 = vmul.f32 %v4432, %v4445
        %v4456 = vmul.f32 %v4433, %v4446
        %v4457 = vmul.f32 %v4434, %v4445
        %v4458 = vmul.f32 %v4435, %v4446
        %v4459 = vmul.f32 %v4436, %v4445
        %v4460 = vmul.f32 %v4437, %v4446
        %v4461 = vmul.f32 %v4438, %v4445
        %v4462 = vmul.f32 %v4439, %v4446
        %v4463 = vmul.f32 %v4440, %v4445
        %v4464 = vmul.f32 %v4441, %v4446
        %v4465 = vadd.f32 %v4328, %v4449
        %v4466 = vadd.f32 %v4329, %v4450
        %v4467 = vadd.f32 %v4330, %v4451
        %v4468 = vadd.f32 %v4331, %v4452
        %v4469 = vadd.f32 %v4332, %v4453
        %v4470 = vadd.f32 %v4333, %v4454
        %v4471 = vadd.f32 %v4334, %v4455
        %v4472 = vadd.f32 %v4335, %v4456
        %v4473 = vadd.f32 %v4336, %v4457
        %v4474 = vadd.f32 %v4337, %v4458
        %v4475 = vadd.f32 %v4338, %v4459
        %v4476 = vadd.f32 %v4339, %v4460
        %v4477 = vadd.f32 %v4340, %v4461
        %v4478 = vadd.f32 %v4341, %v4462
        %v4479 = vadd.f32 %v4342, %v4463
        %v4480 = vadd.f32 %v4343, %v4464
        %s4481 = scalar_lea.vmem %s6, 192
        %v4482 = vld [vmem:[%s4481] sm:$0xff]
        %v4483 = vld [vmem:[%s4481 + $0x8] sm:$0xff]
        %v4484 = vld [vmem:[%s4481 + $0x10] sm:$0xff]
        %v4485 = vld [vmem:[%s4481 + $0x18] sm:$0xff]
        %v4486 = vld [vmem:[%s4481 + $0x20] sm:$0xff]
        %v4487 = vld [vmem:[%s4481 + $0x28] sm:$0xff]
        %v4488 = vld [vmem:[%s4481 + $0x30] sm:$0xff]
        %v4489 = vld [vmem:[%s4481 + $0x38] sm:$0xff]
        %4491 = vset.pattern.permute.xlu0 0
        %4492 = vperm.xlu0 %4491, %v4482
        %v4493 = vpop.permute.xlu0 %4492
        %4496 = vset.pattern.permute.xlu0 0
        %4497 = vperm.xlu0 %4496, %v4483
        %v4498 = vpop.permute.xlu0 %4497
        %4501 = vset.pattern.permute.xlu0 0
        %4502 = vperm.xlu0 %4501, %v4484
        %v4503 = vpop.permute.xlu0 %4502
        %4506 = vset.pattern.permute.xlu0 0
        %4507 = vperm.xlu0 %4506, %v4485
        %v4508 = vpop.permute.xlu0 %4507
        %4511 = vset.pattern.permute.xlu0 0
        %4512 = vperm.xlu0 %4511, %v4486
        %v4513 = vpop.permute.xlu0 %4512
        %4516 = vset.pattern.permute.xlu0 0
        %4517 = vperm.xlu0 %4516, %v4487
        %v4518 = vpop.permute.xlu0 %4517
        %4521 = vset.pattern.permute.xlu0 0
        %4522 = vperm.xlu0 %4521, %v4488
        %v4523 = vpop.permute.xlu0 %4522
        %4526 = vset.pattern.permute.xlu0 0
        %4527 = vperm.xlu0 %4526, %v4489
        %v4528 = vpop.permute.xlu0 %4527
        %v4530 = vmul.f32 %v4135, %v4493
        %v4531 = vmul.f32 %v4136, %v4493
        %v4532 = vmul.f32 %v4133, %v4498
        %v4533 = vmul.f32 %v4134, %v4498
        %v4534 = vmul.f32 %v4131, %v4503
        %v4535 = vmul.f32 %v4132, %v4503
        %v4536 = vmul.f32 %v4129, %v4508
        %v4537 = vmul.f32 %v4130, %v4508
        %v4538 = vmul.f32 %v4127, %v4513
        %v4539 = vmul.f32 %v4128, %v4513
        %v4540 = vmul.f32 %v4125, %v4518
        %v4541 = vmul.f32 %v4126, %v4518
        %v4542 = vmul.f32 %v4123, %v4523
        %v4543 = vmul.f32 %v4124, %v4523
        %v4544 = vmul.f32 %v4121, %v4528
        %v4545 = vmul.f32 %v4122, %v4528
        %s4546 = scalar_lea.vmem %s4, 5
        %v4547 = vld [vmem:[%s4546] ss:$8 sm:$0x3]
        %v4549 = vperm.slane %v4547, 0
        %v4550 = vperm.slane %v4547, 1
        %v4553 = vmul.f32 %v4530, %v4549
        %v4554 = vmul.f32 %v4531, %v4550
        %v4555 = vmul.f32 %v4532, %v4549
        %v4556 = vmul.f32 %v4533, %v4550
        %v4557 = vmul.f32 %v4534, %v4549
        %v4558 = vmul.f32 %v4535, %v4550
        %v4559 = vmul.f32 %v4536, %v4549
        %v4560 = vmul.f32 %v4537, %v4550
        %v4561 = vmul.f32 %v4538, %v4549
        %v4562 = vmul.f32 %v4539, %v4550
        %v4563 = vmul.f32 %v4540, %v4549
        %v4564 = vmul.f32 %v4541, %v4550
        %v4565 = vmul.f32 %v4542, %v4549
        %v4566 = vmul.f32 %v4543, %v4550
        %v4567 = vmul.f32 %v4544, %v4549
        %v4568 = vmul.f32 %v4545, %v4550
        %v4569 = vadd.f32 %v4465, %v4553
        %v4570 = vadd.f32 %v4466, %v4554
        %v4571 = vadd.f32 %v4467, %v4555
        %v4572 = vadd.f32 %v4468, %v4556
        %v4573 = vadd.f32 %v4469, %v4557
        %v4574 = vadd.f32 %v4470, %v4558
        %v4575 = vadd.f32 %v4471, %v4559
        %v4576 = vadd.f32 %v4472, %v4560
        %v4577 = vadd.f32 %v4473, %v4561
        %v4578 = vadd.f32 %v4474, %v4562
        %v4579 = vadd.f32 %v4475, %v4563
        %v4580 = vadd.f32 %v4476, %v4564
        %v4581 = vadd.f32 %v4477, %v4565
        %v4582 = vadd.f32 %v4478, %v4566
        %v4583 = vadd.f32 %v4479, %v4567
        %v4584 = vadd.f32 %v4480, %v4568
        %s4585 = scalar_lea.vmem %s6, 256
        %v4586 = vld [vmem:[%s4585] sm:$0xff]
        %v4587 = vld [vmem:[%s4585 + $0x8] sm:$0xff]
        %v4588 = vld [vmem:[%s4585 + $0x10] sm:$0xff]
        %v4589 = vld [vmem:[%s4585 + $0x18] sm:$0xff]
        %v4590 = vld [vmem:[%s4585 + $0x20] sm:$0xff]
        %v4591 = vld [vmem:[%s4585 + $0x28] sm:$0xff]
        %v4592 = vld [vmem:[%s4585 + $0x30] sm:$0xff]
        %v4593 = vld [vmem:[%s4585 + $0x38] sm:$0xff]
        %4595 = vset.pattern.permute.xlu0 0
        %4596 = vperm.xlu0 %4595, %v4586
        %v4597 = vpop.permute.xlu0 %4596
        %4600 = vset.pattern.permute.xlu0 0
        %4601 = vperm.xlu0 %4600, %v4587
        %v4602 = vpop.permute.xlu0 %4601
        %4605 = vset.pattern.permute.xlu0 0
        %4606 = vperm.xlu0 %4605, %v4588
        %v4607 = vpop.permute.xlu0 %4606
        %4610 = vset.pattern.permute.xlu0 0
        %4611 = vperm.xlu0 %4610, %v4589
        %v4612 = vpop.permute.xlu0 %4611
        %4615 = vset.pattern.permute.xlu0 0
        %4616 = vperm.xlu0 %4615, %v4590
        %v4617 = vpop.permute.xlu0 %4616
        %4620 = vset.pattern.permute.xlu0 0
        %4621 = vperm.xlu0 %4620, %v4591
        %v4622 = vpop.permute.xlu0 %4621
        %4625 = vset.pattern.permute.xlu0 0
        %4626 = vperm.xlu0 %4625, %v4592
        %v4627 = vpop.permute.xlu0 %4626
        %4630 = vset.pattern.permute.xlu0 0
        %4631 = vperm.xlu0 %4630, %v4593
        %v4632 = vpop.permute.xlu0 %4631
        %v4634 = vmul.f32 %v4054, %v4597
        %v4635 = vmul.f32 %v4083, %v4597
        %v4636 = vmul.f32 %v4056, %v4602
        %v4637 = vmul.f32 %v4085, %v4602
        %v4638 = vmul.f32 %v4059, %v4607
        %v4639 = vmul.f32 %v4088, %v4607
        %v4640 = vmul.f32 %v4061, %v4612
        %v4641 = vmul.f32 %v4090, %v4612
        %v4642 = vmul.f32 %v4064, %v4617
        %v4643 = vmul.f32 %v4093, %v4617
        %v4644 = vmul.f32 %v4066, %v4622
        %v4645 = vmul.f32 %v4095, %v4622
        %v4646 = vmul.f32 %v4069, %v4627
        %v4647 = vmul.f32 %v4098, %v4627
        %v4648 = vmul.f32 %v4071, %v4632
        %v4649 = vmul.f32 %v4100, %v4632
        %s4650 = scalar_lea.vmem %s4, 6
        %v4651 = vld [vmem:[%s4650] ss:$8 sm:$0x3]
        %v4653 = vperm.slane %v4651, 0
        %v4654 = vperm.slane %v4651, 1
        %v4657 = vmul.f32 %v4634, %v4653
        %v4658 = vmul.f32 %v4635, %v4654
        %v4659 = vmul.f32 %v4636, %v4653
        %v4660 = vmul.f32 %v4637, %v4654
        %v4661 = vmul.f32 %v4638, %v4653
        %v4662 = vmul.f32 %v4639, %v4654
        %v4663 = vmul.f32 %v4640, %v4653
        %v4664 = vmul.f32 %v4641, %v4654
        %v4665 = vmul.f32 %v4642, %v4653
        %v4666 = vmul.f32 %v4643, %v4654
        %v4667 = vmul.f32 %v4644, %v4653
        %v4668 = vmul.f32 %v4645, %v4654
        %v4669 = vmul.f32 %v4646, %v4653
        %v4670 = vmul.f32 %v4647, %v4654
        %v4671 = vmul.f32 %v4648, %v4653
        %v4672 = vmul.f32 %v4649, %v4654
        %v4673 = vadd.f32 %v4569, %v4657
        %v4674 = vadd.f32 %v4570, %v4658
        %v4675 = vadd.f32 %v4571, %v4659
        %v4676 = vadd.f32 %v4572, %v4660
        %v4677 = vadd.f32 %v4573, %v4661
        %v4678 = vadd.f32 %v4574, %v4662
        %v4679 = vadd.f32 %v4575, %v4663
        %v4680 = vadd.f32 %v4576, %v4664
        %v4681 = vadd.f32 %v4577, %v4665
        %v4682 = vadd.f32 %v4578, %v4666
        %v4683 = vadd.f32 %v4579, %v4667
        %v4684 = vadd.f32 %v4580, %v4668
        %v4685 = vadd.f32 %v4581, %v4669
        %v4686 = vadd.f32 %v4582, %v4670
        %v4687 = vadd.f32 %v4583, %v4671
        %v4688 = vadd.f32 %v4584, %v4672
        %s4689 = scalar_lea.vmem %s6, 320
        %v4690 = vld [vmem:[%s4689] sm:$0xff]
        %v4691 = vld [vmem:[%s4689 + $0x8] sm:$0xff]
        %v4692 = vld [vmem:[%s4689 + $0x10] sm:$0xff]
        %v4693 = vld [vmem:[%s4689 + $0x18] sm:$0xff]
        %v4694 = vld [vmem:[%s4689 + $0x20] sm:$0xff]
        %v4695 = vld [vmem:[%s4689 + $0x28] sm:$0xff]
        %v4696 = vld [vmem:[%s4689 + $0x30] sm:$0xff]
        %v4697 = vld [vmem:[%s4689 + $0x38] sm:$0xff]
        %4699 = vset.pattern.permute.xlu0 0
        %4700 = vperm.xlu0 %4699, %v4690
        %v4701 = vpop.permute.xlu0 %4700
        %4704 = vset.pattern.permute.xlu0 0
        %4705 = vperm.xlu0 %4704, %v4691
        %v4706 = vpop.permute.xlu0 %4705
        %4709 = vset.pattern.permute.xlu0 0
        %4710 = vperm.xlu0 %4709, %v4692
        %v4711 = vpop.permute.xlu0 %4710
        %4714 = vset.pattern.permute.xlu0 0
        %4715 = vperm.xlu0 %4714, %v4693
        %v4716 = vpop.permute.xlu0 %4715
        %4719 = vset.pattern.permute.xlu0 0
        %4720 = vperm.xlu0 %4719, %v4694
        %v4721 = vpop.permute.xlu0 %4720
        %4724 = vset.pattern.permute.xlu0 0
        %4725 = vperm.xlu0 %4724, %v4695
        %v4726 = vpop.permute.xlu0 %4725
        %4729 = vset.pattern.permute.xlu0 0
        %4730 = vperm.xlu0 %4729, %v4696
        %v4731 = vpop.permute.xlu0 %4730
        %4734 = vset.pattern.permute.xlu0 0
        %4735 = vperm.xlu0 %4734, %v4697
        %v4736 = vpop.permute.xlu0 %4735
        %v4738 = vmul.f32 %v4373, %v4701
        %v4739 = vmul.f32 %v4374, %v4701
        %v4740 = vmul.f32 %v4371, %v4706
        %v4741 = vmul.f32 %v4372, %v4706
        %v4742 = vmul.f32 %v4369, %v4711
        %v4743 = vmul.f32 %v4370, %v4711
        %v4744 = vmul.f32 %v4367, %v4716
        %v4745 = vmul.f32 %v4368, %v4716
        %v4746 = vmul.f32 %v4365, %v4721
        %v4747 = vmul.f32 %v4366, %v4721
        %v4748 = vmul.f32 %v4363, %v4726
        %v4749 = vmul.f32 %v4364, %v4726
        %v4750 = vmul.f32 %v4361, %v4731
        %v4751 = vmul.f32 %v4362, %v4731
        %v4752 = vmul.f32 %v4375, %v4736
        %v4753 = vmul.f32 %v4376, %v4736
        %s4754 = scalar_lea.vmem %s4, 7
        %v4755 = vld [vmem:[%s4754] ss:$8 sm:$0x3]
        %v4757 = vperm.slane %v4755, 0
        %v4758 = vperm.slane %v4755, 1
        %v4761 = vmul.f32 %v4738, %v4757
        %v4762 = vmul.f32 %v4739, %v4758
        %v4763 = vmul.f32 %v4740, %v4757
        %v4764 = vmul.f32 %v4741, %v4758
        %v4765 = vmul.f32 %v4742, %v4757
        %v4766 = vmul.f32 %v4743, %v4758
        %v4767 = vmul.f32 %v4744, %v4757
        %v4768 = vmul.f32 %v4745, %v4758
        %v4769 = vmul.f32 %v4746, %v4757
        %v4770 = vmul.f32 %v4747, %v4758
        %v4771 = vmul.f32 %v4748, %v4757
        %v4772 = vmul.f32 %v4749, %v4758
        %v4773 = vmul.f32 %v4750, %v4757
        %v4774 = vmul.f32 %v4751, %v4758
        %v4775 = vmul.f32 %v4752, %v4757
        %v4776 = vmul.f32 %v4753, %v4758
        %v4777 = vadd.f32 %v4673, %v4761
        %v4778 = vadd.f32 %v4674, %v4762
        %v4779 = vadd.f32 %v4675, %v4763
        %v4780 = vadd.f32 %v4676, %v4764
        %v4781 = vadd.f32 %v4677, %v4765
        %v4782 = vadd.f32 %v4678, %v4766
        %v4783 = vadd.f32 %v4679, %v4767
        %v4784 = vadd.f32 %v4680, %v4768
        %v4785 = vadd.f32 %v4681, %v4769
        %v4786 = vadd.f32 %v4682, %v4770
        %v4787 = vadd.f32 %v4683, %v4771
        %v4788 = vadd.f32 %v4684, %v4772
        %v4789 = vadd.f32 %v4685, %v4773
        %v4790 = vadd.f32 %v4686, %v4774
        %v4791 = vadd.f32 %v4687, %v4775
        %v4792 = vadd.f32 %v4688, %v4776
        %s4793 = scalar_lea.vmem %s6, 384
        %v4794 = vld [vmem:[%s4793] sm:$0xff]
        %v4795 = vld [vmem:[%s4793 + $0x8] sm:$0xff]
        %v4796 = vld [vmem:[%s4793 + $0x10] sm:$0xff]
        %v4797 = vld [vmem:[%s4793 + $0x18] sm:$0xff]
        %v4798 = vld [vmem:[%s4793 + $0x20] sm:$0xff]
        %v4799 = vld [vmem:[%s4793 + $0x28] sm:$0xff]
        %v4800 = vld [vmem:[%s4793 + $0x30] sm:$0xff]
        %v4801 = vld [vmem:[%s4793 + $0x38] sm:$0xff]
        %4803 = vset.pattern.permute.xlu0 0
        %4804 = vperm.xlu0 %4803, %v4794
        %v4805 = vpop.permute.xlu0 %4804
        %4808 = vset.pattern.permute.xlu0 0
        %4809 = vperm.xlu0 %4808, %v4795
        %v4810 = vpop.permute.xlu0 %4809
        %4813 = vset.pattern.permute.xlu0 0
        %4814 = vperm.xlu0 %4813, %v4796
        %v4815 = vpop.permute.xlu0 %4814
        %4818 = vset.pattern.permute.xlu0 0
        %4819 = vperm.xlu0 %4818, %v4797
        %v4820 = vpop.permute.xlu0 %4819
        %4823 = vset.pattern.permute.xlu0 0
        %4824 = vperm.xlu0 %4823, %v4798
        %v4825 = vpop.permute.xlu0 %4824
        %4828 = vset.pattern.permute.xlu0 0
        %4829 = vperm.xlu0 %4828, %v4799
        %v4830 = vpop.permute.xlu0 %4829
        %4833 = vset.pattern.permute.xlu0 0
        %4834 = vperm.xlu0 %4833, %v4800
        %v4835 = vpop.permute.xlu0 %4834
        %4838 = vset.pattern.permute.xlu0 0
        %4839 = vperm.xlu0 %4838, %v4801
        %v4840 = vpop.permute.xlu0 %4839
        %v4842 = vmul.f32 %v4133, %v4805
        %v4843 = vmul.f32 %v4134, %v4805
        %v4844 = vmul.f32 %v4131, %v4810
        %v4845 = vmul.f32 %v4132, %v4810
        %v4846 = vmul.f32 %v4129, %v4815
        %v4847 = vmul.f32 %v4130, %v4815
        %v4848 = vmul.f32 %v4127, %v4820
        %v4849 = vmul.f32 %v4128, %v4820
        %v4850 = vmul.f32 %v4125, %v4825
        %v4851 = vmul.f32 %v4126, %v4825
        %v4852 = vmul.f32 %v4123, %v4830
        %v4853 = vmul.f32 %v4124, %v4830
        %v4854 = vmul.f32 %v4121, %v4835
        %v4855 = vmul.f32 %v4122, %v4835
        %v4856 = vmul.f32 %v4135, %v4840
        %v4857 = vmul.f32 %v4136, %v4840
        %s4858 = scalar_lea.vmem %s4, 16
        %v4859 = vld [vmem:[%s4858] ss:$8 sm:$0x3]
        %v4861 = vperm.slane %v4859, 0
        %v4862 = vperm.slane %v4859, 1
        %v4865 = vmul.f32 %v4842, %v4861
        %v4866 = vmul.f32 %v4843, %v4862
        %v4867 = vmul.f32 %v4844, %v4861
        %v4868 = vmul.f32 %v4845, %v4862
        %v4869 = vmul.f32 %v4846, %v4861
        %v4870 = vmul.f32 %v4847, %v4862
        %v4871 = vmul.f32 %v4848, %v4861
        %v4872 = vmul.f32 %v4849, %v4862
        %v4873 = vmul.f32 %v4850, %v4861
        %v4874 = vmul.f32 %v4851, %v4862
        %v4875 = vmul.f32 %v4852, %v4861
        %v4876 = vmul.f32 %v4853, %v4862
        %v4877 = vmul.f32 %v4854, %v4861
        %v4878 = vmul.f32 %v4855, %v4862
        %v4879 = vmul.f32 %v4856, %v4861
        %v4880 = vmul.f32 %v4857, %v4862
        %v4881 = vadd.f32 %v4777, %v4865
        %v4882 = vadd.f32 %v4778, %v4866
        %v4883 = vadd.f32 %v4779, %v4867
        %v4884 = vadd.f32 %v4780, %v4868
        %v4885 = vadd.f32 %v4781, %v4869
        %v4886 = vadd.f32 %v4782, %v4870
        %v4887 = vadd.f32 %v4783, %v4871
        %v4888 = vadd.f32 %v4784, %v4872
        %v4889 = vadd.f32 %v4785, %v4873
        %v4890 = vadd.f32 %v4786, %v4874
        %v4891 = vadd.f32 %v4787, %v4875
        %v4892 = vadd.f32 %v4788, %v4876
        %v4893 = vadd.f32 %v4789, %v4877
        %v4894 = vadd.f32 %v4790, %v4878
        %v4895 = vadd.f32 %v4791, %v4879
        %v4896 = vadd.f32 %v4792, %v4880
        %s4897 = scalar_lea.vmem %s6, 448
        %v4898 = vld [vmem:[%s4897] sm:$0xff]
        %v4899 = vld [vmem:[%s4897 + $0x8] sm:$0xff]
        %v4900 = vld [vmem:[%s4897 + $0x10] sm:$0xff]
        %v4901 = vld [vmem:[%s4897 + $0x18] sm:$0xff]
        %v4902 = vld [vmem:[%s4897 + $0x20] sm:$0xff]
        %v4903 = vld [vmem:[%s4897 + $0x28] sm:$0xff]
        %v4904 = vld [vmem:[%s4897 + $0x30] sm:$0xff]
        %v4905 = vld [vmem:[%s4897 + $0x38] sm:$0xff]
        %4907 = vset.pattern.permute.xlu0 0
        %4908 = vperm.xlu0 %4907, %v4898
        %v4909 = vpop.permute.xlu0 %4908
        %4912 = vset.pattern.permute.xlu0 0
        %4913 = vperm.xlu0 %4912, %v4899
        %v4914 = vpop.permute.xlu0 %4913
        %4917 = vset.pattern.permute.xlu0 0
        %4918 = vperm.xlu0 %4917, %v4900
        %v4919 = vpop.permute.xlu0 %4918
        %4922 = vset.pattern.permute.xlu0 0
        %4923 = vperm.xlu0 %4922, %v4901
        %v4924 = vpop.permute.xlu0 %4923
        %4927 = vset.pattern.permute.xlu0 0
        %4928 = vperm.xlu0 %4927, %v4902
        %v4929 = vpop.permute.xlu0 %4928
        %4932 = vset.pattern.permute.xlu0 0
        %4933 = vperm.xlu0 %4932, %v4903
        %v4934 = vpop.permute.xlu0 %4933
        %4937 = vset.pattern.permute.xlu0 0
        %4938 = vperm.xlu0 %4937, %v4904
        %v4939 = vpop.permute.xlu0 %4938
        %4942 = vset.pattern.permute.xlu0 0
        %4943 = vperm.xlu0 %4942, %v4905
        %v4944 = vpop.permute.xlu0 %4943
        %v4946 = vmul.f32 %v4056, %v4909
        %v4947 = vmul.f32 %v4085, %v4909
        %v4948 = vmul.f32 %v4059, %v4914
        %v4949 = vmul.f32 %v4088, %v4914
        %v4950 = vmul.f32 %v4061, %v4919
        %v4951 = vmul.f32 %v4090, %v4919
        %v4952 = vmul.f32 %v4064, %v4924
        %v4953 = vmul.f32 %v4093, %v4924
        %v4954 = vmul.f32 %v4066, %v4929
        %v4955 = vmul.f32 %v4095, %v4929
        %v4956 = vmul.f32 %v4069, %v4934
        %v4957 = vmul.f32 %v4098, %v4934
        %v4958 = vmul.f32 %v4071, %v4939
        %v4959 = vmul.f32 %v4100, %v4939
        %v4960 = vmul.f32 %v4054, %v4944
        %v4961 = vmul.f32 %v4083, %v4944
        %s4962 = scalar_lea.vmem %s4, 17
        %v4963 = vld [vmem:[%s4962] ss:$8 sm:$0x3]
        %v4965 = vperm.slane %v4963, 0
        %v4966 = vperm.slane %v4963, 1
        %v4969 = vmul.f32 %v4946, %v4965
        %v4970 = vmul.f32 %v4947, %v4966
        %v4971 = vmul.f32 %v4948, %v4965
        %v4972 = vmul.f32 %v4949, %v4966
        %v4973 = vmul.f32 %v4950, %v4965
        %v4974 = vmul.f32 %v4951, %v4966
        %v4975 = vmul.f32 %v4952, %v4965
        %v4976 = vmul.f32 %v4953, %v4966
        %v4977 = vmul.f32 %v4954, %v4965
        %v4978 = vmul.f32 %v4955, %v4966
        %v4979 = vmul.f32 %v4956, %v4965
        %v4980 = vmul.f32 %v4957, %v4966
        %v4981 = vmul.f32 %v4958, %v4965
        %v4982 = vmul.f32 %v4959, %v4966
        %v4983 = vmul.f32 %v4960, %v4965
        %v4984 = vmul.f32 %v4961, %v4966
        %v4985 = vadd.f32 %v4881, %v4969
        %v4986 = vadd.f32 %v4882, %v4970
        %v4987 = vadd.f32 %v4883, %v4971
        %v4988 = vadd.f32 %v4884, %v4972
        %v4989 = vadd.f32 %v4885, %v4973
        %v4990 = vadd.f32 %v4886, %v4974
        %v4991 = vadd.f32 %v4887, %v4975
        %v4992 = vadd.f32 %v4888, %v4976
        %v4993 = vadd.f32 %v4889, %v4977
        %v4994 = vadd.f32 %v4890, %v4978
        %v4995 = vadd.f32 %v4891, %v4979
        %v4996 = vadd.f32 %v4892, %v4980
        %v4997 = vadd.f32 %v4893, %v4981
        %v4998 = vadd.f32 %v4894, %v4982
        %v4999 = vadd.f32 %v4895, %v4983
        %v5000 = vadd.f32 %v4896, %v4984
        %s5001 = scalar_lea.vmem %s6, 512
        %v5002 = vld [vmem:[%s5001] sm:$0xff]
        %v5003 = vld [vmem:[%s5001 + $0x8] sm:$0xff]
        %v5004 = vld [vmem:[%s5001 + $0x10] sm:$0xff]
        %v5005 = vld [vmem:[%s5001 + $0x18] sm:$0xff]
        %v5006 = vld [vmem:[%s5001 + $0x20] sm:$0xff]
        %v5007 = vld [vmem:[%s5001 + $0x28] sm:$0xff]
        %v5008 = vld [vmem:[%s5001 + $0x30] sm:$0xff]
        %v5009 = vld [vmem:[%s5001 + $0x38] sm:$0xff]
        %5011 = vset.pattern.permute.xlu0 0
        %5012 = vperm.xlu0 %5011, %v5002
        %v5013 = vpop.permute.xlu0 %5012
        %5016 = vset.pattern.permute.xlu0 0
        %5017 = vperm.xlu0 %5016, %v5003
        %v5018 = vpop.permute.xlu0 %5017
        %5021 = vset.pattern.permute.xlu0 0
        %5022 = vperm.xlu0 %5021, %v5004
        %v5023 = vpop.permute.xlu0 %5022
        %5026 = vset.pattern.permute.xlu0 0
        %5027 = vperm.xlu0 %5026, %v5005
        %v5028 = vpop.permute.xlu0 %5027
        %5031 = vset.pattern.permute.xlu0 0
        %5032 = vperm.xlu0 %5031, %v5006
        %v5033 = vpop.permute.xlu0 %5032
        %5036 = vset.pattern.permute.xlu0 0
        %5037 = vperm.xlu0 %5036, %v5007
        %v5038 = vpop.permute.xlu0 %5037
        %5041 = vset.pattern.permute.xlu0 0
        %5042 = vperm.xlu0 %5041, %v5008
        %v5043 = vpop.permute.xlu0 %5042
        %5046 = vset.pattern.permute.xlu0 0
        %5047 = vperm.xlu0 %5046, %v5009
        %v5048 = vpop.permute.xlu0 %5047
        %v5050 = vmul.f32 %v4371, %v5013
        %v5051 = vmul.f32 %v4372, %v5013
        %v5052 = vmul.f32 %v4369, %v5018
        %v5053 = vmul.f32 %v4370, %v5018
        %v5054 = vmul.f32 %v4367, %v5023
        %v5055 = vmul.f32 %v4368, %v5023
        %v5056 = vmul.f32 %v4365, %v5028
        %v5057 = vmul.f32 %v4366, %v5028
        %v5058 = vmul.f32 %v4363, %v5033
        %v5059 = vmul.f32 %v4364, %v5033
        %v5060 = vmul.f32 %v4361, %v5038
        %v5061 = vmul.f32 %v4362, %v5038
        %v5062 = vmul.f32 %v4375, %v5043
        %v5063 = vmul.f32 %v4376, %v5043
        %v5064 = vmul.f32 %v4373, %v5048
        %v5065 = vmul.f32 %v4374, %v5048
        %s5066 = scalar_lea.vmem %s4, 18
        %v5067 = vld [vmem:[%s5066] ss:$8 sm:$0x3]
        %v5069 = vperm.slane %v5067, 0
        %v5070 = vperm.slane %v5067, 1
        %v5073 = vmul.f32 %v5050, %v5069
        %v5074 = vmul.f32 %v5051, %v5070
        %v5075 = vmul.f32 %v5052, %v5069
        %v5076 = vmul.f32 %v5053, %v5070
        %v5077 = vmul.f32 %v5054, %v5069
        %v5078 = vmul.f32 %v5055, %v5070
        %v5079 = vmul.f32 %v5056, %v5069
        %v5080 = vmul.f32 %v5057, %v5070
        %v5081 = vmul.f32 %v5058, %v5069
        %v5082 = vmul.f32 %v5059, %v5070
        %v5083 = vmul.f32 %v5060, %v5069
        %v5084 = vmul.f32 %v5061, %v5070
        %v5085 = vmul.f32 %v5062, %v5069
        %v5086 = vmul.f32 %v5063, %v5070
        %v5087 = vmul.f32 %v5064, %v5069
        %v5088 = vmul.f32 %v5065, %v5070
        %v5089 = vadd.f32 %v4985, %v5073
        %v5090 = vadd.f32 %v4986, %v5074
        %v5091 = vadd.f32 %v4987, %v5075
        %v5092 = vadd.f32 %v4988, %v5076
        %v5093 = vadd.f32 %v4989, %v5077
        %v5094 = vadd.f32 %v4990, %v5078
        %v5095 = vadd.f32 %v4991, %v5079
        %v5096 = vadd.f32 %v4992, %v5080
        %v5097 = vadd.f32 %v4993, %v5081
        %v5098 = vadd.f32 %v4994, %v5082
        %v5099 = vadd.f32 %v4995, %v5083
        %v5100 = vadd.f32 %v4996, %v5084
        %v5101 = vadd.f32 %v4997, %v5085
        %v5102 = vadd.f32 %v4998, %v5086
        %v5103 = vadd.f32 %v4999, %v5087
        %v5104 = vadd.f32 %v5000, %v5088
        %s5105 = scalar_lea.vmem %s4, 1
        %v5106 = vld [vmem:[%s5105] ss:$8 sm:$0x3]
        %v5108 = vperm.slane %v5106, 0
        %v5109 = vperm.slane %v5106, 1
        %v5112 = vadd.f32 %v5089, %v5108
        %v5113 = vadd.f32 %v5090, %v5109
        %v5114 = vadd.f32 %v5091, %v5108
        %v5115 = vadd.f32 %v5092, %v5109
        %v5116 = vadd.f32 %v5093, %v5108
        %v5117 = vadd.f32 %v5094, %v5109
        %v5118 = vadd.f32 %v5095, %v5108
        %v5119 = vadd.f32 %v5096, %v5109
        %v5120 = vadd.f32 %v5097, %v5108
        %v5121 = vadd.f32 %v5098, %v5109
        %v5122 = vadd.f32 %v5099, %v5108
        %v5123 = vadd.f32 %v5100, %v5109
        %v5124 = vadd.f32 %v5101, %v5108
        %v5125 = vadd.f32 %v5102, %v5109
        %v5126 = vadd.f32 %v5103, %v5108
        %v5127 = vadd.f32 %v5104, %v5109
        %v5128 = vmul.f32 %v5112, 0.5
        %v5129 = vmul.f32 %v5113, 0.5
        %v5130 = vmul.f32 %v5114, 0.5
        %v5131 = vmul.f32 %v5115, 0.5
        %v5132 = vmul.f32 %v5116, 0.5
        %v5133 = vmul.f32 %v5117, 0.5
        %v5134 = vmul.f32 %v5118, 0.5
        %v5135 = vmul.f32 %v5119, 0.5
        %v5136 = vmul.f32 %v5120, 0.5
        %v5137 = vmul.f32 %v5121, 0.5
        %v5138 = vmul.f32 %v5122, 0.5
        %v5139 = vmul.f32 %v5123, 0.5
        %v5140 = vmul.f32 %v5124, 0.5
        %v5141 = vmul.f32 %v5125, 0.5
        %v5142 = vmul.f32 %v5126, 0.5
        %v5143 = vmul.f32 %v5127, 0.5
        %v5144 = vmul.f32 %v5112, 0.044715
        %v5145 = vmul.f32 %v5113, 0.044715
        %v5146 = vmul.f32 %v5114, 0.044715
        %v5147 = vmul.f32 %v5115, 0.044715
        %v5148 = vmul.f32 %v5116, 0.044715
        %v5149 = vmul.f32 %v5117, 0.044715
        %v5150 = vmul.f32 %v5118, 0.044715
        %v5151 = vmul.f32 %v5119, 0.044715
        %v5152 = vmul.f32 %v5120, 0.044715
        %v5153 = vmul.f32 %v5121, 0.044715
        %v5154 = vmul.f32 %v5122, 0.044715
        %v5155 = vmul.f32 %v5123, 0.044715
        %v5156 = vmul.f32 %v5124, 0.044715
        %v5157 = vmul.f32 %v5125, 0.044715
        %v5158 = vmul.f32 %v5126, 0.044715
        %v5159 = vmul.f32 %v5127, 0.044715
        %v5160 = vmul.f32 %v5144, %v5112
        %v5161 = vmul.f32 %v5145, %v5113
        %v5162 = vmul.f32 %v5146, %v5114
        %v5163 = vmul.f32 %v5147, %v5115
        %v5164 = vmul.f32 %v5148, %v5116
        %v5165 = vmul.f32 %v5149, %v5117
        %v5166 = vmul.f32 %v5150, %v5118
        %v5167 = vmul.f32 %v5151, %v5119
        %v5168 = vmul.f32 %v5152, %v5120
        %v5169 = vmul.f32 %v5153, %v5121
        %v5170 = vmul.f32 %v5154, %v5122
        %v5171 = vmul.f32 %v5155, %v5123
        %v5172 = vmul.f32 %v5156, %v5124
        %v5173 = vmul.f32 %v5157, %v5125
        %v5174 = vmul.f32 %v5158, %v5126
        %v5175 = vmul.f32 %v5159, %v5127
        %v5176 = vmul.f32 %v5160, %v5112
        %v5177 = vmul.f32 %v5161, %v5113
        %v5178 = vmul.f32 %v5162, %v5114
        %v5179 = vmul.f32 %v5163, %v5115
        %v5180 = vmul.f32 %v5164, %v5116
        %v5181 = vmul.f32 %v5165, %v5117
        %v5182 = vmul.f32 %v5166, %v5118
        %v5183 = vmul.f32 %v5167, %v5119
        %v5184 = vmul.f32 %v5168, %v5120
        %v5185 = vmul.f32 %v5169, %v5121
        %v5186 = vmul.f32 %v5170, %v5122
        %v5187 = vmul.f32 %v5171, %v5123
        %v5188 = vmul.f32 %v5172, %v5124
        %v5189 = vmul.f32 %v5173, %v5125
        %v5190 = vmul.f32 %v5174, %v5126
        %v5191 = vmul.f32 %v5175, %v5127
        %v5192 = vadd.f32 %v5112, %v5176
        %v5193 = vadd.f32 %v5113, %v5177
        %v5194 = vadd.f32 %v5114, %v5178
        %v5195 = vadd.f32 %v5115, %v5179
        %v5196 = vadd.f32 %v5116, %v5180
        %v5197 = vadd.f32 %v5117, %v5181
        %v5198 = vadd.f32 %v5118, %v5182
        %v5199 = vadd.f32 %v5119, %v5183
        %v5200 = vadd.f32 %v5120, %v5184
        %v5201 = vadd.f32 %v5121, %v5185
        %v5202 = vadd.f32 %v5122, %v5186
        %v5203 = vadd.f32 %v5123, %v5187
        %v5204 = vadd.f32 %v5124, %v5188
        %v5205 = vadd.f32 %v5125, %v5189
        %v5206 = vadd.f32 %v5126, %v5190
        %v5207 = vadd.f32 %v5127, %v5191
        %v5208 = vmul.f32 %v5192, 0.7978846
        %v5209 = vmul.f32 %v5193, 0.7978846
        %v5210 = vmul.f32 %v5194, 0.7978846
        %v5211 = vmul.f32 %v5195, 0.7978846
        %v5212 = vmul.f32 %v5196, 0.7978846
        %v5213 = vmul.f32 %v5197, 0.7978846
        %v5214 = vmul.f32 %v5198, 0.7978846
        %v5215 = vmul.f32 %v5199, 0.7978846
        %v5216 = vmul.f32 %v5200, 0.7978846
        %v5217 = vmul.f32 %v5201, 0.7978846
        %v5218 = vmul.f32 %v5202, 0.7978846
        %v5219 = vmul.f32 %v5203, 0.7978846
        %v5220 = vmul.f32 %v5204, 0.7978846
        %v5221 = vmul.f32 %v5205, 0.7978846
        %v5222 = vmul.f32 %v5206, 0.7978846
        %v5223 = vmul.f32 %v5207, 0.7978846
        %v5224 = vtanh.pop %v5208
        %v5225 = vtanh.pop %v5209
        %v5226 = vtanh.pop %v5210
        %v5227 = vtanh.pop %v5211
        %v5228 = vtanh.pop %v5212
        %v5229 = vtanh.pop %v5213
        %v5230 = vtanh.pop %v5214
        %v5231 = vtanh.pop %v5215
        %v5232 = vtanh.pop %v5216
        %v5233 = vtanh.pop %v5217
        %v5234 = vtanh.pop %v5218
        %v5235 = vtanh.pop %v5219
        %v5236 = vtanh.pop %v5220
        %v5237 = vtanh.pop %v5221
        %v5238 = vtanh.pop %v5222
        %v5239 = vtanh.pop %v5223
        %v5240 = vadd.f32 %v5224, 1.0
        %v5241 = vadd.f32 %v5225, 1.0
        %v5242 = vadd.f32 %v5226, 1.0
        %v5243 = vadd.f32 %v5227, 1.0
        %v5244 = vadd.f32 %v5228, 1.0
        %v5245 = vadd.f32 %v5229, 1.0
        %v5246 = vadd.f32 %v5230, 1.0
        %v5247 = vadd.f32 %v5231, 1.0
        %v5248 = vadd.f32 %v5232, 1.0
        %v5249 = vadd.f32 %v5233, 1.0
        %v5250 = vadd.f32 %v5234, 1.0
        %v5251 = vadd.f32 %v5235, 1.0
        %v5252 = vadd.f32 %v5236, 1.0
        %v5253 = vadd.f32 %v5237, 1.0
        %v5254 = vadd.f32 %v5238, 1.0
        %v5255 = vadd.f32 %v5239, 1.0
        %v5256 = vmul.f32 %v5128, %v5240
        %v5257 = vmul.f32 %v5129, %v5241
        %v5258 = vmul.f32 %v5130, %v5242
        %v5259 = vmul.f32 %v5131, %v5243
        %v5260 = vmul.f32 %v5132, %v5244
        %v5261 = vmul.f32 %v5133, %v5245
        %v5262 = vmul.f32 %v5134, %v5246
        %v5263 = vmul.f32 %v5135, %v5247
        %v5264 = vmul.f32 %v5136, %v5248
        %v5265 = vmul.f32 %v5137, %v5249
        %v5266 = vmul.f32 %v5138, %v5250
        %v5267 = vmul.f32 %v5139, %v5251
        %v5268 = vmul.f32 %v5140, %v5252
        %v5269 = vmul.f32 %v5141, %v5253
        %v5270 = vmul.f32 %v5142, %v5254
        %v5271 = vmul.f32 %v5143, %v5255
        %v5272 = vpack.c.bf16 %v5258, %v5256
        %v5273 = vpack.c.bf16 %v5259, %v5257
        %v5274 = vpack.c.bf16 %v5262, %v5260
        %v5275 = vpack.c.bf16 %v5263, %v5261
        %v5276 = vpack.c.bf16 %v5266, %v5264
        %v5277 = vpack.c.bf16 %v5267, %v5265
        %v5278 = vpack.c.bf16 %v5270, %v5268
        %v5279 = vpack.c.bf16 %v5271, %v5269
        %v5280 = vld [vmem:[#allocation10] sm:$0xf]
        %v5281 = vld [vmem:[#allocation10 + $0x4] sm:$0xf]
        %v5282 = vld [vmem:[#allocation10 + $0x8] sm:$0xf]
        %v5283 = vld [vmem:[#allocation10 + $0xc] sm:$0xf]
        %v5284 = vld [vmem:[#allocation10 + $0x10] sm:$0xf]
        %v5285 = vld [vmem:[#allocation10 + $0x14] sm:$0xf]
        %v5286 = vld [vmem:[#allocation10 + $0x18] sm:$0xf]
        %v5287 = vld [vmem:[#allocation10 + $0x1c] sm:$0xf]
        %v5288 = vld [vmem:[#allocation10 + $0x20] sm:$0xf]
        %v5289 = vld [vmem:[#allocation10 + $0x24] sm:$0xf]
        %v5290 = vld [vmem:[#allocation10 + $0x28] sm:$0xf]
        %v5291 = vld [vmem:[#allocation10 + $0x2c] sm:$0xf]
        %v5292 = vld [vmem:[#allocation10 + $0x30] sm:$0xf]
        %v5293 = vld [vmem:[#allocation10 + $0x34] sm:$0xf]
        %v5294 = vld [vmem:[#allocation10 + $0x38] sm:$0xf]
        %v5295 = vld [vmem:[#allocation10 + $0x3c] sm:$0xf]
        %v5296 = vld [vmem:[#allocation10 + $0x40] sm:$0xf]
        %v5297 = vld [vmem:[#allocation10 + $0x44] sm:$0xf]
        %v5298 = vld [vmem:[#allocation10 + $0x48] sm:$0xf]
        %v5299 = vld [vmem:[#allocation10 + $0x4c] sm:$0xf]
        %v5300 = vld [vmem:[#allocation10 + $0x50] sm:$0xf]
        %v5301 = vld [vmem:[#allocation10 + $0x54] sm:$0xf]
        %v5302 = vld [vmem:[#allocation10 + $0x58] sm:$0xf]
        %v5303 = vld [vmem:[#allocation10 + $0x5c] sm:$0xf]
        %v5304 = vld [vmem:[#allocation10 + $0x60] sm:$0xf]
        %v5305 = vld [vmem:[#allocation10 + $0x64] sm:$0xf]
        %v5306 = vld [vmem:[#allocation10 + $0x68] sm:$0xf]
        %v5307 = vld [vmem:[#allocation10 + $0x6c] sm:$0xf]
        %v5308 = vld [vmem:[#allocation10 + $0x70] sm:$0xf]
        %v5309 = vld [vmem:[#allocation10 + $0x74] sm:$0xf]
        %v5310 = vld [vmem:[#allocation10 + $0x78] sm:$0xf]
        %v5311 = vld [vmem:[#allocation10 + $0x7c] sm:$0xf]
        %v5312 = vld [vmem:[%s3 + $0x17] sm:$0x1]
        %v5313 = vperm.slane %v5312, 0
        %v5346 = vunpack.c.l.b16 %v5280
        %v5347 = vunpack.c.l.b16 %v5281
        %v5348 = vunpack.c.l.b16 %v5282
        %v5349 = vunpack.c.l.b16 %v5283
        %v5350 = vunpack.c.l.b16 %v5284
        %v5351 = vunpack.c.l.b16 %v5285
        %v5352 = vunpack.c.l.b16 %v5286
        %v5353 = vunpack.c.l.b16 %v5287
        %v5354 = vunpack.c.l.b16 %v5288
        %v5355 = vunpack.c.l.b16 %v5289
        %v5356 = vunpack.c.l.b16 %v5290
        %v5357 = vunpack.c.l.b16 %v5291
        %v5358 = vunpack.c.l.b16 %v5292
        %v5359 = vunpack.c.l.b16 %v5293
        %v5360 = vunpack.c.l.b16 %v5294
        %v5361 = vunpack.c.l.b16 %v5295
        %v5362 = vunpack.c.l.b16 %v5296
        %v5363 = vunpack.c.l.b16 %v5297
        %v5364 = vunpack.c.l.b16 %v5298
        %v5365 = vunpack.c.l.b16 %v5299
        %v5366 = vunpack.c.l.b16 %v5300
        %v5367 = vunpack.c.l.b16 %v5301
        %v5368 = vunpack.c.l.b16 %v5302
        %v5369 = vunpack.c.l.b16 %v5303
        %v5370 = vunpack.c.l.b16 %v5304
        %v5371 = vunpack.c.l.b16 %v5305
        %v5372 = vunpack.c.l.b16 %v5306
        %v5373 = vunpack.c.l.b16 %v5307
        %v5374 = vunpack.c.l.b16 %v5308
        %v5375 = vunpack.c.l.b16 %v5309
        %v5376 = vunpack.c.l.b16 %v5310
        %v5377 = vunpack.c.l.b16 %v5311
        %v5378 = vpack.c.b16 %v5347, %v5346
        %v5379 = vpack.c.b16 %v5349, %v5348
        %v5380 = vpack.c.b16 %v5351, %v5350
        %v5381 = vpack.c.b16 %v5353, %v5352
        %v5382 = vpack.c.b16 %v5355, %v5354
        %v5383 = vpack.c.b16 %v5357, %v5356
        %v5384 = vpack.c.b16 %v5359, %v5358
        %v5385 = vpack.c.b16 %v5361, %v5360
        %v5386 = vpack.c.b16 %v5363, %v5362
        %v5387 = vpack.c.b16 %v5365, %v5364
        %v5388 = vpack.c.b16 %v5367, %v5366
        %v5389 = vpack.c.b16 %v5369, %v5368
        %v5390 = vpack.c.b16 %v5371, %v5370
        %v5391 = vpack.c.b16 %v5373, %v5372
        %v5392 = vpack.c.b16 %v5375, %v5374
        %v5393 = vpack.c.b16 %v5377, %v5376
        %5410 = vmatpush.bf16.msra.mxu0 %v5385
        %5411 = vmatpush.bf16.msra.mxu0 %v5384
        %5412 = vmatpush.bf16.msra.mxu0 %v5383
        %5413 = vmatpush.bf16.msra.mxu0 %v5382
        %5414 = vmatpush.bf16.msra.mxu0 %v5381
        %5415 = vmatpush.bf16.msra.mxu0 %v5380
        %5416 = vmatpush.bf16.msra.mxu0 %v5379
        %5417 = vmatpush.bf16.msra.mxu0 %v5378
        %5418 = vmatmul.bf16.gmra.mxu0 %v5272
        %v5419 = vpop.f32.mrf.mxu0
        %v5420 = vadd.f32 %v5313, %v5419
        %v5421 = vpop.f32.mrf.mxu0
        %v5422 = vadd.f32 %v5313, %v5421
        %5423 = vmatmul.bf16.gmra.mxu0 %v5274
        %v5424 = vpop.f32.mrf.mxu0
        %v5425 = vadd.f32 %v5313, %v5424
        %v5426 = vpop.f32.mrf.mxu0
        %v5427 = vadd.f32 %v5313, %v5426
        %5428 = vmatmul.bf16.gmra.mxu0 %v5276
        %v5429 = vpop.f32.mrf.mxu0
        %v5430 = vadd.f32 %v5313, %v5429
        %v5431 = vpop.f32.mrf.mxu0
        %v5432 = vadd.f32 %v5313, %v5431
        %5433 = vmatmul.bf16.gmra.mxu0 %v5278
        %v5434 = vpop.f32.mrf.mxu0
        %v5435 = vadd.f32 %v5313, %v5434
        %v5436 = vpop.f32.mrf.mxu0
        %v5437 = vadd.f32 %v5313, %v5436
        %5438 = vdwg.mxu0
        %5439 = vmatpush.bf16.msra.mxu0 %v5393
        %5440 = vmatpush.bf16.msra.mxu0 %v5392
        %5441 = vmatpush.bf16.msra.mxu0 %v5391
        %5442 = vmatpush.bf16.msra.mxu0 %v5390
        %5443 = vmatpush.bf16.msra.mxu0 %v5389
        %5444 = vmatpush.bf16.msra.mxu0 %v5388
        %5445 = vmatpush.bf16.msra.mxu0 %v5387
        %5446 = vmatpush.bf16.msra.mxu0 %v5386
        %5447 = vmatmul.bf16.gmra.mxu0 %v5273
        %v5448 = vpop.f32.mrf.mxu0
        %v5449 = vadd.f32 %v5420, %v5448
        %v5450 = vpop.f32.mrf.mxu0
        %v5451 = vadd.f32 %v5422, %v5450
        %5452 = vmatmul.bf16.gmra.mxu0 %v5275
        %v5453 = vpop.f32.mrf.mxu0
        %v5454 = vadd.f32 %v5425, %v5453
        %v5455 = vpop.f32.mrf.mxu0
        %v5456 = vadd.f32 %v5427, %v5455
        %5457 = vmatmul.bf16.gmra.mxu0 %v5277
        %v5458 = vpop.f32.mrf.mxu0
        %v5459 = vadd.f32 %v5430, %v5458
        %v5460 = vpop.f32.mrf.mxu0
        %v5461 = vadd.f32 %v5432, %v5460
        %5462 = vmatmul.bf16.gmra.mxu0 %v5279
        %v5463 = vpop.f32.mrf.mxu0
        %v5464 = vadd.f32 %v5435, %v5463
        %v5465 = vpop.f32.mrf.mxu0
        %v5466 = vadd.f32 %v5437, %v5465
        %5467 = vdwg.mxu0
        %v5468 = vadd.f32 %v3750, %v5449
        %v5469 = vadd.f32 %v3751, %v5451
        %v5470 = vadd.f32 %v3752, %v5454
        %v5471 = vadd.f32 %v3753, %v5456
        %v5472 = vadd.f32 %v3754, %v5459
        %v5473 = vadd.f32 %v3755, %v5461
        %v5474 = vadd.f32 %v3756, %v5464
        %v5475 = vadd.f32 %v3757, %v5466
        %5476 = vst [vmem:[%s525] sm:$0xff] %v5468
        %5477 = vst [vmem:[%s525 + $0x8] sm:$0xff] %v5469
        %5478 = vst [vmem:[%s525 + $0x10] sm:$0xff] %v5470
        %5479 = vst [vmem:[%s525 + $0x18] sm:$0xff] %v5471
        %5480 = vst [vmem:[%s525 + $0x20] sm:$0xff] %v5472
        %5481 = vst [vmem:[%s525 + $0x28] sm:$0xff] %v5473
        %5482 = vst [vmem:[%s525 + $0x30] sm:$0xff] %v5474
        %5483 = vst [vmem:[%s525 + $0x38] sm:$0xff] %v5475
        %s5484 = sand.u32 %s286, 1
        %s5485 = scalar_lea.sflag [#allocation4], %s5484
        %s5486 = sand.u32 %s286, 1
        %s5487 = smul.addr %s5486, 64
        %s5488 = scalar_lea.vmem [#allocation11], %s5487
        %s5489 = sand.u32 %s312, 1
        %s5490 = scalar_lea.sflag [#allocation13], %s5489
        %s5491 = sand.u32 %s312, 1
        %s5492 = smul.addr %s5491, 8
        %s5493 = scalar_lea.vmem [#allocation12], %s5492
        // Predicated region
        $region85: #{tpu_custom_call.1} parent=63 // pred_check
          %p5494 = pneg %p296
        $region86: #{tpu_custom_call.1} parent=63 // pred_check_branch
          %5496 = sbr.rel (%p5494) target = $region88
        $region87: #{tpu_custom_call.1} parent=63 // pred_region
          %5498 = vsyncadd %s5485, 0
          %s5499 = smul.addr %s37, 8
          %s5500 = smul.addr %s5499, 8
          %s5501 = scalar_lea.hbm %s11, %s5500
          %s5502 = sshll.u32 %s5488, 4
          %s5503 = int_to_ptr.vmem [resolvable:$true] %s5502
          %s5504 = sshll.u32 %s5501, 4
          %s5505 = int_to_ptr.hbm [resolvable:$true] %s5504
          %5510 = dma.vmem_to_hbm [thread:$0]  %s5503, 1024, %s5505, %s5485, 128, 128, 8
        $region88: #{tpu_custom_call.1} parent=63 // pred_fallthru
          _
        // Predicated region
        $region89: #{tpu_custom_call.1} parent=63 // pred_check
          %p5511 = pneg %p322
        $region90: #{tpu_custom_call.1} parent=63 // pred_check_branch
          %5513 = sbr.rel (%p5511) target = $region92
        $region91: #{tpu_custom_call.1} parent=63 // pred_region
          %5515 = vsyncadd %s5490, 0
          %s5516 = smul.addr %s37, 8
          %s5517 = scalar_lea.hbm %s12, %s5516
          %s5519 = sshll.u32 %s5493, 4
          %s5520 = int_to_ptr.vmem [resolvable:$true] %s5519
          %s5521 = sshll.u32 %s5517, 4
          %s5522 = int_to_ptr.hbm [resolvable:$true] %s5521
          %5524 = dma.vmem_to_hbm [thread:$0]  %s5520, 128, %s5522, %s5490
        $region92: #{tpu_custom_call.1} parent=63 // pred_fallthru
          _
      $region64: #{tpu_custom_call.1} parent=5 // pred_fallthru
        _
      %p5525 = scmp.le.s32.totalorder 2, %s32
      // Predicated region
      $region93: #{tpu_custom_call.1} parent=5 // pred_check
        %p5526 = pneg %p5525
      $region94: #{tpu_custom_call.1} parent=5 // pred_check_branch
        %5528 = sbr.rel (%p5526) target = $region96
      $region95: #{tpu_custom_call.1} parent=5 // pred_region
        %s5529 = ssub.s32 %s32, 2
        // Predicated region
        $region97: #{tpu_custom_call.1} parent=95 // pred_check
          %p5530 = pneg %p302
        $region98: #{tpu_custom_call.1} parent=95 // pred_check_branch
          %5532 = sbr.rel (%p5530) target = $region100
        $region99: #{tpu_custom_call.1} parent=95 // pred_region
          %s5533 = sand.u32 %s287, 1
          %s5534 = scalar_lea.sflag [#allocation4], %s5533
          %s5535 = sand.u32 %s287, 1
          %s5536 = smul.addr %s5535, 64
          %s5537 = scalar_lea.vmem [#allocation11], %s5536
          %5539 = dma.done %s5534, 1024
        $region100: #{tpu_custom_call.1} parent=95 // pred_fallthru
          _
        // Predicated region
        $region101: #{tpu_custom_call.1} parent=95 // pred_check
          %p5540 = pneg %p328
        $region102: #{tpu_custom_call.1} parent=95 // pred_check_branch
          %5542 = sbr.rel (%p5540) target = $region104
        $region103: #{tpu_custom_call.1} parent=95 // pred_region
          %s5543 = sand.u32 %s313, 1
          %s5544 = scalar_lea.sflag [#allocation13], %s5543
          %s5545 = sand.u32 %s313, 1
          %s5546 = smul.addr %s5545, 8
          %s5547 = scalar_lea.vmem [#allocation12], %s5546
          %5549 = dma.done %s5544, 128
        $region104: #{tpu_custom_call.1} parent=95 // pred_fallthru
          _
      $region96: #{tpu_custom_call.1} parent=5 // pred_fallthru
        _
    $region6: #{tpu_custom_call.1} parent=1 // loop_footer
      %s36 = sadd.s32 1, %s32
    $region7: #{tpu_custom_call.1} parent=1 // loop_footer_branch
      %31 = sbr.rel target = $region3
    $region8: #{tpu_custom_call.1} parent=1 // loop_exit
      _
    %5550 = vsyncpa [#allocation3], 1
    %s5551 = scalar_lea.sflag [#allocation3], 1
    %5552 = vsyncpa %s5551, 1
    %5553 = vsyncpa [#allocation6], 1
    %s5554 = scalar_lea.sflag [#allocation6], 1
    %5555 = vsyncpa %s5554, 1
    %5556 = vsyncpa [#allocation9], 1
    %5557 = vsyncpa [#allocation4], 1
    %s5558 = scalar_lea.sflag [#allocation4], 1
    %5559 = vsyncpa %s5558, 1
    %5560 = vsyncpa [#allocation13], 1
    %s5561 = scalar_lea.sflag [#allocation13], 1
    %5562 = vsyncpa %s5561, 1

</llo_original>
